<compile_context>
chip_gen: v6e
topology: v6e:2x2x1
jax: 0.10.0
libtpu: 0.0.40
codegen_flags: <defaults>
</compile_context>

<pallas_src>
import functools

import jax
import jax.numpy as jnp
from jax import lax
from jax.experimental import pallas as pl
from jax.experimental.pallas import tpu as pltpu


def _dilated_conv_kernel(w_ref, x_ref, conv_ref, *, cin, cout, kh_size, kw_size,
                         rate, ho, wo):
    """One batch element: VALID dilated conv, NCHW layout (W on lanes).

    w_ref: SMEM, flat (Cout*Cin*KH*KW,) f32 scalars.
    x_ref: VMEM block (1, Cin, H, W).
    conv_ref: VMEM block (1, Cout, Ho, Wo).
    """
    accs = [jnp.zeros((ho, wo), jnp.float32) for _ in range(cout)]
    for ci in range(cin):
        xc = x_ref[0, ci]                                    # (H, W): load once per ci
        for kh in range(kh_size):
            for kw in range(kw_size):
                # one lane-dense shifted window, reused across all output channels
                xs = xc[kh * rate: kh * rate + ho, kw * rate: kw * rate + wo]
                base = (ci * kh_size + kh) * kw_size + kw
                for co in range(cout):
                    wv = w_ref[co * cin * kh_size * kw_size + base]   # SMEM scalar
                    accs[co] = accs[co] + wv * xs
    for co in range(cout):
        conv_ref[0, co] = accs[co]


def _bn_pool_kernel(scale_ref, shift_ref, conv_ref, o_ref, *, cout, ho, wo,
                    pool_size, pool_stride, hp, wp, activation):
    """One batch element: fused BN (y = conv*scale + shift), MaxPool, optional Mish.

    scale_ref/shift_ref: SMEM (Cout,) f32 (precomputed gamma*rsqrt(var+eps), beta-mean*scale).
    conv_ref: VMEM block (1, Cout, Ho, Wo);  o_ref: VMEM block (1, Cout, Hp, Wp).
    """
    hq = ho - pool_size + 1          # number of window-max rows
    wq = wo - pool_size + 1          # number of window-max cols

    # Exact 0/1 decimation matrices (row / column selection through the MXU,
    # which is otherwise idle here).  sel_h[i, k] = 1 iff k == i*pool_stride,
    # sel_w[k, j] = 1 iff k == j*pool_stride.
    rh = lax.broadcasted_iota(jnp.int32, (hp, hq), 0)
    ch = lax.broadcasted_iota(jnp.int32, (hp, hq), 1)
    sel_h = (ch == rh * pool_stride).astype(jnp.float32)     # (Hp, Hq)
    rw = lax.broadcasted_iota(jnp.int32, (wq, wp), 0)
    cw = lax.broadcasted_iota(jnp.int32, (wq, wp), 1)
    sel_w = (rw == cw * pool_stride).astype(jnp.float32)     # (Wq, Wp)

    for co in range(cout):
        # fused BN: single multiply-add with per-channel SMEM scalars
        v = conv_ref[0, co] * scale_ref[co] + shift_ref[co]  # (Ho, Wo)

        # window max along W (contiguous, lane-dense slices kept in registers)
        a = v[:, :wq]
        for t in range(1, pool_size):
            a = jnp.maximum(a, v[:, t:t + wq])               # (Ho, Wq)
        # window max along H
        b = a[:hq, :]
        for t in range(1, pool_size):
            b = jnp.maximum(b, a[t:t + hq, :])               # (Hq, Wq)

        # exact stride decimation: rows then cols, both standard (M,K)x(K,N) dots
        p = jnp.dot(sel_h, b, precision=lax.Precision.HIGHEST,
                    preferred_element_type=jnp.float32)      # (Hp, Wq)
        p = jnp.dot(p, sel_w, precision=lax.Precision.HIGHEST,
                    preferred_element_type=jnp.float32)      # (Hp, Wp)

        if activation:
            # Mish: x * tanh(softplus(x)) with a numerically stable softplus
            sp = jnp.log1p(jnp.exp(-jnp.abs(p))) + jnp.maximum(p, 0.0)
            p = p * jnp.tanh(sp)

        o_ref[0, co] = p


def depooling_forward(x, conv_w, gamma, beta, *, stride=1, kernel_size=3, rate=1,
                      eps=1e-3, pool_size=2, pool_stride=2, activation=False):
    """Pallas implementation of DEPooling.forward (module default hyper-parameters)."""
    # TODO(synk): strided dilated-conv slicing (stride != 1) not implemented; module default is stride=1.
    assert stride == 1
    N, Cin, H, W = x.shape
    Cout = conv_w.shape[0]
    KH = KW = kernel_size
    Ho = (H - rate * (KH - 1) - 1) // stride + 1
    Wo = (W - rate * (KW - 1) - 1) // stride + 1
    Hp = (Ho - pool_size) // pool_stride + 1
    Wp = (Wo - pool_size) // pool_stride + 1

    x = x.astype(jnp.float32)                                # NCHW kept; no transposes
    w_flat = conv_w.astype(jnp.float32).reshape(-1)          # (Cout*Cin*KH*KW,) -> SMEM

    # ---------------- pass 1: dilated conv, grid over batch -------------------
    conv_kernel = functools.partial(
        _dilated_conv_kernel, cin=Cin, cout=Cout, kh_size=KH, kw_size=KW,
        rate=rate, ho=Ho, wo=Wo)
    conv_cost = pl.CostEstimate(
        flops=int(2 * N * Ho * Wo * KH * KW * Cin * Cout),
        transcendentals=0,
        bytes_accessed=int(4 * (x.size + N * Cout * Ho * Wo + w_flat.size)))
    conv = pl.pallas_call(
        conv_kernel,
        out_shape=jax.ShapeDtypeStruct((N, Cout, Ho, Wo), jnp.float32),
        grid=(N,),
        in_specs=[pl.BlockSpec(memory_space=pltpu.MemorySpace.SMEM),
                  pl.BlockSpec((1, Cin, H, W), lambda n: (n, 0, 0, 0))],
        out_specs=pl.BlockSpec((1, Cout, Ho, Wo), lambda n: (n, 0, 0, 0)),
        compiler_params=pltpu.CompilerParams(
            dimension_semantics=("parallel",),
            vmem_limit_bytes=32 * 1024 * 1024),
        cost_estimate=conv_cost,
    )(w_flat, x)

    # --------- BatchNorm2d train-mode batch stats (centered variance) ---------
    # Global reduction over the whole batch; folded into per-channel scale/shift
    # so the second kernel applies BN as a single fused multiply-add.
    mean = jnp.mean(conv, axis=(0, 2, 3))
    var = jnp.mean(jnp.square(conv - mean.reshape(1, Cout, 1, 1)), axis=(0, 2, 3))
    scale = gamma.astype(jnp.float32).reshape(Cout) / jnp.sqrt(var + eps)
    shift = beta.astype(jnp.float32).reshape(Cout) - mean * scale

    # ---------------- pass 2: BN apply + MaxPool (+ Mish), grid over batch ----
    pool_kernel = functools.partial(
        _bn_pool_kernel, cout=Cout, ho=Ho, wo=Wo, pool_size=pool_size,
        pool_stride=pool_stride, hp=Hp, wp=Wp, activation=activation)
    pool_cost = pl.CostEstimate(
        flops=int(N * Cout * (2 * Ho * Wo + Ho * Wo * pool_size * pool_size
                              + 2 * Hp * (Ho - pool_size + 1) * (Wo - pool_size + 1)
                              + 2 * Hp * Wp * (Wo - pool_size + 1))),
        transcendentals=int(3 * N * Cout * Hp * Wp) if activation else 0,
        bytes_accessed=int(4 * (N * Cout * Ho * Wo + N * Cout * Hp * Wp + 2 * Cout)))
    out = pl.pallas_call(
        pool_kernel,
        out_shape=jax.ShapeDtypeStruct((N, Cout, Hp, Wp), jnp.float32),
        grid=(N,),
        in_specs=[pl.BlockSpec(memory_space=pltpu.MemorySpace.SMEM),
                  pl.BlockSpec(memory_space=pltpu.MemorySpace.SMEM),
                  pl.BlockSpec((1, Cout, Ho, Wo), lambda n: (n, 0, 0, 0))],
        out_specs=pl.BlockSpec((1, Cout, Hp, Wp), lambda n: (n, 0, 0, 0)),
        compiler_params=pltpu.CompilerParams(
            dimension_semantics=("parallel",),
            vmem_limit_bytes=32 * 1024 * 1024),
        cost_estimate=pool_cost,
    )(scale, shift, conv)
    return out


def _reference(x_nchw, conv_w, gamma, beta, eps=1e-3):
    """Pure-JAX reference mirroring the PyTorch forward (train-mode BN)."""
    conv = lax.conv_general_dilated(
        x_nchw, conv_w, window_strides=(1, 1), padding='VALID',
        rhs_dilation=(1, 1), dimension_numbers=('NCHW', 'OIHW', 'NCHW'))
    mean = jnp.mean(conv, axis=(0, 2, 3), keepdims=True)
    var = jnp.mean((conv - mean) ** 2, axis=(0, 2, 3), keepdims=True)
    bn = (conv - mean) / jnp.sqrt(var + eps) * gamma.reshape(1, -1, 1, 1) \
         + beta.reshape(1, -1, 1, 1)
    pooled = lax.reduce_window(bn, -jnp.inf, lax.max,
                               (1, 1, 2, 2), (1, 1, 2, 2), 'VALID')
    return pooled


if __name__ == "__main__":
    N, Cin, Cout, H, W = 2, 4, 8, 16, 16
    key = jax.random.PRNGKey(0)
    kx, kw, kg, kb = jax.random.split(key, 4)

    x = jax.random.normal(kx, (N, Cin, H, W), jnp.float32)
    conv_w = 0.1 * jax.random.normal(kw, (Cout, Cin, 3, 3), jnp.float32)
    gamma = 1.0 + 0.1 * jax.random.normal(kg, (Cout,), jnp.float32)
    beta = 0.1 * jax.random.normal(kb, (Cout,), jnp.float32)

    out = depooling_forward(x, conv_w, gamma, beta)
    out = jax.block_until_ready(out)

    ref = jax.block_until_ready(_reference(x, conv_w, gamma, beta))
    assert out.shape == (N, Cout, 7, 7), out.shape
    assert jnp.allclose(out, ref, rtol=2e-4, atol=2e-4), \
        float(jnp.max(jnp.abs(out - ref)))

    print("KERNEL_OK")
</pallas_src>

<mosaic_0001>
module attributes {stable_mosaic.version = 11 : i64} {
  func.func @_dilated_conv_kernel(%arg0: i32, %arg1: memref<288xf32, #tpu.memory_space<smem>>, %arg2: memref<1x4x16x16xf32, #tpu.memory_space<vmem>>, %arg3: memref<1x8x14x14xf32, #tpu.memory_space<vmem>>) attributes {dimension_semantics = [#tpu.dimension_semantics<parallel>], iteration_bounds = array<i64: 2>, scalar_prefetch = 0 : i64, scratch_operands = 0 : i64, tpu.core_type = #tpu.core_type<tc>, window_params = [{transform_indices = @transform_0, window_bounds = array<i64: 288>}, {transform_indices = @transform_1, window_bounds = array<i64: 1, 4, 16, 16>}, {transform_indices = @transform_2, window_bounds = array<i64: 1, 8, 14, 14>}]} {
    %cst = arith.constant 0.000000e+00 : f32
    %0 = vector.broadcast %cst : f32 to vector<14x14xf32>
    %cst_0 = arith.constant 0.000000e+00 : f32
    %1 = vector.broadcast %cst_0 : f32 to vector<14x14xf32>
    %cst_1 = arith.constant 0.000000e+00 : f32
    %2 = vector.broadcast %cst_1 : f32 to vector<14x14xf32>
    %cst_2 = arith.constant 0.000000e+00 : f32
    %3 = vector.broadcast %cst_2 : f32 to vector<14x14xf32>
    %cst_3 = arith.constant 0.000000e+00 : f32
    %4 = vector.broadcast %cst_3 : f32 to vector<14x14xf32>
    %cst_4 = arith.constant 0.000000e+00 : f32
    %5 = vector.broadcast %cst_4 : f32 to vector<14x14xf32>
    %cst_5 = arith.constant 0.000000e+00 : f32
    %6 = vector.broadcast %cst_5 : f32 to vector<14x14xf32>
    %cst_6 = arith.constant 0.000000e+00 : f32
    %7 = vector.broadcast %cst_6 : f32 to vector<14x14xf32>
    %c0 = arith.constant 0 : index
    %c0_7 = arith.constant 0 : index
    %c0_8 = arith.constant 0 : index
    %c0_9 = arith.constant 0 : index
    %8 = vector.load %arg2[%c0, %c0_7, %c0_8, %c0_9] : memref<1x4x16x16xf32, #tpu.memory_space<vmem>>, vector<1x1x16x16xf32>
    %9 = vector.shape_cast %8 : vector<1x1x16x16xf32> to vector<16x16xf32>
    %10 = vector.extract_strided_slice %9 {offsets = [0, 0], sizes = [14, 14], strides = [1, 1]} : vector<16x16xf32> to vector<14x14xf32>
    %c0_10 = arith.constant 0 : index
    %11 = memref.load %arg1[%c0_10] : memref<288xf32, #tpu.memory_space<smem>>
    %12 = vector.broadcast %11 : f32 to vector<14x14xf32>
    %13 = arith.mulf %12, %10 : vector<14x14xf32>
    %14 = arith.addf %0, %13 : vector<14x14xf32>
    %c36 = arith.constant 36 : index
    %15 = memref.load %arg1[%c36] : memref<288xf32, #tpu.memory_space<smem>>
    %16 = vector.broadcast %15 : f32 to vector<14x14xf32>
    %17 = arith.mulf %16, %10 : vector<14x14xf32>
    %18 = arith.addf %1, %17 : vector<14x14xf32>
    %c72 = arith.constant 72 : index
    %19 = memref.load %arg1[%c72] : memref<288xf32, #tpu.memory_space<smem>>
    %20 = vector.broadcast %19 : f32 to vector<14x14xf32>
    %21 = arith.mulf %20, %10 : vector<14x14xf32>
    %22 = arith.addf %2, %21 : vector<14x14xf32>
    %c108 = arith.constant 108 : index
    %23 = memref.load %arg1[%c108] : memref<288xf32, #tpu.memory_space<smem>>
    %24 = vector.broadcast %23 : f32 to vector<14x14xf32>
    %25 = arith.mulf %24, %10 : vector<14x14xf32>
    %26 = arith.addf %3, %25 : vector<14x14xf32>
    %c144 = arith.constant 144 : index
    %27 = memref.load %arg1[%c144] : memref<288xf32, #tpu.memory_space<smem>>
    %28 = vector.broadcast %27 : f32 to vector<14x14xf32>
    %29 = arith.mulf %28, %10 : vector<14x14xf32>
    %30 = arith.addf %4, %29 : vector<14x14xf32>
    %c180 = arith.constant 180 : index
    %31 = memref.load %arg1[%c180] : memref<288xf32, #tpu.memory_space<smem>>
    %32 = vector.broadcast %31 : f32 to vector<14x14xf32>
    %33 = arith.mulf %32, %10 : vector<14x14xf32>
    %34 = arith.addf %5, %33 : vector<14x14xf32>
    %c216 = arith.constant 216 : index
    %35 = memref.load %arg1[%c216] : memref<288xf32, #tpu.memory_space<smem>>
    %36 = vector.broadcast %35 : f32 to vector<14x14xf32>
    %37 = arith.mulf %36, %10 : vector<14x14xf32>
    %38 = arith.addf %6, %37 : vector<14x14xf32>
    %c252 = arith.constant 252 : index
    %39 = memref.load %arg1[%c252] : memref<288xf32, #tpu.memory_space<smem>>
    %40 = vector.broadcast %39 : f32 to vector<14x14xf32>
    %41 = arith.mulf %40, %10 : vector<14x14xf32>
    %42 = arith.addf %7, %41 : vector<14x14xf32>
    %43 = vector.extract_strided_slice %9 {offsets = [0, 1], sizes = [14, 14], strides = [1, 1]} : vector<16x16xf32> to vector<14x14xf32>
    %c1 = arith.constant 1 : index
    %44 = memref.load %arg1[%c1] : memref<288xf32, #tpu.memory_space<smem>>
    %45 = vector.broadcast %44 : f32 to vector<14x14xf32>
    %46 = arith.mulf %45, %43 : vector<14x14xf32>
    %47 = arith.addf %14, %46 : vector<14x14xf32>
    %c37 = arith.constant 37 : index
    %48 = memref.load %arg1[%c37] : memref<288xf32, #tpu.memory_space<smem>>
    %49 = vector.broadcast %48 : f32 to vector<14x14xf32>
    %50 = arith.mulf %49, %43 : vector<14x14xf32>
    %51 = arith.addf %18, %50 : vector<14x14xf32>
    %c73 = arith.constant 73 : index
    %52 = memref.load %arg1[%c73] : memref<288xf32, #tpu.memory_space<smem>>
    %53 = vector.broadcast %52 : f32 to vector<14x14xf32>
    %54 = arith.mulf %53, %43 : vector<14x14xf32>
    %55 = arith.addf %22, %54 : vector<14x14xf32>
    %c109 = arith.constant 109 : index
    %56 = memref.load %arg1[%c109] : memref<288xf32, #tpu.memory_space<smem>>
    %57 = vector.broadcast %56 : f32 to vector<14x14xf32>
    %58 = arith.mulf %57, %43 : vector<14x14xf32>
    %59 = arith.addf %26, %58 : vector<14x14xf32>
    %c145 = arith.constant 145 : index
    %60 = memref.load %arg1[%c145] : memref<288xf32, #tpu.memory_space<smem>>
    %61 = vector.broadcast %60 : f32 to vector<14x14xf32>
    %62 = arith.mulf %61, %43 : vector<14x14xf32>
    %63 = arith.addf %30, %62 : vector<14x14xf32>
    %c181 = arith.constant 181 : index
    %64 = memref.load %arg1[%c181] : memref<288xf32, #tpu.memory_space<smem>>
    %65 = vector.broadcast %64 : f32 to vector<14x14xf32>
    %66 = arith.mulf %65, %43 : vector<14x14xf32>
    %67 = arith.addf %34, %66 : vector<14x14xf32>
    %c217 = arith.constant 217 : index
    %68 = memref.load %arg1[%c217] : memref<288xf32, #tpu.memory_space<smem>>
    %69 = vector.broadcast %68 : f32 to vector<14x14xf32>
    %70 = arith.mulf %69, %43 : vector<14x14xf32>
    %71 = arith.addf %38, %70 : vector<14x14xf32>
    %c253 = arith.constant 253 : index
    %72 = memref.load %arg1[%c253] : memref<288xf32, #tpu.memory_space<smem>>
    %73 = vector.broadcast %72 : f32 to vector<14x14xf32>
    %74 = arith.mulf %73, %43 : vector<14x14xf32>
    %75 = arith.addf %42, %74 : vector<14x14xf32>
    %76 = vector.extract_strided_slice %9 {offsets = [0, 2], sizes = [14, 14], strides = [1, 1]} : vector<16x16xf32> to vector<14x14xf32>
    %c2 = arith.constant 2 : index
    %77 = memref.load %arg1[%c2] : memref<288xf32, #tpu.memory_space<smem>>
    %78 = vector.broadcast %77 : f32 to vector<14x14xf32>
    %79 = arith.mulf %78, %76 : vector<14x14xf32>
    %80 = arith.addf %47, %79 : vector<14x14xf32>
    %c38 = arith.constant 38 : index
    %81 = memref.load %arg1[%c38] : memref<288xf32, #tpu.memory_space<smem>>
    %82 = vector.broadcast %81 : f32 to vector<14x14xf32>
    %83 = arith.mulf %82, %76 : vector<14x14xf32>
    %84 = arith.addf %51, %83 : vector<14x14xf32>
    %c74 = arith.constant 74 : index
    %85 = memref.load %arg1[%c74] : memref<288xf32, #tpu.memory_space<smem>>
    %86 = vector.broadcast %85 : f32 to vector<14x14xf32>
    %87 = arith.mulf %86, %76 : vector<14x14xf32>
    %88 = arith.addf %55, %87 : vector<14x14xf32>
    %c110 = arith.constant 110 : index
    %89 = memref.load %arg1[%c110] : memref<288xf32, #tpu.memory_space<smem>>
    %90 = vector.broadcast %89 : f32 to vector<14x14xf32>
    %91 = arith.mulf %90, %76 : vector<14x14xf32>
    %92 = arith.addf %59, %91 : vector<14x14xf32>
    %c146 = arith.constant 146 : index
    %93 = memref.load %arg1[%c146] : memref<288xf32, #tpu.memory_space<smem>>
    %94 = vector.broadcast %93 : f32 to vector<14x14xf32>
    %95 = arith.mulf %94, %76 : vector<14x14xf32>
    %96 = arith.addf %63, %95 : vector<14x14xf32>
    %c182 = arith.constant 182 : index
    %97 = memref.load %arg1[%c182] : memref<288xf32, #tpu.memory_space<smem>>
    %98 = vector.broadcast %97 : f32 to vector<14x14xf32>
    %99 = arith.mulf %98, %76 : vector<14x14xf32>
    %100 = arith.addf %67, %99 : vector<14x14xf32>
    %c218 = arith.constant 218 : index
    %101 = memref.load %arg1[%c218] : memref<288xf32, #tpu.memory_space<smem>>
    %102 = vector.broadcast %101 : f32 to vector<14x14xf32>
    %103 = arith.mulf %102, %76 : vector<14x14xf32>
    %104 = arith.addf %71, %103 : vector<14x14xf32>
    %c254 = arith.constant 254 : index
    %105 = memref.load %arg1[%c254] : memref<288xf32, #tpu.memory_space<smem>>
    %106 = vector.broadcast %105 : f32 to vector<14x14xf32>
    %107 = arith.mulf %106, %76 : vector<14x14xf32>
    %108 = arith.addf %75, %107 : vector<14x14xf32>
    %109 = vector.extract_strided_slice %9 {offsets = [1, 0], sizes = [14, 14], strides = [1, 1]} : vector<16x16xf32> to vector<14x14xf32>
    %c3 = arith.constant 3 : index
    %110 = memref.load %arg1[%c3] : memref<288xf32, #tpu.memory_space<smem>>
    %111 = vector.broadcast %110 : f32 to vector<14x14xf32>
    %112 = arith.mulf %111, %109 : vector<14x14xf32>
    %113 = arith.addf %80, %112 : vector<14x14xf32>
    %c39 = arith.constant 39 : index
    %114 = memref.load %arg1[%c39] : memref<288xf32, #tpu.memory_space<smem>>
    %115 = vector.broadcast %114 : f32 to vector<14x14xf32>
    %116 = arith.mulf %115, %109 : vector<14x14xf32>
    %117 = arith.addf %84, %116 : vector<14x14xf32>
    %c75 = arith.constant 75 : index
    %118 = memref.load %arg1[%c75] : memref<288xf32, #tpu.memory_space<smem>>
    %119 = vector.broadcast %118 : f32 to vector<14x14xf32>
    %120 = arith.mulf %119, %109 : vector<14x14xf32>
    %121 = arith.addf %88, %120 : vector<14x14xf32>
    %c111 = arith.constant 111 : index
    %122 = memref.load %arg1[%c111] : memref<288xf32, #tpu.memory_space<smem>>
    %123 = vector.broadcast %122 : f32 to vector<14x14xf32>
    %124 = arith.mulf %123, %109 : vector<14x14xf32>
    %125 = arith.addf %92, %124 : vector<14x14xf32>
    %c147 = arith.constant 147 : index
    %126 = memref.load %arg1[%c147] : memref<288xf32, #tpu.memory_space<smem>>
    %127 = vector.broadcast %126 : f32 to vector<14x14xf32>
    %128 = arith.mulf %127, %109 : vector<14x14xf32>
    %129 = arith.addf %96, %128 : vector<14x14xf32>
    %c183 = arith.constant 183 : index
    %130 = memref.load %arg1[%c183] : memref<288xf32, #tpu.memory_space<smem>>
    %131 = vector.broadcast %130 : f32 to vector<14x14xf32>
    %132 = arith.mulf %131, %109 : vector<14x14xf32>
    %133 = arith.addf %100, %132 : vector<14x14xf32>
    %c219 = arith.constant 219 : index
    %134 = memref.load %arg1[%c219] : memref<288xf32, #tpu.memory_space<smem>>
    %135 = vector.broadcast %134 : f32 to vector<14x14xf32>
    %136 = arith.mulf %135, %109 : vector<14x14xf32>
    %137 = arith.addf %104, %136 : vector<14x14xf32>
    %c255 = arith.constant 255 : index
    %138 = memref.load %arg1[%c255] : memref<288xf32, #tpu.memory_space<smem>>
    %139 = vector.broadcast %138 : f32 to vector<14x14xf32>
    %140 = arith.mulf %139, %109 : vector<14x14xf32>
    %141 = arith.addf %108, %140 : vector<14x14xf32>
    %142 = vector.extract_strided_slice %9 {offsets = [1, 1], sizes = [14, 14], strides = [1, 1]} : vector<16x16xf32> to vector<14x14xf32>
    %c4 = arith.constant 4 : index
    %143 = memref.load %arg1[%c4] : memref<288xf32, #tpu.memory_space<smem>>
    %144 = vector.broadcast %143 : f32 to vector<14x14xf32>
    %145 = arith.mulf %144, %142 : vector<14x14xf32>
    %146 = arith.addf %113, %145 : vector<14x14xf32>
    %c40 = arith.constant 40 : index
    %147 = memref.load %arg1[%c40] : memref<288xf32, #tpu.memory_space<smem>>
    %148 = vector.broadcast %147 : f32 to vector<14x14xf32>
    %149 = arith.mulf %148, %142 : vector<14x14xf32>
    %150 = arith.addf %117, %149 : vector<14x14xf32>
    %c76 = arith.constant 76 : index
    %151 = memref.load %arg1[%c76] : memref<288xf32, #tpu.memory_space<smem>>
    %152 = vector.broadcast %151 : f32 to vector<14x14xf32>
    %153 = arith.mulf %152, %142 : vector<14x14xf32>
    %154 = arith.addf %121, %153 : vector<14x14xf32>
    %c112 = arith.constant 112 : index
    %155 = memref.load %arg1[%c112] : memref<288xf32, #tpu.memory_space<smem>>
    %156 = vector.broadcast %155 : f32 to vector<14x14xf32>
    %157 = arith.mulf %156, %142 : vector<14x14xf32>
    %158 = arith.addf %125, %157 : vector<14x14xf32>
    %c148 = arith.constant 148 : index
    %159 = memref.load %arg1[%c148] : memref<288xf32, #tpu.memory_space<smem>>
    %160 = vector.broadcast %159 : f32 to vector<14x14xf32>
    %161 = arith.mulf %160, %142 : vector<14x14xf32>
    %162 = arith.addf %129, %161 : vector<14x14xf32>
    %c184 = arith.constant 184 : index
    %163 = memref.load %arg1[%c184] : memref<288xf32, #tpu.memory_space<smem>>
    %164 = vector.broadcast %163 : f32 to vector<14x14xf32>
    %165 = arith.mulf %164, %142 : vector<14x14xf32>
    %166 = arith.addf %133, %165 : vector<14x14xf32>
    %c220 = arith.constant 220 : index
    %167 = memref.load %arg1[%c220] : memref<288xf32, #tpu.memory_space<smem>>
    %168 = vector.broadcast %167 : f32 to vector<14x14xf32>
    %169 = arith.mulf %168, %142 : vector<14x14xf32>
    %170 = arith.addf %137, %169 : vector<14x14xf32>
    %c256 = arith.constant 256 : index
    %171 = memref.load %arg1[%c256] : memref<288xf32, #tpu.memory_space<smem>>
    %172 = vector.broadcast %171 : f32 to vector<14x14xf32>
    %173 = arith.mulf %172, %142 : vector<14x14xf32>
    %174 = arith.addf %141, %173 : vector<14x14xf32>
    %175 = vector.extract_strided_slice %9 {offsets = [1, 2], sizes = [14, 14], strides = [1, 1]} : vector<16x16xf32> to vector<14x14xf32>
    %c5 = arith.constant 5 : index
    %176 = memref.load %arg1[%c5] : memref<288xf32, #tpu.memory_space<smem>>
    %177 = vector.broadcast %176 : f32 to vector<14x14xf32>
    %178 = arith.mulf %177, %175 : vector<14x14xf32>
    %179 = arith.addf %146, %178 : vector<14x14xf32>
    %c41 = arith.constant 41 : index
    %180 = memref.load %arg1[%c41] : memref<288xf32, #tpu.memory_space<smem>>
    %181 = vector.broadcast %180 : f32 to vector<14x14xf32>
    %182 = arith.mulf %181, %175 : vector<14x14xf32>
    %183 = arith.addf %150, %182 : vector<14x14xf32>
    %c77 = arith.constant 77 : index
    %184 = memref.load %arg1[%c77] : memref<288xf32, #tpu.memory_space<smem>>
    %185 = vector.broadcast %184 : f32 to vector<14x14xf32>
    %186 = arith.mulf %185, %175 : vector<14x14xf32>
    %187 = arith.addf %154, %186 : vector<14x14xf32>
    %c113 = arith.constant 113 : index
    %188 = memref.load %arg1[%c113] : memref<288xf32, #tpu.memory_space<smem>>
    %189 = vector.broadcast %188 : f32 to vector<14x14xf32>
    %190 = arith.mulf %189, %175 : vector<14x14xf32>
    %191 = arith.addf %158, %190 : vector<14x14xf32>
    %c149 = arith.constant 149 : index
    %192 = memref.load %arg1[%c149] : memref<288xf32, #tpu.memory_space<smem>>
    %193 = vector.broadcast %192 : f32 to vector<14x14xf32>
    %194 = arith.mulf %193, %175 : vector<14x14xf32>
    %195 = arith.addf %162, %194 : vector<14x14xf32>
    %c185 = arith.constant 185 : index
    %196 = memref.load %arg1[%c185] : memref<288xf32, #tpu.memory_space<smem>>
    %197 = vector.broadcast %196 : f32 to vector<14x14xf32>
    %198 = arith.mulf %197, %175 : vector<14x14xf32>
    %199 = arith.addf %166, %198 : vector<14x14xf32>
    %c221 = arith.constant 221 : index
    %200 = memref.load %arg1[%c221] : memref<288xf32, #tpu.memory_space<smem>>
    %201 = vector.broadcast %200 : f32 to vector<14x14xf32>
    %202 = arith.mulf %201, %175 : vector<14x14xf32>
    %203 = arith.addf %170, %202 : vector<14x14xf32>
    %c257 = arith.constant 257 : index
    %204 = memref.load %arg1[%c257] : memref<288xf32, #tpu.memory_space<smem>>
    %205 = vector.broadcast %204 : f32 to vector<14x14xf32>
    %206 = arith.mulf %205, %175 : vector<14x14xf32>
    %207 = arith.addf %174, %206 : vector<14x14xf32>
    %208 = vector.extract_strided_slice %9 {offsets = [2, 0], sizes = [14, 14], strides = [1, 1]} : vector<16x16xf32> to vector<14x14xf32>
    %c6 = arith.constant 6 : index
    %209 = memref.load %arg1[%c6] : memref<288xf32, #tpu.memory_space<smem>>
    %210 = vector.broadcast %209 : f32 to vector<14x14xf32>
    %211 = arith.mulf %210, %208 : vector<14x14xf32>
    %212 = arith.addf %179, %211 : vector<14x14xf32>
    %c42 = arith.constant 42 : index
    %213 = memref.load %arg1[%c42] : memref<288xf32, #tpu.memory_space<smem>>
    %214 = vector.broadcast %213 : f32 to vector<14x14xf32>
    %215 = arith.mulf %214, %208 : vector<14x14xf32>
    %216 = arith.addf %183, %215 : vector<14x14xf32>
    %c78 = arith.constant 78 : index
    %217 = memref.load %arg1[%c78] : memref<288xf32, #tpu.memory_space<smem>>
    %218 = vector.broadcast %217 : f32 to vector<14x14xf32>
    %219 = arith.mulf %218, %208 : vector<14x14xf32>
    %220 = arith.addf %187, %219 : vector<14x14xf32>
    %c114 = arith.constant 114 : index
    %221 = memref.load %arg1[%c114] : memref<288xf32, #tpu.memory_space<smem>>
    %222 = vector.broadcast %221 : f32 to vector<14x14xf32>
    %223 = arith.mulf %222, %208 : vector<14x14xf32>
    %224 = arith.addf %191, %223 : vector<14x14xf32>
    %c150 = arith.constant 150 : index
    %225 = memref.load %arg1[%c150] : memref<288xf32, #tpu.memory_space<smem>>
    %226 = vector.broadcast %225 : f32 to vector<14x14xf32>
    %227 = arith.mulf %226, %208 : vector<14x14xf32>
    %228 = arith.addf %195, %227 : vector<14x14xf32>
    %c186 = arith.constant 186 : index
    %229 = memref.load %arg1[%c186] : memref<288xf32, #tpu.memory_space<smem>>
    %230 = vector.broadcast %229 : f32 to vector<14x14xf32>
    %231 = arith.mulf %230, %208 : vector<14x14xf32>
    %232 = arith.addf %199, %231 : vector<14x14xf32>
    %c222 = arith.constant 222 : index
    %233 = memref.load %arg1[%c222] : memref<288xf32, #tpu.memory_space<smem>>
    %234 = vector.broadcast %233 : f32 to vector<14x14xf32>
    %235 = arith.mulf %234, %208 : vector<14x14xf32>
    %236 = arith.addf %203, %235 : vector<14x14xf32>
    %c258 = arith.constant 258 : index
    %237 = memref.load %arg1[%c258] : memref<288xf32, #tpu.memory_space<smem>>
    %238 = vector.broadcast %237 : f32 to vector<14x14xf32>
    %239 = arith.mulf %238, %208 : vector<14x14xf32>
    %240 = arith.addf %207, %239 : vector<14x14xf32>
    %241 = vector.extract_strided_slice %9 {offsets = [2, 1], sizes = [14, 14], strides = [1, 1]} : vector<16x16xf32> to vector<14x14xf32>
    %c7 = arith.constant 7 : index
    %242 = memref.load %arg1[%c7] : memref<288xf32, #tpu.memory_space<smem>>
    %243 = vector.broadcast %242 : f32 to vector<14x14xf32>
    %244 = arith.mulf %243, %241 : vector<14x14xf32>
    %245 = arith.addf %212, %244 : vector<14x14xf32>
    %c43 = arith.constant 43 : index
    %246 = memref.load %arg1[%c43] : memref<288xf32, #tpu.memory_space<smem>>
    %247 = vector.broadcast %246 : f32 to vector<14x14xf32>
    %248 = arith.mulf %247, %241 : vector<14x14xf32>
    %249 = arith.addf %216, %248 : vector<14x14xf32>
    %c79 = arith.constant 79 : index
    %250 = memref.load %arg1[%c79] : memref<288xf32, #tpu.memory_space<smem>>
    %251 = vector.broadcast %250 : f32 to vector<14x14xf32>
    %252 = arith.mulf %251, %241 : vector<14x14xf32>
    %253 = arith.addf %220, %252 : vector<14x14xf32>
    %c115 = arith.constant 115 : index
    %254 = memref.load %arg1[%c115] : memref<288xf32, #tpu.memory_space<smem>>
    %255 = vector.broadcast %254 : f32 to vector<14x14xf32>
    %256 = arith.mulf %255, %241 : vector<14x14xf32>
    %257 = arith.addf %224, %256 : vector<14x14xf32>
    %c151 = arith.constant 151 : index
    %258 = memref.load %arg1[%c151] : memref<288xf32, #tpu.memory_space<smem>>
    %259 = vector.broadcast %258 : f32 to vector<14x14xf32>
    %260 = arith.mulf %259, %241 : vector<14x14xf32>
    %261 = arith.addf %228, %260 : vector<14x14xf32>
    %c187 = arith.constant 187 : index
    %262 = memref.load %arg1[%c187] : memref<288xf32, #tpu.memory_space<smem>>
    %263 = vector.broadcast %262 : f32 to vector<14x14xf32>
    %264 = arith.mulf %263, %241 : vector<14x14xf32>
    %265 = arith.addf %232, %264 : vector<14x14xf32>
    %c223 = arith.constant 223 : index
    %266 = memref.load %arg1[%c223] : memref<288xf32, #tpu.memory_space<smem>>
    %267 = vector.broadcast %266 : f32 to vector<14x14xf32>
    %268 = arith.mulf %267, %241 : vector<14x14xf32>
    %269 = arith.addf %236, %268 : vector<14x14xf32>
    %c259 = arith.constant 259 : index
    %270 = memref.load %arg1[%c259] : memref<288xf32, #tpu.memory_space<smem>>
    %271 = vector.broadcast %270 : f32 to vector<14x14xf32>
    %272 = arith.mulf %271, %241 : vector<14x14xf32>
    %273 = arith.addf %240, %272 : vector<14x14xf32>
    %274 = vector.extract_strided_slice %9 {offsets = [2, 2], sizes = [14, 14], strides = [1, 1]} : vector<16x16xf32> to vector<14x14xf32>
    %c8 = arith.constant 8 : index
    %275 = memref.load %arg1[%c8] : memref<288xf32, #tpu.memory_space<smem>>
    %276 = vector.broadcast %275 : f32 to vector<14x14xf32>
    %277 = arith.mulf %276, %274 : vector<14x14xf32>
    %278 = arith.addf %245, %277 : vector<14x14xf32>
    %c44 = arith.constant 44 : index
    %279 = memref.load %arg1[%c44] : memref<288xf32, #tpu.memory_space<smem>>
    %280 = vector.broadcast %279 : f32 to vector<14x14xf32>
    %281 = arith.mulf %280, %274 : vector<14x14xf32>
    %282 = arith.addf %249, %281 : vector<14x14xf32>
    %c80 = arith.constant 80 : index
    %283 = memref.load %arg1[%c80] : memref<288xf32, #tpu.memory_space<smem>>
    %284 = vector.broadcast %283 : f32 to vector<14x14xf32>
    %285 = arith.mulf %284, %274 : vector<14x14xf32>
    %286 = arith.addf %253, %285 : vector<14x14xf32>
    %c116 = arith.constant 116 : index
    %287 = memref.load %arg1[%c116] : memref<288xf32, #tpu.memory_space<smem>>
    %288 = vector.broadcast %287 : f32 to vector<14x14xf32>
    %289 = arith.mulf %288, %274 : vector<14x14xf32>
    %290 = arith.addf %257, %289 : vector<14x14xf32>
    %c152 = arith.constant 152 : index
    %291 = memref.load %arg1[%c152] : memref<288xf32, #tpu.memory_space<smem>>
    %292 = vector.broadcast %291 : f32 to vector<14x14xf32>
    %293 = arith.mulf %292, %274 : vector<14x14xf32>
    %294 = arith.addf %261, %293 : vector<14x14xf32>
    %c188 = arith.constant 188 : index
    %295 = memref.load %arg1[%c188] : memref<288xf32, #tpu.memory_space<smem>>
    %296 = vector.broadcast %295 : f32 to vector<14x14xf32>
    %297 = arith.mulf %296, %274 : vector<14x14xf32>
    %298 = arith.addf %265, %297 : vector<14x14xf32>
    %c224 = arith.constant 224 : index
    %299 = memref.load %arg1[%c224] : memref<288xf32, #tpu.memory_space<smem>>
    %300 = vector.broadcast %299 : f32 to vector<14x14xf32>
    %301 = arith.mulf %300, %274 : vector<14x14xf32>
    %302 = arith.addf %269, %301 : vector<14x14xf32>
    %c260 = arith.constant 260 : index
    %303 = memref.load %arg1[%c260] : memref<288xf32, #tpu.memory_space<smem>>
    %304 = vector.broadcast %303 : f32 to vector<14x14xf32>
    %305 = arith.mulf %304, %274 : vector<14x14xf32>
    %306 = arith.addf %273, %305 : vector<14x14xf32>
    %c0_11 = arith.constant 0 : index
    %c1_12 = arith.constant 1 : index
    %c0_13 = arith.constant 0 : index
    %c0_14 = arith.constant 0 : index
    %307 = vector.load %arg2[%c0_11, %c1_12, %c0_13, %c0_14] : memref<1x4x16x16xf32, #tpu.memory_space<vmem>>, vector<1x1x16x16xf32>
    %308 = vector.shape_cast %307 : vector<1x1x16x16xf32> to vector<16x16xf32>
    %309 = vector.extract_strided_slice %308 {offsets = [0, 0], sizes = [14, 14], strides = [1, 1]} : vector<16x16xf32> to vector<14x14xf32>
    %c9 = arith.constant 9 : index
    %310 = memref.load %arg1[%c9] : memref<288xf32, #tpu.memory_space<smem>>
    %311 = vector.broadcast %310 : f32 to vector<14x14xf32>
    %312 = arith.mulf %311, %309 : vector<14x14xf32>
    %313 = arith.addf %278, %312 : vector<14x14xf32>
    %c45 = arith.constant 45 : index
    %314 = memref.load %arg1[%c45] : memref<288xf32, #tpu.memory_space<smem>>
    %315 = vector.broadcast %314 : f32 to vector<14x14xf32>
    %316 = arith.mulf %315, %309 : vector<14x14xf32>
    %317 = arith.addf %282, %316 : vector<14x14xf32>
    %c81 = arith.constant 81 : index
    %318 = memref.load %arg1[%c81] : memref<288xf32, #tpu.memory_space<smem>>
    %319 = vector.broadcast %318 : f32 to vector<14x14xf32>
    %320 = arith.mulf %319, %309 : vector<14x14xf32>
    %321 = arith.addf %286, %320 : vector<14x14xf32>
    %c117 = arith.constant 117 : index
    %322 = memref.load %arg1[%c117] : memref<288xf32, #tpu.memory_space<smem>>
    %323 = vector.broadcast %322 : f32 to vector<14x14xf32>
    %324 = arith.mulf %323, %309 : vector<14x14xf32>
    %325 = arith.addf %290, %324 : vector<14x14xf32>
    %c153 = arith.constant 153 : index
    %326 = memref.load %arg1[%c153] : memref<288xf32, #tpu.memory_space<smem>>
    %327 = vector.broadcast %326 : f32 to vector<14x14xf32>
    %328 = arith.mulf %327, %309 : vector<14x14xf32>
    %329 = arith.addf %294, %328 : vector<14x14xf32>
    %c189 = arith.constant 189 : index
    %330 = memref.load %arg1[%c189] : memref<288xf32, #tpu.memory_space<smem>>
    %331 = vector.broadcast %330 : f32 to vector<14x14xf32>
    %332 = arith.mulf %331, %309 : vector<14x14xf32>
    %333 = arith.addf %298, %332 : vector<14x14xf32>
    %c225 = arith.constant 225 : index
    %334 = memref.load %arg1[%c225] : memref<288xf32, #tpu.memory_space<smem>>
    %335 = vector.broadcast %334 : f32 to vector<14x14xf32>
    %336 = arith.mulf %335, %309 : vector<14x14xf32>
    %337 = arith.addf %302, %336 : vector<14x14xf32>
    %c261 = arith.constant 261 : index
    %338 = memref.load %arg1[%c261] : memref<288xf32, #tpu.memory_space<smem>>
    %339 = vector.broadcast %338 : f32 to vector<14x14xf32>
    %340 = arith.mulf %339, %309 : vector<14x14xf32>
    %341 = arith.addf %306, %340 : vector<14x14xf32>
    %342 = vector.extract_strided_slice %308 {offsets = [0, 1], sizes = [14, 14], strides = [1, 1]} : vector<16x16xf32> to vector<14x14xf32>
    %c10 = arith.constant 10 : index
    %343 = memref.load %arg1[%c10] : memref<288xf32, #tpu.memory_space<smem>>
    %344 = vector.broadcast %343 : f32 to vector<14x14xf32>
    %345 = arith.mulf %344, %342 : vector<14x14xf32>
    %346 = arith.addf %313, %345 : vector<14x14xf32>
    %c46 = arith.constant 46 : index
    %347 = memref.load %arg1[%c46] : memref<288xf32, #tpu.memory_space<smem>>
    %348 = vector.broadcast %347 : f32 to vector<14x14xf32>
    %349 = arith.mulf %348, %342 : vector<14x14xf32>
    %350 = arith.addf %317, %349 : vector<14x14xf32>
    %c82 = arith.constant 82 : index
    %351 = memref.load %arg1[%c82] : memref<288xf32, #tpu.memory_space<smem>>
    %352 = vector.broadcast %351 : f32 to vector<14x14xf32>
    %353 = arith.mulf %352, %342 : vector<14x14xf32>
    %354 = arith.addf %321, %353 : vector<14x14xf32>
    %c118 = arith.constant 118 : index
    %355 = memref.load %arg1[%c118] : memref<288xf32, #tpu.memory_space<smem>>
    %356 = vector.broadcast %355 : f32 to vector<14x14xf32>
    %357 = arith.mulf %356, %342 : vector<14x14xf32>
    %358 = arith.addf %325, %357 : vector<14x14xf32>
    %c154 = arith.constant 154 : index
    %359 = memref.load %arg1[%c154] : memref<288xf32, #tpu.memory_space<smem>>
    %360 = vector.broadcast %359 : f32 to vector<14x14xf32>
    %361 = arith.mulf %360, %342 : vector<14x14xf32>
    %362 = arith.addf %329, %361 : vector<14x14xf32>
    %c190 = arith.constant 190 : index
    %363 = memref.load %arg1[%c190] : memref<288xf32, #tpu.memory_space<smem>>
    %364 = vector.broadcast %363 : f32 to vector<14x14xf32>
    %365 = arith.mulf %364, %342 : vector<14x14xf32>
    %366 = arith.addf %333, %365 : vector<14x14xf32>
    %c226 = arith.constant 226 : index
    %367 = memref.load %arg1[%c226] : memref<288xf32, #tpu.memory_space<smem>>
    %368 = vector.broadcast %367 : f32 to vector<14x14xf32>
    %369 = arith.mulf %368, %342 : vector<14x14xf32>
    %370 = arith.addf %337, %369 : vector<14x14xf32>
    %c262 = arith.constant 262 : index
    %371 = memref.load %arg1[%c262] : memref<288xf32, #tpu.memory_space<smem>>
    %372 = vector.broadcast %371 : f32 to vector<14x14xf32>
    %373 = arith.mulf %372, %342 : vector<14x14xf32>
    %374 = arith.addf %341, %373 : vector<14x14xf32>
    %375 = vector.extract_strided_slice %308 {offsets = [0, 2], sizes = [14, 14], strides = [1, 1]} : vector<16x16xf32> to vector<14x14xf32>
    %c11 = arith.constant 11 : index
    %376 = memref.load %arg1[%c11] : memref<288xf32, #tpu.memory_space<smem>>
    %377 = vector.broadcast %376 : f32 to vector<14x14xf32>
    %378 = arith.mulf %377, %375 : vector<14x14xf32>
    %379 = arith.addf %346, %378 : vector<14x14xf32>
    %c47 = arith.constant 47 : index
    %380 = memref.load %arg1[%c47] : memref<288xf32, #tpu.memory_space<smem>>
    %381 = vector.broadcast %380 : f32 to vector<14x14xf32>
    %382 = arith.mulf %381, %375 : vector<14x14xf32>
    %383 = arith.addf %350, %382 : vector<14x14xf32>
    %c83 = arith.constant 83 : index
    %384 = memref.load %arg1[%c83] : memref<288xf32, #tpu.memory_space<smem>>
    %385 = vector.broadcast %384 : f32 to vector<14x14xf32>
    %386 = arith.mulf %385, %375 : vector<14x14xf32>
    %387 = arith.addf %354, %386 : vector<14x14xf32>
    %c119 = arith.constant 119 : index
    %388 = memref.load %arg1[%c119] : memref<288xf32, #tpu.memory_space<smem>>
    %389 = vector.broadcast %388 : f32 to vector<14x14xf32>
    %390 = arith.mulf %389, %375 : vector<14x14xf32>
    %391 = arith.addf %358, %390 : vector<14x14xf32>
    %c155 = arith.constant 155 : index
    %392 = memref.load %arg1[%c155] : memref<288xf32, #tpu.memory_space<smem>>
    %393 = vector.broadcast %392 : f32 to vector<14x14xf32>
    %394 = arith.mulf %393, %375 : vector<14x14xf32>
    %395 = arith.addf %362, %394 : vector<14x14xf32>
    %c191 = arith.constant 191 : index
    %396 = memref.load %arg1[%c191] : memref<288xf32, #tpu.memory_space<smem>>
    %397 = vector.broadcast %396 : f32 to vector<14x14xf32>
    %398 = arith.mulf %397, %375 : vector<14x14xf32>
    %399 = arith.addf %366, %398 : vector<14x14xf32>
    %c227 = arith.constant 227 : index
    %400 = memref.load %arg1[%c227] : memref<288xf32, #tpu.memory_space<smem>>
    %401 = vector.broadcast %400 : f32 to vector<14x14xf32>
    %402 = arith.mulf %401, %375 : vector<14x14xf32>
    %403 = arith.addf %370, %402 : vector<14x14xf32>
    %c263 = arith.constant 263 : index
    %404 = memref.load %arg1[%c263] : memref<288xf32, #tpu.memory_space<smem>>
    %405 = vector.broadcast %404 : f32 to vector<14x14xf32>
    %406 = arith.mulf %405, %375 : vector<14x14xf32>
    %407 = arith.addf %374, %406 : vector<14x14xf32>
    %408 = vector.extract_strided_slice %308 {offsets = [1, 0], sizes = [14, 14], strides = [1, 1]} : vector<16x16xf32> to vector<14x14xf32>
    %c12 = arith.constant 12 : index
    %409 = memref.load %arg1[%c12] : memref<288xf32, #tpu.memory_space<smem>>
    %410 = vector.broadcast %409 : f32 to vector<14x14xf32>
    %411 = arith.mulf %410, %408 : vector<14x14xf32>
    %412 = arith.addf %379, %411 : vector<14x14xf32>
    %c48 = arith.constant 48 : index
    %413 = memref.load %arg1[%c48] : memref<288xf32, #tpu.memory_space<smem>>
    %414 = vector.broadcast %413 : f32 to vector<14x14xf32>
    %415 = arith.mulf %414, %408 : vector<14x14xf32>
    %416 = arith.addf %383, %415 : vector<14x14xf32>
    %c84 = arith.constant 84 : index
    %417 = memref.load %arg1[%c84] : memref<288xf32, #tpu.memory_space<smem>>
    %418 = vector.broadcast %417 : f32 to vector<14x14xf32>
    %419 = arith.mulf %418, %408 : vector<14x14xf32>
    %420 = arith.addf %387, %419 : vector<14x14xf32>
    %c120 = arith.constant 120 : index
    %421 = memref.load %arg1[%c120] : memref<288xf32, #tpu.memory_space<smem>>
    %422 = vector.broadcast %421 : f32 to vector<14x14xf32>
    %423 = arith.mulf %422, %408 : vector<14x14xf32>
    %424 = arith.addf %391, %423 : vector<14x14xf32>
    %c156 = arith.constant 156 : index
    %425 = memref.load %arg1[%c156] : memref<288xf32, #tpu.memory_space<smem>>
    %426 = vector.broadcast %425 : f32 to vector<14x14xf32>
    %427 = arith.mulf %426, %408 : vector<14x14xf32>
    %428 = arith.addf %395, %427 : vector<14x14xf32>
    %c192 = arith.constant 192 : index
    %429 = memref.load %arg1[%c192] : memref<288xf32, #tpu.memory_space<smem>>
    %430 = vector.broadcast %429 : f32 to vector<14x14xf32>
    %431 = arith.mulf %430, %408 : vector<14x14xf32>
    %432 = arith.addf %399, %431 : vector<14x14xf32>
    %c228 = arith.constant 228 : index
    %433 = memref.load %arg1[%c228] : memref<288xf32, #tpu.memory_space<smem>>
    %434 = vector.broadcast %433 : f32 to vector<14x14xf32>
    %435 = arith.mulf %434, %408 : vector<14x14xf32>
    %436 = arith.addf %403, %435 : vector<14x14xf32>
    %c264 = arith.constant 264 : index
    %437 = memref.load %arg1[%c264] : memref<288xf32, #tpu.memory_space<smem>>
    %438 = vector.broadcast %437 : f32 to vector<14x14xf32>
    %439 = arith.mulf %438, %408 : vector<14x14xf32>
    %440 = arith.addf %407, %439 : vector<14x14xf32>
    %441 = vector.extract_strided_slice %308 {offsets = [1, 1], sizes = [14, 14], strides = [1, 1]} : vector<16x16xf32> to vector<14x14xf32>
    %c13 = arith.constant 13 : index
    %442 = memref.load %arg1[%c13] : memref<288xf32, #tpu.memory_space<smem>>
    %443 = vector.broadcast %442 : f32 to vector<14x14xf32>
    %444 = arith.mulf %443, %441 : vector<14x14xf32>
    %445 = arith.addf %412, %444 : vector<14x14xf32>
    %c49 = arith.constant 49 : index
    %446 = memref.load %arg1[%c49] : memref<288xf32, #tpu.memory_space<smem>>
    %447 = vector.broadcast %446 : f32 to vector<14x14xf32>
    %448 = arith.mulf %447, %441 : vector<14x14xf32>
    %449 = arith.addf %416, %448 : vector<14x14xf32>
    %c85 = arith.constant 85 : index
    %450 = memref.load %arg1[%c85] : memref<288xf32, #tpu.memory_space<smem>>
    %451 = vector.broadcast %450 : f32 to vector<14x14xf32>
    %452 = arith.mulf %451, %441 : vector<14x14xf32>
    %453 = arith.addf %420, %452 : vector<14x14xf32>
    %c121 = arith.constant 121 : index
    %454 = memref.load %arg1[%c121] : memref<288xf32, #tpu.memory_space<smem>>
    %455 = vector.broadcast %454 : f32 to vector<14x14xf32>
    %456 = arith.mulf %455, %441 : vector<14x14xf32>
    %457 = arith.addf %424, %456 : vector<14x14xf32>
    %c157 = arith.constant 157 : index
    %458 = memref.load %arg1[%c157] : memref<288xf32, #tpu.memory_space<smem>>
    %459 = vector.broadcast %458 : f32 to vector<14x14xf32>
    %460 = arith.mulf %459, %441 : vector<14x14xf32>
    %461 = arith.addf %428, %460 : vector<14x14xf32>
    %c193 = arith.constant 193 : index
    %462 = memref.load %arg1[%c193] : memref<288xf32, #tpu.memory_space<smem>>
    %463 = vector.broadcast %462 : f32 to vector<14x14xf32>
    %464 = arith.mulf %463, %441 : vector<14x14xf32>
    %465 = arith.addf %432, %464 : vector<14x14xf32>
    %c229 = arith.constant 229 : index
    %466 = memref.load %arg1[%c229] : memref<288xf32, #tpu.memory_space<smem>>
    %467 = vector.broadcast %466 : f32 to vector<14x14xf32>
    %468 = arith.mulf %467, %441 : vector<14x14xf32>
    %469 = arith.addf %436, %468 : vector<14x14xf32>
    %c265 = arith.constant 265 : index
    %470 = memref.load %arg1[%c265] : memref<288xf32, #tpu.memory_space<smem>>
    %471 = vector.broadcast %470 : f32 to vector<14x14xf32>
    %472 = arith.mulf %471, %441 : vector<14x14xf32>
    %473 = arith.addf %440, %472 : vector<14x14xf32>
    %474 = vector.extract_strided_slice %308 {offsets = [1, 2], sizes = [14, 14], strides = [1, 1]} : vector<16x16xf32> to vector<14x14xf32>
    %c14 = arith.constant 14 : index
    %475 = memref.load %arg1[%c14] : memref<288xf32, #tpu.memory_space<smem>>
    %476 = vector.broadcast %475 : f32 to vector<14x14xf32>
    %477 = arith.mulf %476, %474 : vector<14x14xf32>
    %478 = arith.addf %445, %477 : vector<14x14xf32>
    %c50 = arith.constant 50 : index
    %479 = memref.load %arg1[%c50] : memref<288xf32, #tpu.memory_space<smem>>
    %480 = vector.broadcast %479 : f32 to vector<14x14xf32>
    %481 = arith.mulf %480, %474 : vector<14x14xf32>
    %482 = arith.addf %449, %481 : vector<14x14xf32>
    %c86 = arith.constant 86 : index
    %483 = memref.load %arg1[%c86] : memref<288xf32, #tpu.memory_space<smem>>
    %484 = vector.broadcast %483 : f32 to vector<14x14xf32>
    %485 = arith.mulf %484, %474 : vector<14x14xf32>
    %486 = arith.addf %453, %485 : vector<14x14xf32>
    %c122 = arith.constant 122 : index
    %487 = memref.load %arg1[%c122] : memref<288xf32, #tpu.memory_space<smem>>
    %488 = vector.broadcast %487 : f32 to vector<14x14xf32>
    %489 = arith.mulf %488, %474 : vector<14x14xf32>
    %490 = arith.addf %457, %489 : vector<14x14xf32>
    %c158 = arith.constant 158 : index
    %491 = memref.load %arg1[%c158] : memref<288xf32, #tpu.memory_space<smem>>
    %492 = vector.broadcast %491 : f32 to vector<14x14xf32>
    %493 = arith.mulf %492, %474 : vector<14x14xf32>
    %494 = arith.addf %461, %493 : vector<14x14xf32>
    %c194 = arith.constant 194 : index
    %495 = memref.load %arg1[%c194] : memref<288xf32, #tpu.memory_space<smem>>
    %496 = vector.broadcast %495 : f32 to vector<14x14xf32>
    %497 = arith.mulf %496, %474 : vector<14x14xf32>
    %498 = arith.addf %465, %497 : vector<14x14xf32>
    %c230 = arith.constant 230 : index
    %499 = memref.load %arg1[%c230] : memref<288xf32, #tpu.memory_space<smem>>
    %500 = vector.broadcast %499 : f32 to vector<14x14xf32>
    %501 = arith.mulf %500, %474 : vector<14x14xf32>
    %502 = arith.addf %469, %501 : vector<14x14xf32>
    %c266 = arith.constant 266 : index
    %503 = memref.load %arg1[%c266] : memref<288xf32, #tpu.memory_space<smem>>
    %504 = vector.broadcast %503 : f32 to vector<14x14xf32>
    %505 = arith.mulf %504, %474 : vector<14x14xf32>
    %506 = arith.addf %473, %505 : vector<14x14xf32>
    %507 = vector.extract_strided_slice %308 {offsets = [2, 0], sizes = [14, 14], strides = [1, 1]} : vector<16x16xf32> to vector<14x14xf32>
    %c15 = arith.constant 15 : index
    %508 = memref.load %arg1[%c15] : memref<288xf32, #tpu.memory_space<smem>>
    %509 = vector.broadcast %508 : f32 to vector<14x14xf32>
    %510 = arith.mulf %509, %507 : vector<14x14xf32>
    %511 = arith.addf %478, %510 : vector<14x14xf32>
    %c51 = arith.constant 51 : index
    %512 = memref.load %arg1[%c51] : memref<288xf32, #tpu.memory_space<smem>>
    %513 = vector.broadcast %512 : f32 to vector<14x14xf32>
    %514 = arith.mulf %513, %507 : vector<14x14xf32>
    %515 = arith.addf %482, %514 : vector<14x14xf32>
    %c87 = arith.constant 87 : index
    %516 = memref.load %arg1[%c87] : memref<288xf32, #tpu.memory_space<smem>>
    %517 = vector.broadcast %516 : f32 to vector<14x14xf32>
    %518 = arith.mulf %517, %507 : vector<14x14xf32>
    %519 = arith.addf %486, %518 : vector<14x14xf32>
    %c123 = arith.constant 123 : index
    %520 = memref.load %arg1[%c123] : memref<288xf32, #tpu.memory_space<smem>>
    %521 = vector.broadcast %520 : f32 to vector<14x14xf32>
    %522 = arith.mulf %521, %507 : vector<14x14xf32>
    %523 = arith.addf %490, %522 : vector<14x14xf32>
    %c159 = arith.constant 159 : index
    %524 = memref.load %arg1[%c159] : memref<288xf32, #tpu.memory_space<smem>>
    %525 = vector.broadcast %524 : f32 to vector<14x14xf32>
    %526 = arith.mulf %525, %507 : vector<14x14xf32>
    %527 = arith.addf %494, %526 : vector<14x14xf32>
    %c195 = arith.constant 195 : index
    %528 = memref.load %arg1[%c195] : memref<288xf32, #tpu.memory_space<smem>>
    %529 = vector.broadcast %528 : f32 to vector<14x14xf32>
    %530 = arith.mulf %529, %507 : vector<14x14xf32>
    %531 = arith.addf %498, %530 : vector<14x14xf32>
    %c231 = arith.constant 231 : index
    %532 = memref.load %arg1[%c231] : memref<288xf32, #tpu.memory_space<smem>>
    %533 = vector.broadcast %532 : f32 to vector<14x14xf32>
    %534 = arith.mulf %533, %507 : vector<14x14xf32>
    %535 = arith.addf %502, %534 : vector<14x14xf32>
    %c267 = arith.constant 267 : index
    %536 = memref.load %arg1[%c267] : memref<288xf32, #tpu.memory_space<smem>>
    %537 = vector.broadcast %536 : f32 to vector<14x14xf32>
    %538 = arith.mulf %537, %507 : vector<14x14xf32>
    %539 = arith.addf %506, %538 : vector<14x14xf32>
    %540 = vector.extract_strided_slice %308 {offsets = [2, 1], sizes = [14, 14], strides = [1, 1]} : vector<16x16xf32> to vector<14x14xf32>
    %c16 = arith.constant 16 : index
    %541 = memref.load %arg1[%c16] : memref<288xf32, #tpu.memory_space<smem>>
    %542 = vector.broadcast %541 : f32 to vector<14x14xf32>
    %543 = arith.mulf %542, %540 : vector<14x14xf32>
    %544 = arith.addf %511, %543 : vector<14x14xf32>
    %c52 = arith.constant 52 : index
    %545 = memref.load %arg1[%c52] : memref<288xf32, #tpu.memory_space<smem>>
    %546 = vector.broadcast %545 : f32 to vector<14x14xf32>
    %547 = arith.mulf %546, %540 : vector<14x14xf32>
    %548 = arith.addf %515, %547 : vector<14x14xf32>
    %c88 = arith.constant 88 : index
    %549 = memref.load %arg1[%c88] : memref<288xf32, #tpu.memory_space<smem>>
    %550 = vector.broadcast %549 : f32 to vector<14x14xf32>
    %551 = arith.mulf %550, %540 : vector<14x14xf32>
    %552 = arith.addf %519, %551 : vector<14x14xf32>
    %c124 = arith.constant 124 : index
    %553 = memref.load %arg1[%c124] : memref<288xf32, #tpu.memory_space<smem>>
    %554 = vector.broadcast %553 : f32 to vector<14x14xf32>
    %555 = arith.mulf %554, %540 : vector<14x14xf32>
    %556 = arith.addf %523, %555 : vector<14x14xf32>
    %c160 = arith.constant 160 : index
    %557 = memref.load %arg1[%c160] : memref<288xf32, #tpu.memory_space<smem>>
    %558 = vector.broadcast %557 : f32 to vector<14x14xf32>
    %559 = arith.mulf %558, %540 : vector<14x14xf32>
    %560 = arith.addf %527, %559 : vector<14x14xf32>
    %c196 = arith.constant 196 : index
    %561 = memref.load %arg1[%c196] : memref<288xf32, #tpu.memory_space<smem>>
    %562 = vector.broadcast %561 : f32 to vector<14x14xf32>
    %563 = arith.mulf %562, %540 : vector<14x14xf32>
    %564 = arith.addf %531, %563 : vector<14x14xf32>
    %c232 = arith.constant 232 : index
    %565 = memref.load %arg1[%c232] : memref<288xf32, #tpu.memory_space<smem>>
    %566 = vector.broadcast %565 : f32 to vector<14x14xf32>
    %567 = arith.mulf %566, %540 : vector<14x14xf32>
    %568 = arith.addf %535, %567 : vector<14x14xf32>
    %c268 = arith.constant 268 : index
    %569 = memref.load %arg1[%c268] : memref<288xf32, #tpu.memory_space<smem>>
    %570 = vector.broadcast %569 : f32 to vector<14x14xf32>
    %571 = arith.mulf %570, %540 : vector<14x14xf32>
    %572 = arith.addf %539, %571 : vector<14x14xf32>
    %573 = vector.extract_strided_slice %308 {offsets = [2, 2], sizes = [14, 14], strides = [1, 1]} : vector<16x16xf32> to vector<14x14xf32>
    %c17 = arith.constant 17 : index
    %574 = memref.load %arg1[%c17] : memref<288xf32, #tpu.memory_space<smem>>
    %575 = vector.broadcast %574 : f32 to vector<14x14xf32>
    %576 = arith.mulf %575, %573 : vector<14x14xf32>
    %577 = arith.addf %544, %576 : vector<14x14xf32>
    %c53 = arith.constant 53 : index
    %578 = memref.load %arg1[%c53] : memref<288xf32, #tpu.memory_space<smem>>
    %579 = vector.broadcast %578 : f32 to vector<14x14xf32>
    %580 = arith.mulf %579, %573 : vector<14x14xf32>
    %581 = arith.addf %548, %580 : vector<14x14xf32>
    %c89 = arith.constant 89 : index
    %582 = memref.load %arg1[%c89] : memref<288xf32, #tpu.memory_space<smem>>
    %583 = vector.broadcast %582 : f32 to vector<14x14xf32>
    %584 = arith.mulf %583, %573 : vector<14x14xf32>
    %585 = arith.addf %552, %584 : vector<14x14xf32>
    %c125 = arith.constant 125 : index
    %586 = memref.load %arg1[%c125] : memref<288xf32, #tpu.memory_space<smem>>
    %587 = vector.broadcast %586 : f32 to vector<14x14xf32>
    %588 = arith.mulf %587, %573 : vector<14x14xf32>
    %589 = arith.addf %556, %588 : vector<14x14xf32>
    %c161 = arith.constant 161 : index
    %590 = memref.load %arg1[%c161] : memref<288xf32, #tpu.memory_space<smem>>
    %591 = vector.broadcast %590 : f32 to vector<14x14xf32>
    %592 = arith.mulf %591, %573 : vector<14x14xf32>
    %593 = arith.addf %560, %592 : vector<14x14xf32>
    %c197 = arith.constant 197 : index
    %594 = memref.load %arg1[%c197] : memref<288xf32, #tpu.memory_space<smem>>
    %595 = vector.broadcast %594 : f32 to vector<14x14xf32>
    %596 = arith.mulf %595, %573 : vector<14x14xf32>
    %597 = arith.addf %564, %596 : vector<14x14xf32>
    %c233 = arith.constant 233 : index
    %598 = memref.load %arg1[%c233] : memref<288xf32, #tpu.memory_space<smem>>
    %599 = vector.broadcast %598 : f32 to vector<14x14xf32>
    %600 = arith.mulf %599, %573 : vector<14x14xf32>
    %601 = arith.addf %568, %600 : vector<14x14xf32>
    %c269 = arith.constant 269 : index
    %602 = memref.load %arg1[%c269] : memref<288xf32, #tpu.memory_space<smem>>
    %603 = vector.broadcast %602 : f32 to vector<14x14xf32>
    %604 = arith.mulf %603, %573 : vector<14x14xf32>
    %605 = arith.addf %572, %604 : vector<14x14xf32>
    %c0_15 = arith.constant 0 : index
    %c2_16 = arith.constant 2 : index
    %c0_17 = arith.constant 0 : index
    %c0_18 = arith.constant 0 : index
    %606 = vector.load %arg2[%c0_15, %c2_16, %c0_17, %c0_18] : memref<1x4x16x16xf32, #tpu.memory_space<vmem>>, vector<1x1x16x16xf32>
    %607 = vector.shape_cast %606 : vector<1x1x16x16xf32> to vector<16x16xf32>
    %608 = vector.extract_strided_slice %607 {offsets = [0, 0], sizes = [14, 14], strides = [1, 1]} : vector<16x16xf32> to vector<14x14xf32>
    %c18 = arith.constant 18 : index
    %609 = memref.load %arg1[%c18] : memref<288xf32, #tpu.memory_space<smem>>
    %610 = vector.broadcast %609 : f32 to vector<14x14xf32>
    %611 = arith.mulf %610, %608 : vector<14x14xf32>
    %612 = arith.addf %577, %611 : vector<14x14xf32>
    %c54 = arith.constant 54 : index
    %613 = memref.load %arg1[%c54] : memref<288xf32, #tpu.memory_space<smem>>
    %614 = vector.broadcast %613 : f32 to vector<14x14xf32>
    %615 = arith.mulf %614, %608 : vector<14x14xf32>
    %616 = arith.addf %581, %615 : vector<14x14xf32>
    %c90 = arith.constant 90 : index
    %617 = memref.load %arg1[%c90] : memref<288xf32, #tpu.memory_space<smem>>
    %618 = vector.broadcast %617 : f32 to vector<14x14xf32>
    %619 = arith.mulf %618, %608 : vector<14x14xf32>
    %620 = arith.addf %585, %619 : vector<14x14xf32>
    %c126 = arith.constant 126 : index
    %621 = memref.load %arg1[%c126] : memref<288xf32, #tpu.memory_space<smem>>
    %622 = vector.broadcast %621 : f32 to vector<14x14xf32>
    %623 = arith.mulf %622, %608 : vector<14x14xf32>
    %624 = arith.addf %589, %623 : vector<14x14xf32>
    %c162 = arith.constant 162 : index
    %625 = memref.load %arg1[%c162] : memref<288xf32, #tpu.memory_space<smem>>
    %626 = vector.broadcast %625 : f32 to vector<14x14xf32>
    %627 = arith.mulf %626, %608 : vector<14x14xf32>
    %628 = arith.addf %593, %627 : vector<14x14xf32>
    %c198 = arith.constant 198 : index
    %629 = memref.load %arg1[%c198] : memref<288xf32, #tpu.memory_space<smem>>
    %630 = vector.broadcast %629 : f32 to vector<14x14xf32>
    %631 = arith.mulf %630, %608 : vector<14x14xf32>
    %632 = arith.addf %597, %631 : vector<14x14xf32>
    %c234 = arith.constant 234 : index
    %633 = memref.load %arg1[%c234] : memref<288xf32, #tpu.memory_space<smem>>
    %634 = vector.broadcast %633 : f32 to vector<14x14xf32>
    %635 = arith.mulf %634, %608 : vector<14x14xf32>
    %636 = arith.addf %601, %635 : vector<14x14xf32>
    %c270 = arith.constant 270 : index
    %637 = memref.load %arg1[%c270] : memref<288xf32, #tpu.memory_space<smem>>
    %638 = vector.broadcast %637 : f32 to vector<14x14xf32>
    %639 = arith.mulf %638, %608 : vector<14x14xf32>
    %640 = arith.addf %605, %639 : vector<14x14xf32>
    %641 = vector.extract_strided_slice %607 {offsets = [0, 1], sizes = [14, 14], strides = [1, 1]} : vector<16x16xf32> to vector<14x14xf32>
    %c19 = arith.constant 19 : index
    %642 = memref.load %arg1[%c19] : memref<288xf32, #tpu.memory_space<smem>>
    %643 = vector.broadcast %642 : f32 to vector<14x14xf32>
    %644 = arith.mulf %643, %641 : vector<14x14xf32>
    %645 = arith.addf %612, %644 : vector<14x14xf32>
    %c55 = arith.constant 55 : index
    %646 = memref.load %arg1[%c55] : memref<288xf32, #tpu.memory_space<smem>>
    %647 = vector.broadcast %646 : f32 to vector<14x14xf32>
    %648 = arith.mulf %647, %641 : vector<14x14xf32>
    %649 = arith.addf %616, %648 : vector<14x14xf32>
    %c91 = arith.constant 91 : index
    %650 = memref.load %arg1[%c91] : memref<288xf32, #tpu.memory_space<smem>>
    %651 = vector.broadcast %650 : f32 to vector<14x14xf32>
    %652 = arith.mulf %651, %641 : vector<14x14xf32>
    %653 = arith.addf %620, %652 : vector<14x14xf32>
    %c127 = arith.constant 127 : index
    %654 = memref.load %arg1[%c127] : memref<288xf32, #tpu.memory_space<smem>>
    %655 = vector.broadcast %654 : f32 to vector<14x14xf32>
    %656 = arith.mulf %655, %641 : vector<14x14xf32>
    %657 = arith.addf %624, %656 : vector<14x14xf32>
    %c163 = arith.constant 163 : index
    %658 = memref.load %arg1[%c163] : memref<288xf32, #tpu.memory_space<smem>>
    %659 = vector.broadcast %658 : f32 to vector<14x14xf32>
    %660 = arith.mulf %659, %641 : vector<14x14xf32>
    %661 = arith.addf %628, %660 : vector<14x14xf32>
    %c199 = arith.constant 199 : index
    %662 = memref.load %arg1[%c199] : memref<288xf32, #tpu.memory_space<smem>>
    %663 = vector.broadcast %662 : f32 to vector<14x14xf32>
    %664 = arith.mulf %663, %641 : vector<14x14xf32>
    %665 = arith.addf %632, %664 : vector<14x14xf32>
    %c235 = arith.constant 235 : index
    %666 = memref.load %arg1[%c235] : memref<288xf32, #tpu.memory_space<smem>>
    %667 = vector.broadcast %666 : f32 to vector<14x14xf32>
    %668 = arith.mulf %667, %641 : vector<14x14xf32>
    %669 = arith.addf %636, %668 : vector<14x14xf32>
    %c271 = arith.constant 271 : index
    %670 = memref.load %arg1[%c271] : memref<288xf32, #tpu.memory_space<smem>>
    %671 = vector.broadcast %670 : f32 to vector<14x14xf32>
    %672 = arith.mulf %671, %641 : vector<14x14xf32>
    %673 = arith.addf %640, %672 : vector<14x14xf32>
    %674 = vector.extract_strided_slice %607 {offsets = [0, 2], sizes = [14, 14], strides = [1, 1]} : vector<16x16xf32> to vector<14x14xf32>
    %c20 = arith.constant 20 : index
    %675 = memref.load %arg1[%c20] : memref<288xf32, #tpu.memory_space<smem>>
    %676 = vector.broadcast %675 : f32 to vector<14x14xf32>
    %677 = arith.mulf %676, %674 : vector<14x14xf32>
    %678 = arith.addf %645, %677 : vector<14x14xf32>
    %c56 = arith.constant 56 : index
    %679 = memref.load %arg1[%c56] : memref<288xf32, #tpu.memory_space<smem>>
    %680 = vector.broadcast %679 : f32 to vector<14x14xf32>
    %681 = arith.mulf %680, %674 : vector<14x14xf32>
    %682 = arith.addf %649, %681 : vector<14x14xf32>
    %c92 = arith.constant 92 : index
    %683 = memref.load %arg1[%c92] : memref<288xf32, #tpu.memory_space<smem>>
    %684 = vector.broadcast %683 : f32 to vector<14x14xf32>
    %685 = arith.mulf %684, %674 : vector<14x14xf32>
    %686 = arith.addf %653, %685 : vector<14x14xf32>
    %c128 = arith.constant 128 : index
    %687 = memref.load %arg1[%c128] : memref<288xf32, #tpu.memory_space<smem>>
    %688 = vector.broadcast %687 : f32 to vector<14x14xf32>
    %689 = arith.mulf %688, %674 : vector<14x14xf32>
    %690 = arith.addf %657, %689 : vector<14x14xf32>
    %c164 = arith.constant 164 : index
    %691 = memref.load %arg1[%c164] : memref<288xf32, #tpu.memory_space<smem>>
    %692 = vector.broadcast %691 : f32 to vector<14x14xf32>
    %693 = arith.mulf %692, %674 : vector<14x14xf32>
    %694 = arith.addf %661, %693 : vector<14x14xf32>
    %c200 = arith.constant 200 : index
    %695 = memref.load %arg1[%c200] : memref<288xf32, #tpu.memory_space<smem>>
    %696 = vector.broadcast %695 : f32 to vector<14x14xf32>
    %697 = arith.mulf %696, %674 : vector<14x14xf32>
    %698 = arith.addf %665, %697 : vector<14x14xf32>
    %c236 = arith.constant 236 : index
    %699 = memref.load %arg1[%c236] : memref<288xf32, #tpu.memory_space<smem>>
    %700 = vector.broadcast %699 : f32 to vector<14x14xf32>
    %701 = arith.mulf %700, %674 : vector<14x14xf32>
    %702 = arith.addf %669, %701 : vector<14x14xf32>
    %c272 = arith.constant 272 : index
    %703 = memref.load %arg1[%c272] : memref<288xf32, #tpu.memory_space<smem>>
    %704 = vector.broadcast %703 : f32 to vector<14x14xf32>
    %705 = arith.mulf %704, %674 : vector<14x14xf32>
    %706 = arith.addf %673, %705 : vector<14x14xf32>
    %707 = vector.extract_strided_slice %607 {offsets = [1, 0], sizes = [14, 14], strides = [1, 1]} : vector<16x16xf32> to vector<14x14xf32>
    %c21 = arith.constant 21 : index
    %708 = memref.load %arg1[%c21] : memref<288xf32, #tpu.memory_space<smem>>
    %709 = vector.broadcast %708 : f32 to vector<14x14xf32>
    %710 = arith.mulf %709, %707 : vector<14x14xf32>
    %711 = arith.addf %678, %710 : vector<14x14xf32>
    %c57 = arith.constant 57 : index
    %712 = memref.load %arg1[%c57] : memref<288xf32, #tpu.memory_space<smem>>
    %713 = vector.broadcast %712 : f32 to vector<14x14xf32>
    %714 = arith.mulf %713, %707 : vector<14x14xf32>
    %715 = arith.addf %682, %714 : vector<14x14xf32>
    %c93 = arith.constant 93 : index
    %716 = memref.load %arg1[%c93] : memref<288xf32, #tpu.memory_space<smem>>
    %717 = vector.broadcast %716 : f32 to vector<14x14xf32>
    %718 = arith.mulf %717, %707 : vector<14x14xf32>
    %719 = arith.addf %686, %718 : vector<14x14xf32>
    %c129 = arith.constant 129 : index
    %720 = memref.load %arg1[%c129] : memref<288xf32, #tpu.memory_space<smem>>
    %721 = vector.broadcast %720 : f32 to vector<14x14xf32>
    %722 = arith.mulf %721, %707 : vector<14x14xf32>
    %723 = arith.addf %690, %722 : vector<14x14xf32>
    %c165 = arith.constant 165 : index
    %724 = memref.load %arg1[%c165] : memref<288xf32, #tpu.memory_space<smem>>
    %725 = vector.broadcast %724 : f32 to vector<14x14xf32>
    %726 = arith.mulf %725, %707 : vector<14x14xf32>
    %727 = arith.addf %694, %726 : vector<14x14xf32>
    %c201 = arith.constant 201 : index
    %728 = memref.load %arg1[%c201] : memref<288xf32, #tpu.memory_space<smem>>
    %729 = vector.broadcast %728 : f32 to vector<14x14xf32>
    %730 = arith.mulf %729, %707 : vector<14x14xf32>
    %731 = arith.addf %698, %730 : vector<14x14xf32>
    %c237 = arith.constant 237 : index
    %732 = memref.load %arg1[%c237] : memref<288xf32, #tpu.memory_space<smem>>
    %733 = vector.broadcast %732 : f32 to vector<14x14xf32>
    %734 = arith.mulf %733, %707 : vector<14x14xf32>
    %735 = arith.addf %702, %734 : vector<14x14xf32>
    %c273 = arith.constant 273 : index
    %736 = memref.load %arg1[%c273] : memref<288xf32, #tpu.memory_space<smem>>
    %737 = vector.broadcast %736 : f32 to vector<14x14xf32>
    %738 = arith.mulf %737, %707 : vector<14x14xf32>
    %739 = arith.addf %706, %738 : vector<14x14xf32>
    %740 = vector.extract_strided_slice %607 {offsets = [1, 1], sizes = [14, 14], strides = [1, 1]} : vector<16x16xf32> to vector<14x14xf32>
    %c22 = arith.constant 22 : index
    %741 = memref.load %arg1[%c22] : memref<288xf32, #tpu.memory_space<smem>>
    %742 = vector.broadcast %741 : f32 to vector<14x14xf32>
    %743 = arith.mulf %742, %740 : vector<14x14xf32>
    %744 = arith.addf %711, %743 : vector<14x14xf32>
    %c58 = arith.constant 58 : index
    %745 = memref.load %arg1[%c58] : memref<288xf32, #tpu.memory_space<smem>>
    %746 = vector.broadcast %745 : f32 to vector<14x14xf32>
    %747 = arith.mulf %746, %740 : vector<14x14xf32>
    %748 = arith.addf %715, %747 : vector<14x14xf32>
    %c94 = arith.constant 94 : index
    %749 = memref.load %arg1[%c94] : memref<288xf32, #tpu.memory_space<smem>>
    %750 = vector.broadcast %749 : f32 to vector<14x14xf32>
    %751 = arith.mulf %750, %740 : vector<14x14xf32>
    %752 = arith.addf %719, %751 : vector<14x14xf32>
    %c130 = arith.constant 130 : index
    %753 = memref.load %arg1[%c130] : memref<288xf32, #tpu.memory_space<smem>>
    %754 = vector.broadcast %753 : f32 to vector<14x14xf32>
    %755 = arith.mulf %754, %740 : vector<14x14xf32>
    %756 = arith.addf %723, %755 : vector<14x14xf32>
    %c166 = arith.constant 166 : index
    %757 = memref.load %arg1[%c166] : memref<288xf32, #tpu.memory_space<smem>>
    %758 = vector.broadcast %757 : f32 to vector<14x14xf32>
    %759 = arith.mulf %758, %740 : vector<14x14xf32>
    %760 = arith.addf %727, %759 : vector<14x14xf32>
    %c202 = arith.constant 202 : index
    %761 = memref.load %arg1[%c202] : memref<288xf32, #tpu.memory_space<smem>>
    %762 = vector.broadcast %761 : f32 to vector<14x14xf32>
    %763 = arith.mulf %762, %740 : vector<14x14xf32>
    %764 = arith.addf %731, %763 : vector<14x14xf32>
    %c238 = arith.constant 238 : index
    %765 = memref.load %arg1[%c238] : memref<288xf32, #tpu.memory_space<smem>>
    %766 = vector.broadcast %765 : f32 to vector<14x14xf32>
    %767 = arith.mulf %766, %740 : vector<14x14xf32>
    %768 = arith.addf %735, %767 : vector<14x14xf32>
    %c274 = arith.constant 274 : index
    %769 = memref.load %arg1[%c274] : memref<288xf32, #tpu.memory_space<smem>>
    %770 = vector.broadcast %769 : f32 to vector<14x14xf32>
    %771 = arith.mulf %770, %740 : vector<14x14xf32>
    %772 = arith.addf %739, %771 : vector<14x14xf32>
    %773 = vector.extract_strided_slice %607 {offsets = [1, 2], sizes = [14, 14], strides = [1, 1]} : vector<16x16xf32> to vector<14x14xf32>
    %c23 = arith.constant 23 : index
    %774 = memref.load %arg1[%c23] : memref<288xf32, #tpu.memory_space<smem>>
    %775 = vector.broadcast %774 : f32 to vector<14x14xf32>
    %776 = arith.mulf %775, %773 : vector<14x14xf32>
    %777 = arith.addf %744, %776 : vector<14x14xf32>
    %c59 = arith.constant 59 : index
    %778 = memref.load %arg1[%c59] : memref<288xf32, #tpu.memory_space<smem>>
    %779 = vector.broadcast %778 : f32 to vector<14x14xf32>
    %780 = arith.mulf %779, %773 : vector<14x14xf32>
    %781 = arith.addf %748, %780 : vector<14x14xf32>
    %c95 = arith.constant 95 : index
    %782 = memref.load %arg1[%c95] : memref<288xf32, #tpu.memory_space<smem>>
    %783 = vector.broadcast %782 : f32 to vector<14x14xf32>
    %784 = arith.mulf %783, %773 : vector<14x14xf32>
    %785 = arith.addf %752, %784 : vector<14x14xf32>
    %c131 = arith.constant 131 : index
    %786 = memref.load %arg1[%c131] : memref<288xf32, #tpu.memory_space<smem>>
    %787 = vector.broadcast %786 : f32 to vector<14x14xf32>
    %788 = arith.mulf %787, %773 : vector<14x14xf32>
    %789 = arith.addf %756, %788 : vector<14x14xf32>
    %c167 = arith.constant 167 : index
    %790 = memref.load %arg1[%c167] : memref<288xf32, #tpu.memory_space<smem>>
    %791 = vector.broadcast %790 : f32 to vector<14x14xf32>
    %792 = arith.mulf %791, %773 : vector<14x14xf32>
    %793 = arith.addf %760, %792 : vector<14x14xf32>
    %c203 = arith.constant 203 : index
    %794 = memref.load %arg1[%c203] : memref<288xf32, #tpu.memory_space<smem>>
    %795 = vector.broadcast %794 : f32 to vector<14x14xf32>
    %796 = arith.mulf %795, %773 : vector<14x14xf32>
    %797 = arith.addf %764, %796 : vector<14x14xf32>
    %c239 = arith.constant 239 : index
    %798 = memref.load %arg1[%c239] : memref<288xf32, #tpu.memory_space<smem>>
    %799 = vector.broadcast %798 : f32 to vector<14x14xf32>
    %800 = arith.mulf %799, %773 : vector<14x14xf32>
    %801 = arith.addf %768, %800 : vector<14x14xf32>
    %c275 = arith.constant 275 : index
    %802 = memref.load %arg1[%c275] : memref<288xf32, #tpu.memory_space<smem>>
    %803 = vector.broadcast %802 : f32 to vector<14x14xf32>
    %804 = arith.mulf %803, %773 : vector<14x14xf32>
    %805 = arith.addf %772, %804 : vector<14x14xf32>
    %806 = vector.extract_strided_slice %607 {offsets = [2, 0], sizes = [14, 14], strides = [1, 1]} : vector<16x16xf32> to vector<14x14xf32>
    %c24 = arith.constant 24 : index
    %807 = memref.load %arg1[%c24] : memref<288xf32, #tpu.memory_space<smem>>
    %808 = vector.broadcast %807 : f32 to vector<14x14xf32>
    %809 = arith.mulf %808, %806 : vector<14x14xf32>
    %810 = arith.addf %777, %809 : vector<14x14xf32>
    %c60 = arith.constant 60 : index
    %811 = memref.load %arg1[%c60] : memref<288xf32, #tpu.memory_space<smem>>
    %812 = vector.broadcast %811 : f32 to vector<14x14xf32>
    %813 = arith.mulf %812, %806 : vector<14x14xf32>
    %814 = arith.addf %781, %813 : vector<14x14xf32>
    %c96 = arith.constant 96 : index
    %815 = memref.load %arg1[%c96] : memref<288xf32, #tpu.memory_space<smem>>
    %816 = vector.broadcast %815 : f32 to vector<14x14xf32>
    %817 = arith.mulf %816, %806 : vector<14x14xf32>
    %818 = arith.addf %785, %817 : vector<14x14xf32>
    %c132 = arith.constant 132 : index
    %819 = memref.load %arg1[%c132] : memref<288xf32, #tpu.memory_space<smem>>
    %820 = vector.broadcast %819 : f32 to vector<14x14xf32>
    %821 = arith.mulf %820, %806 : vector<14x14xf32>
    %822 = arith.addf %789, %821 : vector<14x14xf32>
    %c168 = arith.constant 168 : index
    %823 = memref.load %arg1[%c168] : memref<288xf32, #tpu.memory_space<smem>>
    %824 = vector.broadcast %823 : f32 to vector<14x14xf32>
    %825 = arith.mulf %824, %806 : vector<14x14xf32>
    %826 = arith.addf %793, %825 : vector<14x14xf32>
    %c204 = arith.constant 204 : index
    %827 = memref.load %arg1[%c204] : memref<288xf32, #tpu.memory_space<smem>>
    %828 = vector.broadcast %827 : f32 to vector<14x14xf32>
    %829 = arith.mulf %828, %806 : vector<14x14xf32>
    %830 = arith.addf %797, %829 : vector<14x14xf32>
    %c240 = arith.constant 240 : index
    %831 = memref.load %arg1[%c240] : memref<288xf32, #tpu.memory_space<smem>>
    %832 = vector.broadcast %831 : f32 to vector<14x14xf32>
    %833 = arith.mulf %832, %806 : vector<14x14xf32>
    %834 = arith.addf %801, %833 : vector<14x14xf32>
    %c276 = arith.constant 276 : index
    %835 = memref.load %arg1[%c276] : memref<288xf32, #tpu.memory_space<smem>>
    %836 = vector.broadcast %835 : f32 to vector<14x14xf32>
    %837 = arith.mulf %836, %806 : vector<14x14xf32>
    %838 = arith.addf %805, %837 : vector<14x14xf32>
    %839 = vector.extract_strided_slice %607 {offsets = [2, 1], sizes = [14, 14], strides = [1, 1]} : vector<16x16xf32> to vector<14x14xf32>
    %c25 = arith.constant 25 : index
    %840 = memref.load %arg1[%c25] : memref<288xf32, #tpu.memory_space<smem>>
    %841 = vector.broadcast %840 : f32 to vector<14x14xf32>
    %842 = arith.mulf %841, %839 : vector<14x14xf32>
    %843 = arith.addf %810, %842 : vector<14x14xf32>
    %c61 = arith.constant 61 : index
    %844 = memref.load %arg1[%c61] : memref<288xf32, #tpu.memory_space<smem>>
    %845 = vector.broadcast %844 : f32 to vector<14x14xf32>
    %846 = arith.mulf %845, %839 : vector<14x14xf32>
    %847 = arith.addf %814, %846 : vector<14x14xf32>
    %c97 = arith.constant 97 : index
    %848 = memref.load %arg1[%c97] : memref<288xf32, #tpu.memory_space<smem>>
    %849 = vector.broadcast %848 : f32 to vector<14x14xf32>
    %850 = arith.mulf %849, %839 : vector<14x14xf32>
    %851 = arith.addf %818, %850 : vector<14x14xf32>
    %c133 = arith.constant 133 : index
    %852 = memref.load %arg1[%c133] : memref<288xf32, #tpu.memory_space<smem>>
    %853 = vector.broadcast %852 : f32 to vector<14x14xf32>
    %854 = arith.mulf %853, %839 : vector<14x14xf32>
    %855 = arith.addf %822, %854 : vector<14x14xf32>
    %c169 = arith.constant 169 : index
    %856 = memref.load %arg1[%c169] : memref<288xf32, #tpu.memory_space<smem>>
    %857 = vector.broadcast %856 : f32 to vector<14x14xf32>
    %858 = arith.mulf %857, %839 : vector<14x14xf32>
    %859 = arith.addf %826, %858 : vector<14x14xf32>
    %c205 = arith.constant 205 : index
    %860 = memref.load %arg1[%c205] : memref<288xf32, #tpu.memory_space<smem>>
    %861 = vector.broadcast %860 : f32 to vector<14x14xf32>
    %862 = arith.mulf %861, %839 : vector<14x14xf32>
    %863 = arith.addf %830, %862 : vector<14x14xf32>
    %c241 = arith.constant 241 : index
    %864 = memref.load %arg1[%c241] : memref<288xf32, #tpu.memory_space<smem>>
    %865 = vector.broadcast %864 : f32 to vector<14x14xf32>
    %866 = arith.mulf %865, %839 : vector<14x14xf32>
    %867 = arith.addf %834, %866 : vector<14x14xf32>
    %c277 = arith.constant 277 : index
    %868 = memref.load %arg1[%c277] : memref<288xf32, #tpu.memory_space<smem>>
    %869 = vector.broadcast %868 : f32 to vector<14x14xf32>
    %870 = arith.mulf %869, %839 : vector<14x14xf32>
    %871 = arith.addf %838, %870 : vector<14x14xf32>
    %872 = vector.extract_strided_slice %607 {offsets = [2, 2], sizes = [14, 14], strides = [1, 1]} : vector<16x16xf32> to vector<14x14xf32>
    %c26 = arith.constant 26 : index
    %873 = memref.load %arg1[%c26] : memref<288xf32, #tpu.memory_space<smem>>
    %874 = vector.broadcast %873 : f32 to vector<14x14xf32>
    %875 = arith.mulf %874, %872 : vector<14x14xf32>
    %876 = arith.addf %843, %875 : vector<14x14xf32>
    %c62 = arith.constant 62 : index
    %877 = memref.load %arg1[%c62] : memref<288xf32, #tpu.memory_space<smem>>
    %878 = vector.broadcast %877 : f32 to vector<14x14xf32>
    %879 = arith.mulf %878, %872 : vector<14x14xf32>
    %880 = arith.addf %847, %879 : vector<14x14xf32>
    %c98 = arith.constant 98 : index
    %881 = memref.load %arg1[%c98] : memref<288xf32, #tpu.memory_space<smem>>
    %882 = vector.broadcast %881 : f32 to vector<14x14xf32>
    %883 = arith.mulf %882, %872 : vector<14x14xf32>
    %884 = arith.addf %851, %883 : vector<14x14xf32>
    %c134 = arith.constant 134 : index
    %885 = memref.load %arg1[%c134] : memref<288xf32, #tpu.memory_space<smem>>
    %886 = vector.broadcast %885 : f32 to vector<14x14xf32>
    %887 = arith.mulf %886, %872 : vector<14x14xf32>
    %888 = arith.addf %855, %887 : vector<14x14xf32>
    %c170 = arith.constant 170 : index
    %889 = memref.load %arg1[%c170] : memref<288xf32, #tpu.memory_space<smem>>
    %890 = vector.broadcast %889 : f32 to vector<14x14xf32>
    %891 = arith.mulf %890, %872 : vector<14x14xf32>
    %892 = arith.addf %859, %891 : vector<14x14xf32>
    %c206 = arith.constant 206 : index
    %893 = memref.load %arg1[%c206] : memref<288xf32, #tpu.memory_space<smem>>
    %894 = vector.broadcast %893 : f32 to vector<14x14xf32>
    %895 = arith.mulf %894, %872 : vector<14x14xf32>
    %896 = arith.addf %863, %895 : vector<14x14xf32>
    %c242 = arith.constant 242 : index
    %897 = memref.load %arg1[%c242] : memref<288xf32, #tpu.memory_space<smem>>
    %898 = vector.broadcast %897 : f32 to vector<14x14xf32>
    %899 = arith.mulf %898, %872 : vector<14x14xf32>
    %900 = arith.addf %867, %899 : vector<14x14xf32>
    %c278 = arith.constant 278 : index
    %901 = memref.load %arg1[%c278] : memref<288xf32, #tpu.memory_space<smem>>
    %902 = vector.broadcast %901 : f32 to vector<14x14xf32>
    %903 = arith.mulf %902, %872 : vector<14x14xf32>
    %904 = arith.addf %871, %903 : vector<14x14xf32>
    %c0_19 = arith.constant 0 : index
    %c3_20 = arith.constant 3 : index
    %c0_21 = arith.constant 0 : index
    %c0_22 = arith.constant 0 : index
    %905 = vector.load %arg2[%c0_19, %c3_20, %c0_21, %c0_22] : memref<1x4x16x16xf32, #tpu.memory_space<vmem>>, vector<1x1x16x16xf32>
    %906 = vector.shape_cast %905 : vector<1x1x16x16xf32> to vector<16x16xf32>
    %907 = vector.extract_strided_slice %906 {offsets = [0, 0], sizes = [14, 14], strides = [1, 1]} : vector<16x16xf32> to vector<14x14xf32>
    %c27 = arith.constant 27 : index
    %908 = memref.load %arg1[%c27] : memref<288xf32, #tpu.memory_space<smem>>
    %909 = vector.broadcast %908 : f32 to vector<14x14xf32>
    %910 = arith.mulf %909, %907 : vector<14x14xf32>
    %911 = arith.addf %876, %910 : vector<14x14xf32>
    %c63 = arith.constant 63 : index
    %912 = memref.load %arg1[%c63] : memref<288xf32, #tpu.memory_space<smem>>
    %913 = vector.broadcast %912 : f32 to vector<14x14xf32>
    %914 = arith.mulf %913, %907 : vector<14x14xf32>
    %915 = arith.addf %880, %914 : vector<14x14xf32>
    %c99 = arith.constant 99 : index
    %916 = memref.load %arg1[%c99] : memref<288xf32, #tpu.memory_space<smem>>
    %917 = vector.broadcast %916 : f32 to vector<14x14xf32>
    %918 = arith.mulf %917, %907 : vector<14x14xf32>
    %919 = arith.addf %884, %918 : vector<14x14xf32>
    %c135 = arith.constant 135 : index
    %920 = memref.load %arg1[%c135] : memref<288xf32, #tpu.memory_space<smem>>
    %921 = vector.broadcast %920 : f32 to vector<14x14xf32>
    %922 = arith.mulf %921, %907 : vector<14x14xf32>
    %923 = arith.addf %888, %922 : vector<14x14xf32>
    %c171 = arith.constant 171 : index
    %924 = memref.load %arg1[%c171] : memref<288xf32, #tpu.memory_space<smem>>
    %925 = vector.broadcast %924 : f32 to vector<14x14xf32>
    %926 = arith.mulf %925, %907 : vector<14x14xf32>
    %927 = arith.addf %892, %926 : vector<14x14xf32>
    %c207 = arith.constant 207 : index
    %928 = memref.load %arg1[%c207] : memref<288xf32, #tpu.memory_space<smem>>
    %929 = vector.broadcast %928 : f32 to vector<14x14xf32>
    %930 = arith.mulf %929, %907 : vector<14x14xf32>
    %931 = arith.addf %896, %930 : vector<14x14xf32>
    %c243 = arith.constant 243 : index
    %932 = memref.load %arg1[%c243] : memref<288xf32, #tpu.memory_space<smem>>
    %933 = vector.broadcast %932 : f32 to vector<14x14xf32>
    %934 = arith.mulf %933, %907 : vector<14x14xf32>
    %935 = arith.addf %900, %934 : vector<14x14xf32>
    %c279 = arith.constant 279 : index
    %936 = memref.load %arg1[%c279] : memref<288xf32, #tpu.memory_space<smem>>
    %937 = vector.broadcast %936 : f32 to vector<14x14xf32>
    %938 = arith.mulf %937, %907 : vector<14x14xf32>
    %939 = arith.addf %904, %938 : vector<14x14xf32>
    %940 = vector.extract_strided_slice %906 {offsets = [0, 1], sizes = [14, 14], strides = [1, 1]} : vector<16x16xf32> to vector<14x14xf32>
    %c28 = arith.constant 28 : index
    %941 = memref.load %arg1[%c28] : memref<288xf32, #tpu.memory_space<smem>>
    %942 = vector.broadcast %941 : f32 to vector<14x14xf32>
    %943 = arith.mulf %942, %940 : vector<14x14xf32>
    %944 = arith.addf %911, %943 : vector<14x14xf32>
    %c64 = arith.constant 64 : index
    %945 = memref.load %arg1[%c64] : memref<288xf32, #tpu.memory_space<smem>>
    %946 = vector.broadcast %945 : f32 to vector<14x14xf32>
    %947 = arith.mulf %946, %940 : vector<14x14xf32>
    %948 = arith.addf %915, %947 : vector<14x14xf32>
    %c100 = arith.constant 100 : index
    %949 = memref.load %arg1[%c100] : memref<288xf32, #tpu.memory_space<smem>>
    %950 = vector.broadcast %949 : f32 to vector<14x14xf32>
    %951 = arith.mulf %950, %940 : vector<14x14xf32>
    %952 = arith.addf %919, %951 : vector<14x14xf32>
    %c136 = arith.constant 136 : index
    %953 = memref.load %arg1[%c136] : memref<288xf32, #tpu.memory_space<smem>>
    %954 = vector.broadcast %953 : f32 to vector<14x14xf32>
    %955 = arith.mulf %954, %940 : vector<14x14xf32>
    %956 = arith.addf %923, %955 : vector<14x14xf32>
    %c172 = arith.constant 172 : index
    %957 = memref.load %arg1[%c172] : memref<288xf32, #tpu.memory_space<smem>>
    %958 = vector.broadcast %957 : f32 to vector<14x14xf32>
    %959 = arith.mulf %958, %940 : vector<14x14xf32>
    %960 = arith.addf %927, %959 : vector<14x14xf32>
    %c208 = arith.constant 208 : index
    %961 = memref.load %arg1[%c208] : memref<288xf32, #tpu.memory_space<smem>>
    %962 = vector.broadcast %961 : f32 to vector<14x14xf32>
    %963 = arith.mulf %962, %940 : vector<14x14xf32>
    %964 = arith.addf %931, %963 : vector<14x14xf32>
    %c244 = arith.constant 244 : index
    %965 = memref.load %arg1[%c244] : memref<288xf32, #tpu.memory_space<smem>>
    %966 = vector.broadcast %965 : f32 to vector<14x14xf32>
    %967 = arith.mulf %966, %940 : vector<14x14xf32>
    %968 = arith.addf %935, %967 : vector<14x14xf32>
    %c280 = arith.constant 280 : index
    %969 = memref.load %arg1[%c280] : memref<288xf32, #tpu.memory_space<smem>>
    %970 = vector.broadcast %969 : f32 to vector<14x14xf32>
    %971 = arith.mulf %970, %940 : vector<14x14xf32>
    %972 = arith.addf %939, %971 : vector<14x14xf32>
    %973 = vector.extract_strided_slice %906 {offsets = [0, 2], sizes = [14, 14], strides = [1, 1]} : vector<16x16xf32> to vector<14x14xf32>
    %c29 = arith.constant 29 : index
    %974 = memref.load %arg1[%c29] : memref<288xf32, #tpu.memory_space<smem>>
    %975 = vector.broadcast %974 : f32 to vector<14x14xf32>
    %976 = arith.mulf %975, %973 : vector<14x14xf32>
    %977 = arith.addf %944, %976 : vector<14x14xf32>
    %c65 = arith.constant 65 : index
    %978 = memref.load %arg1[%c65] : memref<288xf32, #tpu.memory_space<smem>>
    %979 = vector.broadcast %978 : f32 to vector<14x14xf32>
    %980 = arith.mulf %979, %973 : vector<14x14xf32>
    %981 = arith.addf %948, %980 : vector<14x14xf32>
    %c101 = arith.constant 101 : index
    %982 = memref.load %arg1[%c101] : memref<288xf32, #tpu.memory_space<smem>>
    %983 = vector.broadcast %982 : f32 to vector<14x14xf32>
    %984 = arith.mulf %983, %973 : vector<14x14xf32>
    %985 = arith.addf %952, %984 : vector<14x14xf32>
    %c137 = arith.constant 137 : index
    %986 = memref.load %arg1[%c137] : memref<288xf32, #tpu.memory_space<smem>>
    %987 = vector.broadcast %986 : f32 to vector<14x14xf32>
    %988 = arith.mulf %987, %973 : vector<14x14xf32>
    %989 = arith.addf %956, %988 : vector<14x14xf32>
    %c173 = arith.constant 173 : index
    %990 = memref.load %arg1[%c173] : memref<288xf32, #tpu.memory_space<smem>>
    %991 = vector.broadcast %990 : f32 to vector<14x14xf32>
    %992 = arith.mulf %991, %973 : vector<14x14xf32>
    %993 = arith.addf %960, %992 : vector<14x14xf32>
    %c209 = arith.constant 209 : index
    %994 = memref.load %arg1[%c209] : memref<288xf32, #tpu.memory_space<smem>>
    %995 = vector.broadcast %994 : f32 to vector<14x14xf32>
    %996 = arith.mulf %995, %973 : vector<14x14xf32>
    %997 = arith.addf %964, %996 : vector<14x14xf32>
    %c245 = arith.constant 245 : index
    %998 = memref.load %arg1[%c245] : memref<288xf32, #tpu.memory_space<smem>>
    %999 = vector.broadcast %998 : f32 to vector<14x14xf32>
    %1000 = arith.mulf %999, %973 : vector<14x14xf32>
    %1001 = arith.addf %968, %1000 : vector<14x14xf32>
    %c281 = arith.constant 281 : index
    %1002 = memref.load %arg1[%c281] : memref<288xf32, #tpu.memory_space<smem>>
    %1003 = vector.broadcast %1002 : f32 to vector<14x14xf32>
    %1004 = arith.mulf %1003, %973 : vector<14x14xf32>
    %1005 = arith.addf %972, %1004 : vector<14x14xf32>
    %1006 = vector.extract_strided_slice %906 {offsets = [1, 0], sizes = [14, 14], strides = [1, 1]} : vector<16x16xf32> to vector<14x14xf32>
    %c30 = arith.constant 30 : index
    %1007 = memref.load %arg1[%c30] : memref<288xf32, #tpu.memory_space<smem>>
    %1008 = vector.broadcast %1007 : f32 to vector<14x14xf32>
    %1009 = arith.mulf %1008, %1006 : vector<14x14xf32>
    %1010 = arith.addf %977, %1009 : vector<14x14xf32>
    %c66 = arith.constant 66 : index
    %1011 = memref.load %arg1[%c66] : memref<288xf32, #tpu.memory_space<smem>>
    %1012 = vector.broadcast %1011 : f32 to vector<14x14xf32>
    %1013 = arith.mulf %1012, %1006 : vector<14x14xf32>
    %1014 = arith.addf %981, %1013 : vector<14x14xf32>
    %c102 = arith.constant 102 : index
    %1015 = memref.load %arg1[%c102] : memref<288xf32, #tpu.memory_space<smem>>
    %1016 = vector.broadcast %1015 : f32 to vector<14x14xf32>
    %1017 = arith.mulf %1016, %1006 : vector<14x14xf32>
    %1018 = arith.addf %985, %1017 : vector<14x14xf32>
    %c138 = arith.constant 138 : index
    %1019 = memref.load %arg1[%c138] : memref<288xf32, #tpu.memory_space<smem>>
    %1020 = vector.broadcast %1019 : f32 to vector<14x14xf32>
    %1021 = arith.mulf %1020, %1006 : vector<14x14xf32>
    %1022 = arith.addf %989, %1021 : vector<14x14xf32>
    %c174 = arith.constant 174 : index
    %1023 = memref.load %arg1[%c174] : memref<288xf32, #tpu.memory_space<smem>>
    %1024 = vector.broadcast %1023 : f32 to vector<14x14xf32>
    %1025 = arith.mulf %1024, %1006 : vector<14x14xf32>
    %1026 = arith.addf %993, %1025 : vector<14x14xf32>
    %c210 = arith.constant 210 : index
    %1027 = memref.load %arg1[%c210] : memref<288xf32, #tpu.memory_space<smem>>
    %1028 = vector.broadcast %1027 : f32 to vector<14x14xf32>
    %1029 = arith.mulf %1028, %1006 : vector<14x14xf32>
    %1030 = arith.addf %997, %1029 : vector<14x14xf32>
    %c246 = arith.constant 246 : index
    %1031 = memref.load %arg1[%c246] : memref<288xf32, #tpu.memory_space<smem>>
    %1032 = vector.broadcast %1031 : f32 to vector<14x14xf32>
    %1033 = arith.mulf %1032, %1006 : vector<14x14xf32>
    %1034 = arith.addf %1001, %1033 : vector<14x14xf32>
    %c282 = arith.constant 282 : index
    %1035 = memref.load %arg1[%c282] : memref<288xf32, #tpu.memory_space<smem>>
    %1036 = vector.broadcast %1035 : f32 to vector<14x14xf32>
    %1037 = arith.mulf %1036, %1006 : vector<14x14xf32>
    %1038 = arith.addf %1005, %1037 : vector<14x14xf32>
    %1039 = vector.extract_strided_slice %906 {offsets = [1, 1], sizes = [14, 14], strides = [1, 1]} : vector<16x16xf32> to vector<14x14xf32>
    %c31 = arith.constant 31 : index
    %1040 = memref.load %arg1[%c31] : memref<288xf32, #tpu.memory_space<smem>>
    %1041 = vector.broadcast %1040 : f32 to vector<14x14xf32>
    %1042 = arith.mulf %1041, %1039 : vector<14x14xf32>
    %1043 = arith.addf %1010, %1042 : vector<14x14xf32>
    %c67 = arith.constant 67 : index
    %1044 = memref.load %arg1[%c67] : memref<288xf32, #tpu.memory_space<smem>>
    %1045 = vector.broadcast %1044 : f32 to vector<14x14xf32>
    %1046 = arith.mulf %1045, %1039 : vector<14x14xf32>
    %1047 = arith.addf %1014, %1046 : vector<14x14xf32>
    %c103 = arith.constant 103 : index
    %1048 = memref.load %arg1[%c103] : memref<288xf32, #tpu.memory_space<smem>>
    %1049 = vector.broadcast %1048 : f32 to vector<14x14xf32>
    %1050 = arith.mulf %1049, %1039 : vector<14x14xf32>
    %1051 = arith.addf %1018, %1050 : vector<14x14xf32>
    %c139 = arith.constant 139 : index
    %1052 = memref.load %arg1[%c139] : memref<288xf32, #tpu.memory_space<smem>>
    %1053 = vector.broadcast %1052 : f32 to vector<14x14xf32>
    %1054 = arith.mulf %1053, %1039 : vector<14x14xf32>
    %1055 = arith.addf %1022, %1054 : vector<14x14xf32>
    %c175 = arith.constant 175 : index
    %1056 = memref.load %arg1[%c175] : memref<288xf32, #tpu.memory_space<smem>>
    %1057 = vector.broadcast %1056 : f32 to vector<14x14xf32>
    %1058 = arith.mulf %1057, %1039 : vector<14x14xf32>
    %1059 = arith.addf %1026, %1058 : vector<14x14xf32>
    %c211 = arith.constant 211 : index
    %1060 = memref.load %arg1[%c211] : memref<288xf32, #tpu.memory_space<smem>>
    %1061 = vector.broadcast %1060 : f32 to vector<14x14xf32>
    %1062 = arith.mulf %1061, %1039 : vector<14x14xf32>
    %1063 = arith.addf %1030, %1062 : vector<14x14xf32>
    %c247 = arith.constant 247 : index
    %1064 = memref.load %arg1[%c247] : memref<288xf32, #tpu.memory_space<smem>>
    %1065 = vector.broadcast %1064 : f32 to vector<14x14xf32>
    %1066 = arith.mulf %1065, %1039 : vector<14x14xf32>
    %1067 = arith.addf %1034, %1066 : vector<14x14xf32>
    %c283 = arith.constant 283 : index
    %1068 = memref.load %arg1[%c283] : memref<288xf32, #tpu.memory_space<smem>>
    %1069 = vector.broadcast %1068 : f32 to vector<14x14xf32>
    %1070 = arith.mulf %1069, %1039 : vector<14x14xf32>
    %1071 = arith.addf %1038, %1070 : vector<14x14xf32>
    %1072 = vector.extract_strided_slice %906 {offsets = [1, 2], sizes = [14, 14], strides = [1, 1]} : vector<16x16xf32> to vector<14x14xf32>
    %c32 = arith.constant 32 : index
    %1073 = memref.load %arg1[%c32] : memref<288xf32, #tpu.memory_space<smem>>
    %1074 = vector.broadcast %1073 : f32 to vector<14x14xf32>
    %1075 = arith.mulf %1074, %1072 : vector<14x14xf32>
    %1076 = arith.addf %1043, %1075 : vector<14x14xf32>
    %c68 = arith.constant 68 : index
    %1077 = memref.load %arg1[%c68] : memref<288xf32, #tpu.memory_space<smem>>
    %1078 = vector.broadcast %1077 : f32 to vector<14x14xf32>
    %1079 = arith.mulf %1078, %1072 : vector<14x14xf32>
    %1080 = arith.addf %1047, %1079 : vector<14x14xf32>
    %c104 = arith.constant 104 : index
    %1081 = memref.load %arg1[%c104] : memref<288xf32, #tpu.memory_space<smem>>
    %1082 = vector.broadcast %1081 : f32 to vector<14x14xf32>
    %1083 = arith.mulf %1082, %1072 : vector<14x14xf32>
    %1084 = arith.addf %1051, %1083 : vector<14x14xf32>
    %c140 = arith.constant 140 : index
    %1085 = memref.load %arg1[%c140] : memref<288xf32, #tpu.memory_space<smem>>
    %1086 = vector.broadcast %1085 : f32 to vector<14x14xf32>
    %1087 = arith.mulf %1086, %1072 : vector<14x14xf32>
    %1088 = arith.addf %1055, %1087 : vector<14x14xf32>
    %c176 = arith.constant 176 : index
    %1089 = memref.load %arg1[%c176] : memref<288xf32, #tpu.memory_space<smem>>
    %1090 = vector.broadcast %1089 : f32 to vector<14x14xf32>
    %1091 = arith.mulf %1090, %1072 : vector<14x14xf32>
    %1092 = arith.addf %1059, %1091 : vector<14x14xf32>
    %c212 = arith.constant 212 : index
    %1093 = memref.load %arg1[%c212] : memref<288xf32, #tpu.memory_space<smem>>
    %1094 = vector.broadcast %1093 : f32 to vector<14x14xf32>
    %1095 = arith.mulf %1094, %1072 : vector<14x14xf32>
    %1096 = arith.addf %1063, %1095 : vector<14x14xf32>
    %c248 = arith.constant 248 : index
    %1097 = memref.load %arg1[%c248] : memref<288xf32, #tpu.memory_space<smem>>
    %1098 = vector.broadcast %1097 : f32 to vector<14x14xf32>
    %1099 = arith.mulf %1098, %1072 : vector<14x14xf32>
    %1100 = arith.addf %1067, %1099 : vector<14x14xf32>
    %c284 = arith.constant 284 : index
    %1101 = memref.load %arg1[%c284] : memref<288xf32, #tpu.memory_space<smem>>
    %1102 = vector.broadcast %1101 : f32 to vector<14x14xf32>
    %1103 = arith.mulf %1102, %1072 : vector<14x14xf32>
    %1104 = arith.addf %1071, %1103 : vector<14x14xf32>
    %1105 = vector.extract_strided_slice %906 {offsets = [2, 0], sizes = [14, 14], strides = [1, 1]} : vector<16x16xf32> to vector<14x14xf32>
    %c33 = arith.constant 33 : index
    %1106 = memref.load %arg1[%c33] : memref<288xf32, #tpu.memory_space<smem>>
    %1107 = vector.broadcast %1106 : f32 to vector<14x14xf32>
    %1108 = arith.mulf %1107, %1105 : vector<14x14xf32>
    %1109 = arith.addf %1076, %1108 : vector<14x14xf32>
    %c69 = arith.constant 69 : index
    %1110 = memref.load %arg1[%c69] : memref<288xf32, #tpu.memory_space<smem>>
    %1111 = vector.broadcast %1110 : f32 to vector<14x14xf32>
    %1112 = arith.mulf %1111, %1105 : vector<14x14xf32>
    %1113 = arith.addf %1080, %1112 : vector<14x14xf32>
    %c105 = arith.constant 105 : index
    %1114 = memref.load %arg1[%c105] : memref<288xf32, #tpu.memory_space<smem>>
    %1115 = vector.broadcast %1114 : f32 to vector<14x14xf32>
    %1116 = arith.mulf %1115, %1105 : vector<14x14xf32>
    %1117 = arith.addf %1084, %1116 : vector<14x14xf32>
    %c141 = arith.constant 141 : index
    %1118 = memref.load %arg1[%c141] : memref<288xf32, #tpu.memory_space<smem>>
    %1119 = vector.broadcast %1118 : f32 to vector<14x14xf32>
    %1120 = arith.mulf %1119, %1105 : vector<14x14xf32>
    %1121 = arith.addf %1088, %1120 : vector<14x14xf32>
    %c177 = arith.constant 177 : index
    %1122 = memref.load %arg1[%c177] : memref<288xf32, #tpu.memory_space<smem>>
    %1123 = vector.broadcast %1122 : f32 to vector<14x14xf32>
    %1124 = arith.mulf %1123, %1105 : vector<14x14xf32>
    %1125 = arith.addf %1092, %1124 : vector<14x14xf32>
    %c213 = arith.constant 213 : index
    %1126 = memref.load %arg1[%c213] : memref<288xf32, #tpu.memory_space<smem>>
    %1127 = vector.broadcast %1126 : f32 to vector<14x14xf32>
    %1128 = arith.mulf %1127, %1105 : vector<14x14xf32>
    %1129 = arith.addf %1096, %1128 : vector<14x14xf32>
    %c249 = arith.constant 249 : index
    %1130 = memref.load %arg1[%c249] : memref<288xf32, #tpu.memory_space<smem>>
    %1131 = vector.broadcast %1130 : f32 to vector<14x14xf32>
    %1132 = arith.mulf %1131, %1105 : vector<14x14xf32>
    %1133 = arith.addf %1100, %1132 : vector<14x14xf32>
    %c285 = arith.constant 285 : index
    %1134 = memref.load %arg1[%c285] : memref<288xf32, #tpu.memory_space<smem>>
    %1135 = vector.broadcast %1134 : f32 to vector<14x14xf32>
    %1136 = arith.mulf %1135, %1105 : vector<14x14xf32>
    %1137 = arith.addf %1104, %1136 : vector<14x14xf32>
    %1138 = vector.extract_strided_slice %906 {offsets = [2, 1], sizes = [14, 14], strides = [1, 1]} : vector<16x16xf32> to vector<14x14xf32>
    %c34 = arith.constant 34 : index
    %1139 = memref.load %arg1[%c34] : memref<288xf32, #tpu.memory_space<smem>>
    %1140 = vector.broadcast %1139 : f32 to vector<14x14xf32>
    %1141 = arith.mulf %1140, %1138 : vector<14x14xf32>
    %1142 = arith.addf %1109, %1141 : vector<14x14xf32>
    %c70 = arith.constant 70 : index
    %1143 = memref.load %arg1[%c70] : memref<288xf32, #tpu.memory_space<smem>>
    %1144 = vector.broadcast %1143 : f32 to vector<14x14xf32>
    %1145 = arith.mulf %1144, %1138 : vector<14x14xf32>
    %1146 = arith.addf %1113, %1145 : vector<14x14xf32>
    %c106 = arith.constant 106 : index
    %1147 = memref.load %arg1[%c106] : memref<288xf32, #tpu.memory_space<smem>>
    %1148 = vector.broadcast %1147 : f32 to vector<14x14xf32>
    %1149 = arith.mulf %1148, %1138 : vector<14x14xf32>
    %1150 = arith.addf %1117, %1149 : vector<14x14xf32>
    %c142 = arith.constant 142 : index
    %1151 = memref.load %arg1[%c142] : memref<288xf32, #tpu.memory_space<smem>>
    %1152 = vector.broadcast %1151 : f32 to vector<14x14xf32>
    %1153 = arith.mulf %1152, %1138 : vector<14x14xf32>
    %1154 = arith.addf %1121, %1153 : vector<14x14xf32>
    %c178 = arith.constant 178 : index
    %1155 = memref.load %arg1[%c178] : memref<288xf32, #tpu.memory_space<smem>>
    %1156 = vector.broadcast %1155 : f32 to vector<14x14xf32>
    %1157 = arith.mulf %1156, %1138 : vector<14x14xf32>
    %1158 = arith.addf %1125, %1157 : vector<14x14xf32>
    %c214 = arith.constant 214 : index
    %1159 = memref.load %arg1[%c214] : memref<288xf32, #tpu.memory_space<smem>>
    %1160 = vector.broadcast %1159 : f32 to vector<14x14xf32>
    %1161 = arith.mulf %1160, %1138 : vector<14x14xf32>
    %1162 = arith.addf %1129, %1161 : vector<14x14xf32>
    %c250 = arith.constant 250 : index
    %1163 = memref.load %arg1[%c250] : memref<288xf32, #tpu.memory_space<smem>>
    %1164 = vector.broadcast %1163 : f32 to vector<14x14xf32>
    %1165 = arith.mulf %1164, %1138 : vector<14x14xf32>
    %1166 = arith.addf %1133, %1165 : vector<14x14xf32>
    %c286 = arith.constant 286 : index
    %1167 = memref.load %arg1[%c286] : memref<288xf32, #tpu.memory_space<smem>>
    %1168 = vector.broadcast %1167 : f32 to vector<14x14xf32>
    %1169 = arith.mulf %1168, %1138 : vector<14x14xf32>
    %1170 = arith.addf %1137, %1169 : vector<14x14xf32>
    %1171 = vector.extract_strided_slice %906 {offsets = [2, 2], sizes = [14, 14], strides = [1, 1]} : vector<16x16xf32> to vector<14x14xf32>
    %c35 = arith.constant 35 : index
    %1172 = memref.load %arg1[%c35] : memref<288xf32, #tpu.memory_space<smem>>
    %1173 = vector.broadcast %1172 : f32 to vector<14x14xf32>
    %1174 = arith.mulf %1173, %1171 : vector<14x14xf32>
    %1175 = arith.addf %1142, %1174 : vector<14x14xf32>
    %c71 = arith.constant 71 : index
    %1176 = memref.load %arg1[%c71] : memref<288xf32, #tpu.memory_space<smem>>
    %1177 = vector.broadcast %1176 : f32 to vector<14x14xf32>
    %1178 = arith.mulf %1177, %1171 : vector<14x14xf32>
    %1179 = arith.addf %1146, %1178 : vector<14x14xf32>
    %c107 = arith.constant 107 : index
    %1180 = memref.load %arg1[%c107] : memref<288xf32, #tpu.memory_space<smem>>
    %1181 = vector.broadcast %1180 : f32 to vector<14x14xf32>
    %1182 = arith.mulf %1181, %1171 : vector<14x14xf32>
    %1183 = arith.addf %1150, %1182 : vector<14x14xf32>
    %c143 = arith.constant 143 : index
    %1184 = memref.load %arg1[%c143] : memref<288xf32, #tpu.memory_space<smem>>
    %1185 = vector.broadcast %1184 : f32 to vector<14x14xf32>
    %1186 = arith.mulf %1185, %1171 : vector<14x14xf32>
    %1187 = arith.addf %1154, %1186 : vector<14x14xf32>
    %c179 = arith.constant 179 : index
    %1188 = memref.load %arg1[%c179] : memref<288xf32, #tpu.memory_space<smem>>
    %1189 = vector.broadcast %1188 : f32 to vector<14x14xf32>
    %1190 = arith.mulf %1189, %1171 : vector<14x14xf32>
    %1191 = arith.addf %1158, %1190 : vector<14x14xf32>
    %c215 = arith.constant 215 : index
    %1192 = memref.load %arg1[%c215] : memref<288xf32, #tpu.memory_space<smem>>
    %1193 = vector.broadcast %1192 : f32 to vector<14x14xf32>
    %1194 = arith.mulf %1193, %1171 : vector<14x14xf32>
    %1195 = arith.addf %1162, %1194 : vector<14x14xf32>
    %c251 = arith.constant 251 : index
    %1196 = memref.load %arg1[%c251] : memref<288xf32, #tpu.memory_space<smem>>
    %1197 = vector.broadcast %1196 : f32 to vector<14x14xf32>
    %1198 = arith.mulf %1197, %1171 : vector<14x14xf32>
    %1199 = arith.addf %1166, %1198 : vector<14x14xf32>
    %c287 = arith.constant 287 : index
    %1200 = memref.load %arg1[%c287] : memref<288xf32, #tpu.memory_space<smem>>
    %1201 = vector.broadcast %1200 : f32 to vector<14x14xf32>
    %1202 = arith.mulf %1201, %1171 : vector<14x14xf32>
    %1203 = arith.addf %1170, %1202 : vector<14x14xf32>
    %c0_23 = arith.constant 0 : index
    %c0_24 = arith.constant 0 : index
    %c0_25 = arith.constant 0 : index
    %c0_26 = arith.constant 0 : index
    %1204 = vector.load %arg3[%c0_23, %c0_24, %c0_25, %c0_26] : memref<1x8x14x14xf32, #tpu.memory_space<vmem>>, vector<1x1x14x14xf32>
    %1205 = vector.shape_cast %1204 : vector<1x1x14x14xf32> to vector<14x14xf32>
    %1206 = vector.shape_cast %1175 : vector<14x14xf32> to vector<1x1x14x14xf32>
    tpu.vector_store %arg3[%c0_23, %c0_24, %c0_25, %c0_26], %1206 {strides = array<i32>} : memref<1x8x14x14xf32, #tpu.memory_space<vmem>>, vector<1x1x14x14xf32>,
    %c0_27 = arith.constant 0 : index
    %c1_28 = arith.constant 1 : index
    %c0_29 = arith.constant 0 : index
    %c0_30 = arith.constant 0 : index
    %1207 = vector.load %arg3[%c0_27, %c1_28, %c0_29, %c0_30] : memref<1x8x14x14xf32, #tpu.memory_space<vmem>>, vector<1x1x14x14xf32>
    %1208 = vector.shape_cast %1207 : vector<1x1x14x14xf32> to vector<14x14xf32>
    %1209 = vector.shape_cast %1179 : vector<14x14xf32> to vector<1x1x14x14xf32>
    tpu.vector_store %arg3[%c0_27, %c1_28, %c0_29, %c0_30], %1209 {strides = array<i32>} : memref<1x8x14x14xf32, #tpu.memory_space<vmem>>, vector<1x1x14x14xf32>,
    %c0_31 = arith.constant 0 : index
    %c2_32 = arith.constant 2 : index
    %c0_33 = arith.constant 0 : index
    %c0_34 = arith.constant 0 : index
    %1210 = vector.load %arg3[%c0_31, %c2_32, %c0_33, %c0_34] : memref<1x8x14x14xf32, #tpu.memory_space<vmem>>, vector<1x1x14x14xf32>
    %1211 = vector.shape_cast %1210 : vector<1x1x14x14xf32> to vector<14x14xf32>
    %1212 = vector.shape_cast %1183 : vector<14x14xf32> to vector<1x1x14x14xf32>
    tpu.vector_store %arg3[%c0_31, %c2_32, %c0_33, %c0_34], %1212 {strides = array<i32>} : memref<1x8x14x14xf32, #tpu.memory_space<vmem>>, vector<1x1x14x14xf32>,
    %c0_35 = arith.constant 0 : index
    %c3_36 = arith.constant 3 : index
    %c0_37 = arith.constant 0 : index
    %c0_38 = arith.constant 0 : index
    %1213 = vector.load %arg3[%c0_35, %c3_36, %c0_37, %c0_38] : memref<1x8x14x14xf32, #tpu.memory_space<vmem>>, vector<1x1x14x14xf32>
    %1214 = vector.shape_cast %1213 : vector<1x1x14x14xf32> to vector<14x14xf32>
    %1215 = vector.shape_cast %1187 : vector<14x14xf32> to vector<1x1x14x14xf32>
    tpu.vector_store %arg3[%c0_35, %c3_36, %c0_37, %c0_38], %1215 {strides = array<i32>} : memref<1x8x14x14xf32, #tpu.memory_space<vmem>>, vector<1x1x14x14xf32>,
    %c0_39 = arith.constant 0 : index
    %c4_40 = arith.constant 4 : index
    %c0_41 = arith.constant 0 : index
    %c0_42 = arith.constant 0 : index
    %1216 = vector.load %arg3[%c0_39, %c4_40, %c0_41, %c0_42] : memref<1x8x14x14xf32, #tpu.memory_space<vmem>>, vector<1x1x14x14xf32>
    %1217 = vector.shape_cast %1216 : vector<1x1x14x14xf32> to vector<14x14xf32>
    %1218 = vector.shape_cast %1191 : vector<14x14xf32> to vector<1x1x14x14xf32>
    tpu.vector_store %arg3[%c0_39, %c4_40, %c0_41, %c0_42], %1218 {strides = array<i32>} : memref<1x8x14x14xf32, #tpu.memory_space<vmem>>, vector<1x1x14x14xf32>,
    %c0_43 = arith.constant 0 : index
    %c5_44 = arith.constant 5 : index
    %c0_45 = arith.constant 0 : index
    %c0_46 = arith.constant 0 : index
    %1219 = vector.load %arg3[%c0_43, %c5_44, %c0_45, %c0_46] : memref<1x8x14x14xf32, #tpu.memory_space<vmem>>, vector<1x1x14x14xf32>
    %1220 = vector.shape_cast %1219 : vector<1x1x14x14xf32> to vector<14x14xf32>
    %1221 = vector.shape_cast %1195 : vector<14x14xf32> to vector<1x1x14x14xf32>
    tpu.vector_store %arg3[%c0_43, %c5_44, %c0_45, %c0_46], %1221 {strides = array<i32>} : memref<1x8x14x14xf32, #tpu.memory_space<vmem>>, vector<1x1x14x14xf32>,
    %c0_47 = arith.constant 0 : index
    %c6_48 = arith.constant 6 : index
    %c0_49 = arith.constant 0 : index
    %c0_50 = arith.constant 0 : index
    %1222 = vector.load %arg3[%c0_47, %c6_48, %c0_49, %c0_50] : memref<1x8x14x14xf32, #tpu.memory_space<vmem>>, vector<1x1x14x14xf32>
    %1223 = vector.shape_cast %1222 : vector<1x1x14x14xf32> to vector<14x14xf32>
    %1224 = vector.shape_cast %1199 : vector<14x14xf32> to vector<1x1x14x14xf32>
    tpu.vector_store %arg3[%c0_47, %c6_48, %c0_49, %c0_50], %1224 {strides = array<i32>} : memref<1x8x14x14xf32, #tpu.memory_space<vmem>>, vector<1x1x14x14xf32>,
    %c0_51 = arith.constant 0 : index
    %c7_52 = arith.constant 7 : index
    %c0_53 = arith.constant 0 : index
    %c0_54 = arith.constant 0 : index
    %1225 = vector.load %arg3[%c0_51, %c7_52, %c0_53, %c0_54] : memref<1x8x14x14xf32, #tpu.memory_space<vmem>>, vector<1x1x14x14xf32>
    %1226 = vector.shape_cast %1225 : vector<1x1x14x14xf32> to vector<14x14xf32>
    %1227 = vector.shape_cast %1203 : vector<14x14xf32> to vector<1x1x14x14xf32>
    tpu.vector_store %arg3[%c0_51, %c7_52, %c0_53, %c0_54], %1227 {strides = array<i32>} : memref<1x8x14x14xf32, #tpu.memory_space<vmem>>, vector<1x1x14x14xf32>,
    return
  }
  func.func @transform_0(%arg0: i32) -> i32 {
    %c0_i32 = arith.constant 0 : i32
    %c0_i32_0 = arith.constant 0 : i32
    return %c0_i32 : i32
  }
  func.func @transform_1(%arg0: i32) -> (i32, i32, i32, i32) {
    %c0_i32 = arith.constant 0 : i32
    %c0_i32_0 = arith.constant 0 : i32
    %c0_i32_1 = arith.constant 0 : i32
    %c0_i32_2 = arith.constant 0 : i32
    return %arg0, %c0_i32, %c0_i32_0, %c0_i32_1 : i32, i32, i32, i32
  }
  func.func @transform_2(%arg0: i32) -> (i32, i32, i32, i32) {
    %c0_i32 = arith.constant 0 : i32
    %c0_i32_0 = arith.constant 0 : i32
    %c0_i32_1 = arith.constant 0 : i32
    %c0_i32_2 = arith.constant 0 : i32
    return %arg0, %c0_i32, %c0_i32_0, %c0_i32_1 : i32, i32, i32, i32
  }
}

</mosaic_0001>

<llo_original>
// kernel: tpu_custom_call.1
$region0: #{tpu_custom_call.1}
  #allocation0 [shape = 'u32[]', space=smem, size = 0x4, offset = 0x4, fixed_abs, tag = 'smem constant byte address 0x4 - core index']
  #allocation1 [shape = 'u32[144,128]{1,0:T(1,128)}', space=vmem, size = 0x12000, scoped, tag = 'internal scratch']
  %s0 = inlined_call_operand.hbm [shape: f32[288], index: 0, kind: input, shape index: {}]
  %s1 = inlined_call_operand.hbm [shape: f32[2,4,16,16], index: 1, kind: input, shape index: {}]
  %s2 = inlined_call_operand.vmem [shape: f32[2,8,14,14], index: 2, kind: output, shape index: {}]
  %s3 = sld [smem:[#allocation0]]
  $region49: #{tpu_custom_call.1} parent=0
    _
  %s5 = ssub.s32 1, %s3
  %s6 = scalar_select 0, %s5, %s3
  $region1: #{tpu_custom_call.1} parent=0
    #allocation2 [shape = 'u8[1536]{0}', space=smem, size = 0x600, scoped, tag = 'input window, operand 0, single buffered']
    #allocation3 [shape = 's32[2]{0}', space=sflag, size = 0x8, scoped, tag = 'scoped memory for tpu_custom_call.1']
    #allocation4 [shape = 's32[2]{0}', space=sflag, size = 0x8, scoped, tag = 'scoped memory for tpu_custom_call.1']
    #allocation5 [shape = 'u8[65536]{0}', space=vmem, size = 0x10000, scoped, tag = 'input window, operand 1']
    %7 = vsyncpa [#allocation4], 0
    %8 = vsyncpa [#allocation3], 0
    %s9 = scalar_lea.sflag [#allocation3], 1
    %10 = vsyncpa %s9, 0
    loop: start=0, step=1, limit=4
    $region2: #{tpu_custom_call.1} parent=1 // loop_pre_header
      _
    $region3: #{tpu_custom_call.1} parent=1 // loop_header
      %s12 = sphi 0, %s16
      %p13 = scmp.ge.s32.totalorder %s12, 4
      %s20 = sphi 0, %s20
      %s22 = sphi 0, %s20
      %s23 = sphi 0, %s22
      %s37 = sphi 0, %s23
      %s43 = sphi 0, %s45
      %s46 = sphi 0, %s43
      %s47 = sphi 0, %s46
      %s63 = sphi 0, %s47
      %s69 = sphi 0, %s71
      %s72 = sphi 0, %s69
      %s73 = sphi 0, %s72
      %s89 = sphi 0, %s73
    $region4: #{tpu_custom_call.1} parent=1 // loop_header_branch
      %15 = sbr.rel (%p13) target = $region8
    $region5: #{tpu_custom_call.1} parent=1 // loop_body
      %s17 = ssub.s32 %s12, 1
      %s18 = ssub.s32 %s12, 2
      %s19 = sadd.s32 %s12, 1
      %s21 = sadd.s32 %s20, 1
      %p24 = scmp.eq.s32.totalorder %s12, 1
      %p25 = scmp.ne.s32.totalorder %s20, %s22
      %p26 = scmp.eq.s32.totalorder %s12, 0
      %p27 = por %p25, %p26
      %p28 = scmp.ne.s32.totalorder %s20, %s22
      %p29 = scmp.eq.s32.totalorder %s17, 1
      %p30 = por %p28, %p29
      %p31 = scmp.ne.s32.totalorder %s22, %s23
      %p32 = scmp.eq.s32.totalorder %s17, 0
      %p33 = por %p31, %p32
      %p34 = scmp.ne.s32.totalorder %s22, %s23
      %p35 = scmp.eq.s32.totalorder %s18, 1
      %p36 = por %p34, %p35
      %p38 = scmp.ne.s32.totalorder %s23, %s37
      %p39 = scmp.eq.s32.totalorder %s18, 0
      %p40 = por %p38, %p39
      %s41 = ssub.s32 %s12, %s19
      %p42 = scmp.eq.s32.totalorder %s41, 0
      %s44 = sadd.s32 %s43, 1
      %s45 = scalar_select %p42, %s43, %s44
      %p48 = pneg %p42
      %p49 = scmp.eq.s32.totalorder %s12, 1
      %p50 = por %p48, %p49
      %p51 = scmp.ne.s32.totalorder %s43, %s46
      %p52 = scmp.eq.s32.totalorder %s12, 0
      %p53 = por %p51, %p52
      %p54 = scmp.ne.s32.totalorder %s43, %s46
      %p55 = scmp.eq.s32.totalorder %s17, 1
      %p56 = por %p54, %p55
      %p57 = scmp.ne.s32.totalorder %s46, %s47
      %p58 = scmp.eq.s32.totalorder %s17, 0
      %p59 = por %p57, %p58
      %p60 = scmp.ne.s32.totalorder %s46, %s47
      %p61 = scmp.eq.s32.totalorder %s18, 1
      %p62 = por %p60, %p61
      %p64 = scmp.ne.s32.totalorder %s47, %s63
      %p65 = scmp.eq.s32.totalorder %s18, 0
      %p66 = por %p64, %p65
      %s67 = ssub.s32 %s12, %s19
      %p68 = scmp.eq.s32.totalorder %s67, 0
      %s70 = sadd.s32 %s69, 1
      %s71 = scalar_select %p68, %s69, %s70
      %p74 = pneg %p68
      %p75 = scmp.eq.s32.totalorder %s12, 1
      %p76 = por %p74, %p75
      %p77 = scmp.ne.s32.totalorder %s69, %s72
      %p78 = scmp.eq.s32.totalorder %s12, 0
      %p79 = por %p77, %p78
      %p80 = scmp.ne.s32.totalorder %s69, %s72
      %p81 = scmp.eq.s32.totalorder %s17, 1
      %p82 = por %p80, %p81
      %p83 = scmp.ne.s32.totalorder %s72, %s73
      %p84 = scmp.eq.s32.totalorder %s17, 0
      %p85 = por %p83, %p84
      %p86 = scmp.ne.s32.totalorder %s72, %s73
      %p87 = scmp.eq.s32.totalorder %s18, 1
      %p88 = por %p86, %p87
      %p90 = scmp.ne.s32.totalorder %s73, %s89
      %p91 = scmp.eq.s32.totalorder %s18, 0
      %p92 = por %p90, %p91
      %p93 = scmp.le.s32.totalorder 1, %s12
      %p94 = scmp.lt.s32.totalorder %s12, 3
      %p95 = pnand %p93, %p94
      %p96 = pneg %p95
      // Predicated region
      $region9: #{tpu_custom_call.1} parent=5 // pred_check
        _
      $region10: #{tpu_custom_call.1} parent=5 // pred_check_branch
        %98 = sbr.rel (%p95) target = $region12
      $region11: #{tpu_custom_call.1} parent=5 // pred_region
        %s99 = ssub.s32 %s12, 1
        // Predicated region
        $region13: #{tpu_custom_call.1} parent=11 // pred_check
          %p100 = pneg %p33
        $region14: #{tpu_custom_call.1} parent=11 // pred_check_branch
          %102 = sbr.rel (%p100) target = $region16
        $region15: #{tpu_custom_call.1} parent=11 // pred_region
          %s104 = ssub.s32 48, 48
          %105 = vsyncadd [#allocation4], %s104
          %108 = dma.hbm_to_smem %s0, 48, [#allocation2], [#allocation4]
        $region16: #{tpu_custom_call.1} parent=11 // pred_fallthru
          _
      $region12: #{tpu_custom_call.1} parent=5 // pred_fallthru
        _
      %p109 = scmp.lt.s32.totalorder %s12, 2
      // Predicated region
      $region17: #{tpu_custom_call.1} parent=5 // pred_check
        %p110 = pneg %p109
      $region18: #{tpu_custom_call.1} parent=5 // pred_check_branch
        %112 = sbr.rel (%p110) target = $region20
      $region19: #{tpu_custom_call.1} parent=5 // pred_region
        // Predicated region
        $region21: #{tpu_custom_call.1} parent=19 // pred_check
          %p113 = pneg %p53
        $region22: #{tpu_custom_call.1} parent=19 // pred_check_branch
          %115 = sbr.rel (%p113) target = $region24
        $region23: #{tpu_custom_call.1} parent=19 // pred_region
          %s116 = sand.u32 %s43, 1
          %s117 = scalar_lea.sflag [#allocation3], %s116
          %s118 = sand.u32 %s43, 1
          %s119 = smul.addr %s118, 64
          %s120 = scalar_lea.vmem [#allocation5], %s119
          %s122 = ssub.s32 1024, 1024
          %123 = vsyncadd %s117, %s122
          %s124 = smul.addr %s12, 8
          %s125 = smul.addr %s124, 128
          %s126 = scalar_lea.hbm %s1, %s125
          %s127 = sshll.u32 %s120, 4
          %s128 = int_to_ptr.vmem [resolvable:$true] %s127
          %133 = dma.hbm_to_vmem [thread:$0]  %s126, 1024, %s128, %s117, 128, 128, 8
        $region24: #{tpu_custom_call.1} parent=19 // pred_fallthru
          _
      $region20: #{tpu_custom_call.1} parent=5 // pred_fallthru
        _
      %p134 = scmp.le.s32.totalorder 1, %s12
      %p135 = scmp.lt.s32.totalorder %s12, 3
      %p136 = pnand %p134, %p135
      %p137 = pneg %p136
      // Predicated region
      $region25: #{tpu_custom_call.1} parent=5 // pred_check
        _
      $region26: #{tpu_custom_call.1} parent=5 // pred_check_branch
        %139 = sbr.rel (%p136) target = $region28
      $region27: #{tpu_custom_call.1} parent=5 // pred_region
        %s140 = ssub.s32 %s12, 1
        // Predicated region
        $region29: #{tpu_custom_call.1} parent=27 // pred_check
          %p141 = pneg %p33
        $region30: #{tpu_custom_call.1} parent=27 // pred_check_branch
          %143 = sbr.rel (%p141) target = $region32
        $region31: #{tpu_custom_call.1} parent=27 // pred_region
          %144 = dma.done [#allocation4], 48
        $region32: #{tpu_custom_call.1} parent=27 // pred_fallthru
          _
        %s145 = sand.u32 %s46, 1
        %s146 = scalar_lea.sflag [#allocation3], %s145
        %s147 = sand.u32 %s46, 1
        %s148 = smul.addr %s147, 64
        %s149 = scalar_lea.vmem [#allocation5], %s148
        // Predicated region
        $region33: #{tpu_custom_call.1} parent=27 // pred_check
          %p150 = pneg %p59
        $region34: #{tpu_custom_call.1} parent=27 // pred_check_branch
          %152 = sbr.rel (%p150) target = $region36
        $region35: #{tpu_custom_call.1} parent=27 // pred_region
          %153 = dma.done %s146, 1024
        $region36: #{tpu_custom_call.1} parent=27 // pred_fallthru
          _
        %154 = sfence
        %p155 = pneg %p33
        %p156 = pneg %p30
        %s157 = sand.u32 %s46, 1
        %s158 = scalar_lea.sflag [#allocation3], %s157
        %s159 = sand.u32 %s46, 1
        %s160 = smul.addr %s159, 64
        %s161 = scalar_lea.vmem [#allocation5], %s160
        %p162 = pneg %p59
        %p163 = pneg %p56
        %p164 = pneg %p85
        %p165 = pneg %p82
        %p166 = scmp.lt.s32.totalorder %s17, 1
        %s167 = scalar_select %p166, %s17, 1
        %s168 = smul.addr %s167, 16
        %s169 = smul.addr %s168, 8
        %s170 = scalar_lea.vmem %s2, %s169
        %p171 = scmp.lt.s32.totalorder %s17, 1
        %s172 = scalar_select %p171, %s17, 1
        %s173 = smul.addr %s172, 16
        %s174 = smul.addr %s173, 8
        %s175 = scalar_lea.vmem %s2, %s174
        %v176 = vld [vmem:[%s149] sm:$0xff]
        %v177 = vld [vmem:[%s149 + $0x8] sm:$0xff]
        %s178 = sld [smem:[#allocation2]]
        %v179 = vstv %s178
        %v180 = vmul.f32 %v179, %v176
        %v181 = vmul.f32 %v179, %v177
        %v182 = vadd.f32 %v180, 0.0
        %v183 = vadd.f32 %v181, 0.0
        %s184 = sld [smem:[#allocation2 + $0x24]]
        %v185 = vstv %s184
        %v186 = vmul.f32 %v185, %v176
        %v187 = vmul.f32 %v185, %v177
        %v188 = vadd.f32 %v186, 0.0
        %v189 = vadd.f32 %v187, 0.0
        %s190 = sld [smem:[#allocation2 + $0x48]]
        %v191 = vstv %s190
        %v192 = vmul.f32 %v191, %v176
        %v193 = vmul.f32 %v191, %v177
        %v194 = vadd.f32 %v192, 0.0
        %v195 = vadd.f32 %v193, 0.0
        %s196 = sld [smem:[#allocation2 + $0x6c]]
        %v197 = vstv %s196
        %v198 = vmul.f32 %v197, %v176
        %v199 = vmul.f32 %v197, %v177
        %v200 = vadd.f32 %v198, 0.0
        %v201 = vadd.f32 %v199, 0.0
        %s202 = sld [smem:[#allocation2 + $0x90]]
        %v203 = vstv %s202
        %v204 = vmul.f32 %v203, %v176
        %v205 = vmul.f32 %v203, %v177
        %v206 = vadd.f32 %v204, 0.0
        %v207 = vadd.f32 %v205, 0.0
        %s208 = sld [smem:[#allocation2 + $0xb4]]
        %v209 = vstv %s208
        %v210 = vmul.f32 %v209, %v176
        %v211 = vmul.f32 %v209, %v177
        %v212 = vadd.f32 %v210, 0.0
        %v213 = vadd.f32 %v211, 0.0
        %s214 = sld [smem:[#allocation2 + $0xd8]]
        %v215 = vstv %s214
        %v216 = vmul.f32 %v215, %v176
        %v217 = vmul.f32 %v215, %v177
        %v218 = vadd.f32 %v216, 0.0
        %v219 = vadd.f32 %v217, 0.0
        %s220 = sld [smem:[#allocation2 + $0xfc]]
        %v221 = vstv %s220
        %v222 = vmul.f32 %v221, %v176
        %v223 = vmul.f32 %v221, %v177
        %v224 = vadd.f32 %v222, 0.0
        %v225 = vadd.f32 %v223, 0.0
        %s226 = sld [smem:[#allocation2 + $0x1]]
        %v227 = vstv %s226
        %v228 = vmul.f32 %v227, %v176
        %v229 = vmul.f32 %v227, %v177
        %232 = vrot.lane.b32.xlu0 %v228, 127
        %v233 = vpop.permute.xlu0 %232
        %234 = vrot.lane.b32.xlu0 %v229, 127
        %v235 = vpop.permute.xlu0 %234
        %v238 = vadd.f32 %v182, %v233
        %v239 = vadd.f32 %v183, %v235
        %s240 = sld [smem:[#allocation2 + $0x25]]
        %v241 = vstv %s240
        %v242 = vmul.f32 %v241, %v176
        %v243 = vmul.f32 %v241, %v177
        %246 = vrot.lane.b32.xlu0 %v242, 127
        %v247 = vpop.permute.xlu0 %246
        %248 = vrot.lane.b32.xlu0 %v243, 127
        %v249 = vpop.permute.xlu0 %248
        %v252 = vadd.f32 %v188, %v247
        %v253 = vadd.f32 %v189, %v249
        %s254 = sld [smem:[#allocation2 + $0x49]]
        %v255 = vstv %s254
        %v256 = vmul.f32 %v255, %v176
        %v257 = vmul.f32 %v255, %v177
        %260 = vrot.lane.b32.xlu0 %v256, 127
        %v261 = vpop.permute.xlu0 %260
        %262 = vrot.lane.b32.xlu0 %v257, 127
        %v263 = vpop.permute.xlu0 %262
        %v266 = vadd.f32 %v194, %v261
        %v267 = vadd.f32 %v195, %v263
        %s268 = sld [smem:[#allocation2 + $0x6d]]
        %v269 = vstv %s268
        %v270 = vmul.f32 %v269, %v176
        %v271 = vmul.f32 %v269, %v177
        %274 = vrot.lane.b32.xlu0 %v270, 127
        %v275 = vpop.permute.xlu0 %274
        %276 = vrot.lane.b32.xlu0 %v271, 127
        %v277 = vpop.permute.xlu0 %276
        %v280 = vadd.f32 %v200, %v275
        %v281 = vadd.f32 %v201, %v277
        %s282 = sld [smem:[#allocation2 + $0x91]]
        %v283 = vstv %s282
        %v284 = vmul.f32 %v283, %v176
        %v285 = vmul.f32 %v283, %v177
        %288 = vrot.lane.b32.xlu0 %v284, 127
        %v289 = vpop.permute.xlu0 %288
        %290 = vrot.lane.b32.xlu0 %v285, 127
        %v291 = vpop.permute.xlu0 %290
        %v294 = vadd.f32 %v206, %v289
        %v295 = vadd.f32 %v207, %v291
        %s296 = sld [smem:[#allocation2 + $0xb5]]
        %v297 = vstv %s296
        %v298 = vmul.f32 %v297, %v176
        %v299 = vmul.f32 %v297, %v177
        %302 = vrot.lane.b32.xlu0 %v298, 127
        %v303 = vpop.permute.xlu0 %302
        %304 = vrot.lane.b32.xlu0 %v299, 127
        %v305 = vpop.permute.xlu0 %304
        %v308 = vadd.f32 %v212, %v303
        %v309 = vadd.f32 %v213, %v305
        %s310 = sld [smem:[#allocation2 + $0xd9]]
        %v311 = vstv %s310
        %v312 = vmul.f32 %v311, %v176
        %v313 = vmul.f32 %v311, %v177
        %316 = vrot.lane.b32.xlu0 %v312, 127
        %v317 = vpop.permute.xlu0 %316
        %318 = vrot.lane.b32.xlu0 %v313, 127
        %v319 = vpop.permute.xlu0 %318
        %v322 = vadd.f32 %v218, %v317
        %v323 = vadd.f32 %v219, %v319
        %s324 = sld [smem:[#allocation2 + $0xfd]]
        %v325 = vstv %s324
        %v326 = vmul.f32 %v325, %v176
        %v327 = vmul.f32 %v325, %v177
        %330 = vrot.lane.b32.xlu0 %v326, 127
        %v331 = vpop.permute.xlu0 %330
        %332 = vrot.lane.b32.xlu0 %v327, 127
        %v333 = vpop.permute.xlu0 %332
        %v336 = vadd.f32 %v224, %v331
        %v337 = vadd.f32 %v225, %v333
        %s338 = sld [smem:[#allocation2 + $0x2]]
        %v339 = vstv %s338
        %v340 = vmul.f32 %v339, %v176
        %v341 = vmul.f32 %v339, %v177
        %344 = vrot.lane.b32.xlu0 %v340, 126
        %v345 = vpop.permute.xlu0 %344
        %346 = vrot.lane.b32.xlu0 %v341, 126
        %v347 = vpop.permute.xlu0 %346
        %v350 = vadd.f32 %v238, %v345
        %v351 = vadd.f32 %v239, %v347
        %s352 = sld [smem:[#allocation2 + $0x26]]
        %v353 = vstv %s352
        %v354 = vmul.f32 %v353, %v176
        %v355 = vmul.f32 %v353, %v177
        %358 = vrot.lane.b32.xlu0 %v354, 126
        %v359 = vpop.permute.xlu0 %358
        %360 = vrot.lane.b32.xlu0 %v355, 126
        %v361 = vpop.permute.xlu0 %360
        %v364 = vadd.f32 %v252, %v359
        %v365 = vadd.f32 %v253, %v361
        %s366 = sld [smem:[#allocation2 + $0x4a]]
        %v367 = vstv %s366
        %v368 = vmul.f32 %v367, %v176
        %v369 = vmul.f32 %v367, %v177
        %372 = vrot.lane.b32.xlu0 %v368, 126
        %v373 = vpop.permute.xlu0 %372
        %374 = vrot.lane.b32.xlu0 %v369, 126
        %v375 = vpop.permute.xlu0 %374
        %v378 = vadd.f32 %v266, %v373
        %v379 = vadd.f32 %v267, %v375
        %s380 = sld [smem:[#allocation2 + $0x6e]]
        %v381 = vstv %s380
        %v382 = vmul.f32 %v381, %v176
        %v383 = vmul.f32 %v381, %v177
        %386 = vrot.lane.b32.xlu0 %v382, 126
        %v387 = vpop.permute.xlu0 %386
        %388 = vrot.lane.b32.xlu0 %v383, 126
        %v389 = vpop.permute.xlu0 %388
        %v392 = vadd.f32 %v280, %v387
        %v393 = vadd.f32 %v281, %v389
        %s394 = sld [smem:[#allocation2 + $0x92]]
        %v395 = vstv %s394
        %v396 = vmul.f32 %v395, %v176
        %v397 = vmul.f32 %v395, %v177
        %400 = vrot.lane.b32.xlu0 %v396, 126
        %v401 = vpop.permute.xlu0 %400
        %402 = vrot.lane.b32.xlu0 %v397, 126
        %v403 = vpop.permute.xlu0 %402
        %v406 = vadd.f32 %v294, %v401
        %v407 = vadd.f32 %v295, %v403
        %s408 = sld [smem:[#allocation2 + $0xb6]]
        %v409 = vstv %s408
        %v410 = vmul.f32 %v409, %v176
        %v411 = vmul.f32 %v409, %v177
        %414 = vrot.lane.b32.xlu0 %v410, 126
        %v415 = vpop.permute.xlu0 %414
        %416 = vrot.lane.b32.xlu0 %v411, 126
        %v417 = vpop.permute.xlu0 %416
        %v420 = vadd.f32 %v308, %v415
        %v421 = vadd.f32 %v309, %v417
        %s422 = sld [smem:[#allocation2 + $0xda]]
        %v423 = vstv %s422
        %v424 = vmul.f32 %v423, %v176
        %v425 = vmul.f32 %v423, %v177
        %428 = vrot.lane.b32.xlu0 %v424, 126
        %v429 = vpop.permute.xlu0 %428
        %430 = vrot.lane.b32.xlu0 %v425, 126
        %v431 = vpop.permute.xlu0 %430
        %v434 = vadd.f32 %v322, %v429
        %v435 = vadd.f32 %v323, %v431
        %s436 = sld [smem:[#allocation2 + $0xfe]]
        %v437 = vstv %s436
        %v438 = vmul.f32 %v437, %v176
        %v439 = vmul.f32 %v437, %v177
        %442 = vrot.lane.b32.xlu0 %v438, 126
        %v443 = vpop.permute.xlu0 %442
        %444 = vrot.lane.b32.xlu0 %v439, 126
        %v445 = vpop.permute.xlu0 %444
        %v448 = vadd.f32 %v336, %v443
        %v449 = vadd.f32 %v337, %v445
        %s450 = sld [smem:[#allocation2 + $0x3]]
        %v451 = vstv %s450
        %v452 = vmul.f32 %v451, %v176
        %v453 = vmul.f32 %v451, %v177
        %vm456 = vcmask 1046528
        %v457 = vrot.slane %v452, 1
        %v458 = vrot.slane %v453, 1
        %v459 = vsel %vm456, %v457, %v458
        %v462 = vadd.f32 %v350, %v459
        %v463 = vadd.f32 %v351, %v458
        %s464 = sld [smem:[#allocation2 + $0x27]]
        %v465 = vstv %s464
        %v466 = vmul.f32 %v465, %v176
        %v467 = vmul.f32 %v465, %v177
        %v470 = vrot.slane %v466, 1
        %v471 = vrot.slane %v467, 1
        %v472 = vsel %vm456, %v470, %v471
        %v475 = vadd.f32 %v364, %v472
        %v476 = vadd.f32 %v365, %v471
        %s477 = sld [smem:[#allocation2 + $0x4b]]
        %v478 = vstv %s477
        %v479 = vmul.f32 %v478, %v176
        %v480 = vmul.f32 %v478, %v177
        %v483 = vrot.slane %v479, 1
        %v484 = vrot.slane %v480, 1
        %v485 = vsel %vm456, %v483, %v484
        %v488 = vadd.f32 %v378, %v485
        %v489 = vadd.f32 %v379, %v484
        %s490 = sld [smem:[#allocation2 + $0x6f]]
        %v491 = vstv %s490
        %v492 = vmul.f32 %v491, %v176
        %v493 = vmul.f32 %v491, %v177
        %v496 = vrot.slane %v492, 1
        %v497 = vrot.slane %v493, 1
        %v498 = vsel %vm456, %v496, %v497
        %v501 = vadd.f32 %v392, %v498
        %v502 = vadd.f32 %v393, %v497
        %s503 = sld [smem:[#allocation2 + $0x93]]
        %v504 = vstv %s503
        %v505 = vmul.f32 %v504, %v176
        %v506 = vmul.f32 %v504, %v177
        %v509 = vrot.slane %v505, 1
        %v510 = vrot.slane %v506, 1
        %v511 = vsel %vm456, %v509, %v510
        %v514 = vadd.f32 %v406, %v511
        %v515 = vadd.f32 %v407, %v510
        %s516 = sld [smem:[#allocation2 + $0xb7]]
        %v517 = vstv %s516
        %v518 = vmul.f32 %v517, %v176
        %v519 = vmul.f32 %v517, %v177
        %v522 = vrot.slane %v518, 1
        %v523 = vrot.slane %v519, 1
        %v524 = vsel %vm456, %v522, %v523
        %v527 = vadd.f32 %v420, %v524
        %v528 = vadd.f32 %v421, %v523
        %s529 = sld [smem:[#allocation2 + $0xdb]]
        %v530 = vstv %s529
        %v531 = vmul.f32 %v530, %v176
        %v532 = vmul.f32 %v530, %v177
        %v535 = vrot.slane %v531, 1
        %v536 = vrot.slane %v532, 1
        %v537 = vsel %vm456, %v535, %v536
        %v540 = vadd.f32 %v434, %v537
        %v541 = vadd.f32 %v435, %v536
        %s542 = sld [smem:[#allocation2 + $0xff]]
        %v543 = vstv %s542
        %v544 = vmul.f32 %v543, %v176
        %v545 = vmul.f32 %v543, %v177
        %v548 = vrot.slane %v544, 1
        %v549 = vrot.slane %v545, 1
        %v550 = vsel %vm456, %v548, %v549
        %v553 = vadd.f32 %v448, %v550
        %v554 = vadd.f32 %v449, %v549
        %s555 = sld [smem:[#allocation2 + $0x4]]
        %v556 = vstv %s555
        %v557 = vmul.f32 %v556, %v176
        %v558 = vmul.f32 %v556, %v177
        %v561 = vrot.slane %v557, 1
        %v562 = vrot.slane %v558, 1
        %v563 = vsel %vm456, %v561, %v562
        %564 = vrot.lane.b32.xlu0 %v563, 127
        %v565 = vpop.permute.xlu0 %564
        %566 = vrot.lane.b32.xlu0 %v562, 127
        %v567 = vpop.permute.xlu0 %566
        %v570 = vadd.f32 %v462, %v565
        %v571 = vadd.f32 %v463, %v567
        %s572 = sld [smem:[#allocation2 + $0x28]]
        %v573 = vstv %s572
        %v574 = vmul.f32 %v573, %v176
        %v575 = vmul.f32 %v573, %v177
        %v578 = vrot.slane %v574, 1
        %v579 = vrot.slane %v575, 1
        %v580 = vsel %vm456, %v578, %v579
        %581 = vrot.lane.b32.xlu0 %v580, 127
        %v582 = vpop.permute.xlu0 %581
        %583 = vrot.lane.b32.xlu0 %v579, 127
        %v584 = vpop.permute.xlu0 %583
        %v587 = vadd.f32 %v475, %v582
        %v588 = vadd.f32 %v476, %v584
        %s589 = sld [smem:[#allocation2 + $0x4c]]
        %v590 = vstv %s589
        %v591 = vmul.f32 %v590, %v176
        %v592 = vmul.f32 %v590, %v177
        %v595 = vrot.slane %v591, 1
        %v596 = vrot.slane %v592, 1
        %v597 = vsel %vm456, %v595, %v596
        %598 = vrot.lane.b32.xlu0 %v597, 127
        %v599 = vpop.permute.xlu0 %598
        %600 = vrot.lane.b32.xlu0 %v596, 127
        %v601 = vpop.permute.xlu0 %600
        %v604 = vadd.f32 %v488, %v599
        %v605 = vadd.f32 %v489, %v601
        %s606 = sld [smem:[#allocation2 + $0x70]]
        %v607 = vstv %s606
        %v608 = vmul.f32 %v607, %v176
        %v609 = vmul.f32 %v607, %v177
        %v612 = vrot.slane %v608, 1
        %v613 = vrot.slane %v609, 1
        %v614 = vsel %vm456, %v612, %v613
        %615 = vrot.lane.b32.xlu0 %v614, 127
        %v616 = vpop.permute.xlu0 %615
        %617 = vrot.lane.b32.xlu0 %v613, 127
        %v618 = vpop.permute.xlu0 %617
        %v621 = vadd.f32 %v501, %v616
        %v622 = vadd.f32 %v502, %v618
        %s623 = sld [smem:[#allocation2 + $0x94]]
        %v624 = vstv %s623
        %v625 = vmul.f32 %v624, %v176
        %v626 = vmul.f32 %v624, %v177
        %v629 = vrot.slane %v625, 1
        %v630 = vrot.slane %v626, 1
        %v631 = vsel %vm456, %v629, %v630
        %632 = vrot.lane.b32.xlu0 %v631, 127
        %v633 = vpop.permute.xlu0 %632
        %634 = vrot.lane.b32.xlu0 %v630, 127
        %v635 = vpop.permute.xlu0 %634
        %v638 = vadd.f32 %v514, %v633
        %v639 = vadd.f32 %v515, %v635
        %s640 = sld [smem:[#allocation2 + $0xb8]]
        %v641 = vstv %s640
        %v642 = vmul.f32 %v641, %v176
        %v643 = vmul.f32 %v641, %v177
        %v646 = vrot.slane %v642, 1
        %v647 = vrot.slane %v643, 1
        %v648 = vsel %vm456, %v646, %v647
        %649 = vrot.lane.b32.xlu0 %v648, 127
        %v650 = vpop.permute.xlu0 %649
        %651 = vrot.lane.b32.xlu0 %v647, 127
        %v652 = vpop.permute.xlu0 %651
        %v655 = vadd.f32 %v527, %v650
        %v656 = vadd.f32 %v528, %v652
        %s657 = sld [smem:[#allocation2 + $0xdc]]
        %v658 = vstv %s657
        %v659 = vmul.f32 %v658, %v176
        %v660 = vmul.f32 %v658, %v177
        %v663 = vrot.slane %v659, 1
        %v664 = vrot.slane %v660, 1
        %v665 = vsel %vm456, %v663, %v664
        %666 = vrot.lane.b32.xlu0 %v665, 127
        %v667 = vpop.permute.xlu0 %666
        %668 = vrot.lane.b32.xlu0 %v664, 127
        %v669 = vpop.permute.xlu0 %668
        %v672 = vadd.f32 %v540, %v667
        %v673 = vadd.f32 %v541, %v669
        %s674 = sld [smem:[#allocation2 + $0x100]]
        %v675 = vstv %s674
        %v676 = vmul.f32 %v675, %v176
        %v677 = vmul.f32 %v675, %v177
        %v680 = vrot.slane %v676, 1
        %v681 = vrot.slane %v677, 1
        %v682 = vsel %vm456, %v680, %v681
        %683 = vrot.lane.b32.xlu0 %v682, 127
        %v684 = vpop.permute.xlu0 %683
        %685 = vrot.lane.b32.xlu0 %v681, 127
        %v686 = vpop.permute.xlu0 %685
        %v689 = vadd.f32 %v553, %v684
        %v690 = vadd.f32 %v554, %v686
        %s691 = sld [smem:[#allocation2 + $0x5]]
        %v692 = vstv %s691
        %v693 = vmul.f32 %v692, %v176
        %v694 = vmul.f32 %v692, %v177
        %v697 = vrot.slane %v693, 1
        %v698 = vrot.slane %v694, 1
        %v699 = vsel %vm456, %v697, %v698
        %700 = vrot.lane.b32.xlu0 %v699, 126
        %v701 = vpop.permute.xlu0 %700
        %702 = vrot.lane.b32.xlu0 %v698, 126
        %v703 = vpop.permute.xlu0 %702
        %v706 = vadd.f32 %v570, %v701
        %v707 = vadd.f32 %v571, %v703
        %s708 = sld [smem:[#allocation2 + $0x29]]
        %v709 = vstv %s708
        %v710 = vmul.f32 %v709, %v176
        %v711 = vmul.f32 %v709, %v177
        %v714 = vrot.slane %v710, 1
        %v715 = vrot.slane %v711, 1
        %v716 = vsel %vm456, %v714, %v715
        %717 = vrot.lane.b32.xlu0 %v716, 126
        %v718 = vpop.permute.xlu0 %717
        %719 = vrot.lane.b32.xlu0 %v715, 126
        %v720 = vpop.permute.xlu0 %719
        %v723 = vadd.f32 %v587, %v718
        %v724 = vadd.f32 %v588, %v720
        %s725 = sld [smem:[#allocation2 + $0x4d]]
        %v726 = vstv %s725
        %v727 = vmul.f32 %v726, %v176
        %v728 = vmul.f32 %v726, %v177
        %v731 = vrot.slane %v727, 1
        %v732 = vrot.slane %v728, 1
        %v733 = vsel %vm456, %v731, %v732
        %734 = vrot.lane.b32.xlu0 %v733, 126
        %v735 = vpop.permute.xlu0 %734
        %736 = vrot.lane.b32.xlu0 %v732, 126
        %v737 = vpop.permute.xlu0 %736
        %v740 = vadd.f32 %v604, %v735
        %v741 = vadd.f32 %v605, %v737
        %s742 = sld [smem:[#allocation2 + $0x71]]
        %v743 = vstv %s742
        %v744 = vmul.f32 %v743, %v176
        %v745 = vmul.f32 %v743, %v177
        %v748 = vrot.slane %v744, 1
        %v749 = vrot.slane %v745, 1
        %v750 = vsel %vm456, %v748, %v749
        %751 = vrot.lane.b32.xlu0 %v750, 126
        %v752 = vpop.permute.xlu0 %751
        %753 = vrot.lane.b32.xlu0 %v749, 126
        %v754 = vpop.permute.xlu0 %753
        %v757 = vadd.f32 %v621, %v752
        %v758 = vadd.f32 %v622, %v754
        %s759 = sld [smem:[#allocation2 + $0x95]]
        %v760 = vstv %s759
        %v761 = vmul.f32 %v760, %v176
        %v762 = vmul.f32 %v760, %v177
        %v765 = vrot.slane %v761, 1
        %v766 = vrot.slane %v762, 1
        %v767 = vsel %vm456, %v765, %v766
        %768 = vrot.lane.b32.xlu0 %v767, 126
        %v769 = vpop.permute.xlu0 %768
        %770 = vrot.lane.b32.xlu0 %v766, 126
        %v771 = vpop.permute.xlu0 %770
        %v774 = vadd.f32 %v638, %v769
        %v775 = vadd.f32 %v639, %v771
        %s776 = sld [smem:[#allocation2 + $0xb9]]
        %v777 = vstv %s776
        %v778 = vmul.f32 %v777, %v176
        %v779 = vmul.f32 %v777, %v177
        %v782 = vrot.slane %v778, 1
        %v783 = vrot.slane %v779, 1
        %v784 = vsel %vm456, %v782, %v783
        %785 = vrot.lane.b32.xlu0 %v784, 126
        %v786 = vpop.permute.xlu0 %785
        %787 = vrot.lane.b32.xlu0 %v783, 126
        %v788 = vpop.permute.xlu0 %787
        %v791 = vadd.f32 %v655, %v786
        %v792 = vadd.f32 %v656, %v788
        %s793 = sld [smem:[#allocation2 + $0xdd]]
        %v794 = vstv %s793
        %v795 = vmul.f32 %v794, %v176
        %v796 = vmul.f32 %v794, %v177
        %v799 = vrot.slane %v795, 1
        %v800 = vrot.slane %v796, 1
        %v801 = vsel %vm456, %v799, %v800
        %802 = vrot.lane.b32.xlu0 %v801, 126
        %v803 = vpop.permute.xlu0 %802
        %804 = vrot.lane.b32.xlu0 %v800, 126
        %v805 = vpop.permute.xlu0 %804
        %v808 = vadd.f32 %v672, %v803
        %v809 = vadd.f32 %v673, %v805
        %s810 = sld [smem:[#allocation2 + $0x101]]
        %v811 = vstv %s810
        %v812 = vmul.f32 %v811, %v176
        %v813 = vmul.f32 %v811, %v177
        %v816 = vrot.slane %v812, 1
        %v817 = vrot.slane %v813, 1
        %v818 = vsel %vm456, %v816, %v817
        %819 = vrot.lane.b32.xlu0 %v818, 126
        %v820 = vpop.permute.xlu0 %819
        %821 = vrot.lane.b32.xlu0 %v817, 126
        %v822 = vpop.permute.xlu0 %821
        %v825 = vadd.f32 %v689, %v820
        %v826 = vadd.f32 %v690, %v822
        %s827 = sld [smem:[#allocation2 + $0x6]]
        %v828 = vstv %s827
        %v829 = vmul.f32 %v828, %v176
        %v830 = vmul.f32 %v828, %v177
        %vm833 = vcmask 1045504
        %v834 = vrot.slane %v829, 2
        %v835 = vrot.slane %v830, 2
        %v836 = vsel %vm833, %v834, %v835
        %v839 = vadd.f32 %v706, %v836
        %v840 = vadd.f32 %v707, %v835
        %s841 = sld [smem:[#allocation2 + $0x2a]]
        %v842 = vstv %s841
        %v843 = vmul.f32 %v842, %v176
        %v844 = vmul.f32 %v842, %v177
        %v847 = vrot.slane %v843, 2
        %v848 = vrot.slane %v844, 2
        %v849 = vsel %vm833, %v847, %v848
        %v852 = vadd.f32 %v723, %v849
        %v853 = vadd.f32 %v724, %v848
        %s854 = sld [smem:[#allocation2 + $0x4e]]
        %v855 = vstv %s854
        %v856 = vmul.f32 %v855, %v176
        %v857 = vmul.f32 %v855, %v177
        %v860 = vrot.slane %v856, 2
        %v861 = vrot.slane %v857, 2
        %v862 = vsel %vm833, %v860, %v861
        %v865 = vadd.f32 %v740, %v862
        %v866 = vadd.f32 %v741, %v861
        %s867 = sld [smem:[#allocation2 + $0x72]]
        %v868 = vstv %s867
        %v869 = vmul.f32 %v868, %v176
        %v870 = vmul.f32 %v868, %v177
        %v873 = vrot.slane %v869, 2
        %v874 = vrot.slane %v870, 2
        %v875 = vsel %vm833, %v873, %v874
        %v878 = vadd.f32 %v757, %v875
        %v879 = vadd.f32 %v758, %v874
        %s880 = sld [smem:[#allocation2 + $0x96]]
        %v881 = vstv %s880
        %v882 = vmul.f32 %v881, %v176
        %v883 = vmul.f32 %v881, %v177
        %v886 = vrot.slane %v882, 2
        %v887 = vrot.slane %v883, 2
        %v888 = vsel %vm833, %v886, %v887
        %v891 = vadd.f32 %v774, %v888
        %v892 = vadd.f32 %v775, %v887
        %s893 = sld [smem:[#allocation2 + $0xba]]
        %v894 = vstv %s893
        %v895 = vmul.f32 %v894, %v176
        %v896 = vmul.f32 %v894, %v177
        %v899 = vrot.slane %v895, 2
        %v900 = vrot.slane %v896, 2
        %v901 = vsel %vm833, %v899, %v900
        %v904 = vadd.f32 %v791, %v901
        %v905 = vadd.f32 %v792, %v900
        %s906 = sld [smem:[#allocation2 + $0xde]]
        %v907 = vstv %s906
        %v908 = vmul.f32 %v907, %v176
        %v909 = vmul.f32 %v907, %v177
        %v912 = vrot.slane %v908, 2
        %v913 = vrot.slane %v909, 2
        %v914 = vsel %vm833, %v912, %v913
        %v917 = vadd.f32 %v808, %v914
        %v918 = vadd.f32 %v809, %v913
        %s919 = sld [smem:[#allocation2 + $0x102]]
        %v920 = vstv %s919
        %v921 = vmul.f32 %v920, %v176
        %v922 = vmul.f32 %v920, %v177
        %v925 = vrot.slane %v921, 2
        %v926 = vrot.slane %v922, 2
        %v927 = vsel %vm833, %v925, %v926
        %v930 = vadd.f32 %v825, %v927
        %v931 = vadd.f32 %v826, %v926
        %s932 = sld [smem:[#allocation2 + $0x7]]
        %v933 = vstv %s932
        %v934 = vmul.f32 %v933, %v176
        %v935 = vmul.f32 %v933, %v177
        %v938 = vrot.slane %v934, 2
        %v939 = vrot.slane %v935, 2
        %v940 = vsel %vm833, %v938, %v939
        %941 = vrot.lane.b32.xlu0 %v940, 127
        %v942 = vpop.permute.xlu0 %941
        %943 = vrot.lane.b32.xlu0 %v939, 127
        %v944 = vpop.permute.xlu0 %943
        %v947 = vadd.f32 %v839, %v942
        %v948 = vadd.f32 %v840, %v944
        %s949 = sld [smem:[#allocation2 + $0x2b]]
        %v950 = vstv %s949
        %v951 = vmul.f32 %v950, %v176
        %v952 = vmul.f32 %v950, %v177
        %v955 = vrot.slane %v951, 2
        %v956 = vrot.slane %v952, 2
        %v957 = vsel %vm833, %v955, %v956
        %958 = vrot.lane.b32.xlu0 %v957, 127
        %v959 = vpop.permute.xlu0 %958
        %960 = vrot.lane.b32.xlu0 %v956, 127
        %v961 = vpop.permute.xlu0 %960
        %v964 = vadd.f32 %v852, %v959
        %v965 = vadd.f32 %v853, %v961
        %s966 = sld [smem:[#allocation2 + $0x4f]]
        %v967 = vstv %s966
        %v968 = vmul.f32 %v967, %v176
        %v969 = vmul.f32 %v967, %v177
        %v972 = vrot.slane %v968, 2
        %v973 = vrot.slane %v969, 2
        %v974 = vsel %vm833, %v972, %v973
        %975 = vrot.lane.b32.xlu0 %v974, 127
        %v976 = vpop.permute.xlu0 %975
        %977 = vrot.lane.b32.xlu0 %v973, 127
        %v978 = vpop.permute.xlu0 %977
        %v981 = vadd.f32 %v865, %v976
        %v982 = vadd.f32 %v866, %v978
        %s983 = sld [smem:[#allocation2 + $0x73]]
        %v984 = vstv %s983
        %v985 = vmul.f32 %v984, %v176
        %v986 = vmul.f32 %v984, %v177
        %v989 = vrot.slane %v985, 2
        %v990 = vrot.slane %v986, 2
        %v991 = vsel %vm833, %v989, %v990
        %992 = vrot.lane.b32.xlu0 %v991, 127
        %v993 = vpop.permute.xlu0 %992
        %994 = vrot.lane.b32.xlu0 %v990, 127
        %v995 = vpop.permute.xlu0 %994
        %v998 = vadd.f32 %v878, %v993
        %v999 = vadd.f32 %v879, %v995
        %s1000 = sld [smem:[#allocation2 + $0x97]]
        %v1001 = vstv %s1000
        %v1002 = vmul.f32 %v1001, %v176
        %v1003 = vmul.f32 %v1001, %v177
        %v1006 = vrot.slane %v1002, 2
        %v1007 = vrot.slane %v1003, 2
        %v1008 = vsel %vm833, %v1006, %v1007
        %1009 = vrot.lane.b32.xlu0 %v1008, 127
        %v1010 = vpop.permute.xlu0 %1009
        %1011 = vrot.lane.b32.xlu0 %v1007, 127
        %v1012 = vpop.permute.xlu0 %1011
        %v1015 = vadd.f32 %v891, %v1010
        %v1016 = vadd.f32 %v892, %v1012
        %s1017 = sld [smem:[#allocation2 + $0xbb]]
        %v1018 = vstv %s1017
        %v1019 = vmul.f32 %v1018, %v176
        %v1020 = vmul.f32 %v1018, %v177
        %v1023 = vrot.slane %v1019, 2
        %v1024 = vrot.slane %v1020, 2
        %v1025 = vsel %vm833, %v1023, %v1024
        %1026 = vrot.lane.b32.xlu0 %v1025, 127
        %v1027 = vpop.permute.xlu0 %1026
        %1028 = vrot.lane.b32.xlu0 %v1024, 127
        %v1029 = vpop.permute.xlu0 %1028
        %v1032 = vadd.f32 %v904, %v1027
        %v1033 = vadd.f32 %v905, %v1029
        %s1034 = sld [smem:[#allocation2 + $0xdf]]
        %v1035 = vstv %s1034
        %v1036 = vmul.f32 %v1035, %v176
        %v1037 = vmul.f32 %v1035, %v177
        %v1040 = vrot.slane %v1036, 2
        %v1041 = vrot.slane %v1037, 2
        %v1042 = vsel %vm833, %v1040, %v1041
        %1043 = vrot.lane.b32.xlu0 %v1042, 127
        %v1044 = vpop.permute.xlu0 %1043
        %1045 = vrot.lane.b32.xlu0 %v1041, 127
        %v1046 = vpop.permute.xlu0 %1045
        %v1049 = vadd.f32 %v917, %v1044
        %v1050 = vadd.f32 %v918, %v1046
        %s1051 = sld [smem:[#allocation2 + $0x103]]
        %v1052 = vstv %s1051
        %v1053 = vmul.f32 %v1052, %v176
        %v1054 = vmul.f32 %v1052, %v177
        %v1057 = vrot.slane %v1053, 2
        %v1058 = vrot.slane %v1054, 2
        %v1059 = vsel %vm833, %v1057, %v1058
        %1060 = vrot.lane.b32.xlu0 %v1059, 127
        %v1061 = vpop.permute.xlu0 %1060
        %1062 = vrot.lane.b32.xlu0 %v1058, 127
        %v1063 = vpop.permute.xlu0 %1062
        %v1066 = vadd.f32 %v930, %v1061
        %v1067 = vadd.f32 %v931, %v1063
        %s1068 = sld [smem:[#allocation2 + $0x8]]
        %v1069 = vstv %s1068
        %v1070 = vmul.f32 %v1069, %v176
        %v1071 = vmul.f32 %v1069, %v177
        %v1074 = vrot.slane %v1070, 2
        %v1075 = vrot.slane %v1071, 2
        %v1076 = vsel %vm833, %v1074, %v1075
        %1077 = vrot.lane.b32.xlu0 %v1076, 126
        %v1078 = vpop.permute.xlu0 %1077
        %1079 = vrot.lane.b32.xlu0 %v1075, 126
        %v1080 = vpop.permute.xlu0 %1079
        %v1083 = vadd.f32 %v947, %v1078
        %v1084 = vadd.f32 %v948, %v1080
        %s1085 = sld [smem:[#allocation2 + $0x2c]]
        %v1086 = vstv %s1085
        %v1087 = vmul.f32 %v1086, %v176
        %v1088 = vmul.f32 %v1086, %v177
        %v1091 = vrot.slane %v1087, 2
        %v1092 = vrot.slane %v1088, 2
        %v1093 = vsel %vm833, %v1091, %v1092
        %1094 = vrot.lane.b32.xlu0 %v1093, 126
        %v1095 = vpop.permute.xlu0 %1094
        %1096 = vrot.lane.b32.xlu0 %v1092, 126
        %v1097 = vpop.permute.xlu0 %1096
        %v1100 = vadd.f32 %v964, %v1095
        %v1101 = vadd.f32 %v965, %v1097
        %s1102 = sld [smem:[#allocation2 + $0x50]]
        %v1103 = vstv %s1102
        %v1104 = vmul.f32 %v1103, %v176
        %v1105 = vmul.f32 %v1103, %v177
        %v1108 = vrot.slane %v1104, 2
        %v1109 = vrot.slane %v1105, 2
        %v1110 = vsel %vm833, %v1108, %v1109
        %1111 = vrot.lane.b32.xlu0 %v1110, 126
        %v1112 = vpop.permute.xlu0 %1111
        %1113 = vrot.lane.b32.xlu0 %v1109, 126
        %v1114 = vpop.permute.xlu0 %1113
        %v1117 = vadd.f32 %v981, %v1112
        %v1118 = vadd.f32 %v982, %v1114
        %s1119 = sld [smem:[#allocation2 + $0x74]]
        %v1120 = vstv %s1119
        %v1121 = vmul.f32 %v1120, %v176
        %v1122 = vmul.f32 %v1120, %v177
        %v1125 = vrot.slane %v1121, 2
        %v1126 = vrot.slane %v1122, 2
        %v1127 = vsel %vm833, %v1125, %v1126
        %1128 = vrot.lane.b32.xlu0 %v1127, 126
        %v1129 = vpop.permute.xlu0 %1128
        %1130 = vrot.lane.b32.xlu0 %v1126, 126
        %v1131 = vpop.permute.xlu0 %1130
        %v1134 = vadd.f32 %v998, %v1129
        %v1135 = vadd.f32 %v999, %v1131
        %s1136 = sld [smem:[#allocation2 + $0x98]]
        %v1137 = vstv %s1136
        %v1138 = vmul.f32 %v1137, %v176
        %v1139 = vmul.f32 %v1137, %v177
        %v1142 = vrot.slane %v1138, 2
        %v1143 = vrot.slane %v1139, 2
        %v1144 = vsel %vm833, %v1142, %v1143
        %1145 = vrot.lane.b32.xlu0 %v1144, 126
        %v1146 = vpop.permute.xlu0 %1145
        %1147 = vrot.lane.b32.xlu0 %v1143, 126
        %v1148 = vpop.permute.xlu0 %1147
        %v1151 = vadd.f32 %v1015, %v1146
        %v1152 = vadd.f32 %v1016, %v1148
        %s1153 = sld [smem:[#allocation2 + $0xbc]]
        %v1154 = vstv %s1153
        %v1155 = vmul.f32 %v1154, %v176
        %v1156 = vmul.f32 %v1154, %v177
        %v1159 = vrot.slane %v1155, 2
        %v1160 = vrot.slane %v1156, 2
        %v1161 = vsel %vm833, %v1159, %v1160
        %1162 = vrot.lane.b32.xlu0 %v1161, 126
        %v1163 = vpop.permute.xlu0 %1162
        %1164 = vrot.lane.b32.xlu0 %v1160, 126
        %v1165 = vpop.permute.xlu0 %1164
        %v1168 = vadd.f32 %v1032, %v1163
        %v1169 = vadd.f32 %v1033, %v1165
        %s1170 = sld [smem:[#allocation2 + $0xe0]]
        %v1171 = vstv %s1170
        %v1172 = vmul.f32 %v1171, %v176
        %v1173 = vmul.f32 %v1171, %v177
        %v1176 = vrot.slane %v1172, 2
        %v1177 = vrot.slane %v1173, 2
        %v1178 = vsel %vm833, %v1176, %v1177
        %1179 = vrot.lane.b32.xlu0 %v1178, 126
        %v1180 = vpop.permute.xlu0 %1179
        %1181 = vrot.lane.b32.xlu0 %v1177, 126
        %v1182 = vpop.permute.xlu0 %1181
        %v1185 = vadd.f32 %v1049, %v1180
        %v1186 = vadd.f32 %v1050, %v1182
        %s1187 = sld [smem:[#allocation2 + $0x104]]
        %v1188 = vstv %s1187
        %v1189 = vmul.f32 %v1188, %v176
        %v1190 = vmul.f32 %v1188, %v177
        %v1193 = vrot.slane %v1189, 2
        %v1194 = vrot.slane %v1190, 2
        %v1195 = vsel %vm833, %v1193, %v1194
        %1196 = vrot.lane.b32.xlu0 %v1195, 126
        %v1197 = vpop.permute.xlu0 %1196
        %1198 = vrot.lane.b32.xlu0 %v1194, 126
        %v1199 = vpop.permute.xlu0 %1198
        %v1202 = vadd.f32 %v1066, %v1197
        %v1203 = vadd.f32 %v1067, %v1199
        %s1204 = scalar_lea.vmem %s149, 16 [#allocation5]
        %v1205 = vld [vmem:[%s1204] sm:$0xff]
        %v1206 = vld [vmem:[%s1204 + $0x8] sm:$0xff]
        %s1207 = sld [smem:[#allocation2 + $0x9]]
        %v1208 = vstv %s1207
        %v1209 = vmul.f32 %v1208, %v1205
        %v1210 = vmul.f32 %v1208, %v1206
        %v1211 = vadd.f32 %v1083, %v1209
        %v1212 = vadd.f32 %v1084, %v1210
        %s1213 = sld [smem:[#allocation2 + $0x2d]]
        %v1214 = vstv %s1213
        %v1215 = vmul.f32 %v1214, %v1205
        %v1216 = vmul.f32 %v1214, %v1206
        %v1217 = vadd.f32 %v1100, %v1215
        %v1218 = vadd.f32 %v1101, %v1216
        %s1219 = sld [smem:[#allocation2 + $0x51]]
        %v1220 = vstv %s1219
        %v1221 = vmul.f32 %v1220, %v1205
        %v1222 = vmul.f32 %v1220, %v1206
        %v1223 = vadd.f32 %v1117, %v1221
        %v1224 = vadd.f32 %v1118, %v1222
        %s1225 = sld [smem:[#allocation2 + $0x75]]
        %v1226 = vstv %s1225
        %v1227 = vmul.f32 %v1226, %v1205
        %v1228 = vmul.f32 %v1226, %v1206
        %v1229 = vadd.f32 %v1134, %v1227
        %v1230 = vadd.f32 %v1135, %v1228
        %s1231 = sld [smem:[#allocation2 + $0x99]]
        %v1232 = vstv %s1231
        %v1233 = vmul.f32 %v1232, %v1205
        %v1234 = vmul.f32 %v1232, %v1206
        %v1235 = vadd.f32 %v1151, %v1233
        %v1236 = vadd.f32 %v1152, %v1234
        %s1237 = sld [smem:[#allocation2 + $0xbd]]
        %v1238 = vstv %s1237
        %v1239 = vmul.f32 %v1238, %v1205
        %v1240 = vmul.f32 %v1238, %v1206
        %v1241 = vadd.f32 %v1168, %v1239
        %v1242 = vadd.f32 %v1169, %v1240
        %s1243 = sld [smem:[#allocation2 + $0xe1]]
        %v1244 = vstv %s1243
        %v1245 = vmul.f32 %v1244, %v1205
        %v1246 = vmul.f32 %v1244, %v1206
        %v1247 = vadd.f32 %v1185, %v1245
        %v1248 = vadd.f32 %v1186, %v1246
        %s1249 = sld [smem:[#allocation2 + $0x105]]
        %v1250 = vstv %s1249
        %v1251 = vmul.f32 %v1250, %v1205
        %v1252 = vmul.f32 %v1250, %v1206
        %v1253 = vadd.f32 %v1202, %v1251
        %v1254 = vadd.f32 %v1203, %v1252
        %s1255 = sld [smem:[#allocation2 + $0xa]]
        %v1256 = vstv %s1255
        %v1257 = vmul.f32 %v1256, %v1205
        %v1258 = vmul.f32 %v1256, %v1206
        %1261 = vrot.lane.b32.xlu0 %v1257, 127
        %v1262 = vpop.permute.xlu0 %1261
        %1263 = vrot.lane.b32.xlu0 %v1258, 127
        %v1264 = vpop.permute.xlu0 %1263
        %v1267 = vadd.f32 %v1211, %v1262
        %v1268 = vadd.f32 %v1212, %v1264
        %s1269 = sld [smem:[#allocation2 + $0x2e]]
        %v1270 = vstv %s1269
        %v1271 = vmul.f32 %v1270, %v1205
        %v1272 = vmul.f32 %v1270, %v1206
        %1275 = vrot.lane.b32.xlu0 %v1271, 127
        %v1276 = vpop.permute.xlu0 %1275
        %1277 = vrot.lane.b32.xlu0 %v1272, 127
        %v1278 = vpop.permute.xlu0 %1277
        %v1281 = vadd.f32 %v1217, %v1276
        %v1282 = vadd.f32 %v1218, %v1278
        %s1283 = sld [smem:[#allocation2 + $0x52]]
        %v1284 = vstv %s1283
        %v1285 = vmul.f32 %v1284, %v1205
        %v1286 = vmul.f32 %v1284, %v1206
        %1289 = vrot.lane.b32.xlu0 %v1285, 127
        %v1290 = vpop.permute.xlu0 %1289
        %1291 = vrot.lane.b32.xlu0 %v1286, 127
        %v1292 = vpop.permute.xlu0 %1291
        %v1295 = vadd.f32 %v1223, %v1290
        %v1296 = vadd.f32 %v1224, %v1292
        %s1297 = sld [smem:[#allocation2 + $0x76]]
        %v1298 = vstv %s1297
        %v1299 = vmul.f32 %v1298, %v1205
        %v1300 = vmul.f32 %v1298, %v1206
        %1303 = vrot.lane.b32.xlu0 %v1299, 127
        %v1304 = vpop.permute.xlu0 %1303
        %1305 = vrot.lane.b32.xlu0 %v1300, 127
        %v1306 = vpop.permute.xlu0 %1305
        %v1309 = vadd.f32 %v1229, %v1304
        %v1310 = vadd.f32 %v1230, %v1306
        %s1311 = sld [smem:[#allocation2 + $0x9a]]
        %v1312 = vstv %s1311
        %v1313 = vmul.f32 %v1312, %v1205
        %v1314 = vmul.f32 %v1312, %v1206
        %1317 = vrot.lane.b32.xlu0 %v1313, 127
        %v1318 = vpop.permute.xlu0 %1317
        %1319 = vrot.lane.b32.xlu0 %v1314, 127
        %v1320 = vpop.permute.xlu0 %1319
        %v1323 = vadd.f32 %v1235, %v1318
        %v1324 = vadd.f32 %v1236, %v1320
        %s1325 = sld [smem:[#allocation2 + $0xbe]]
        %v1326 = vstv %s1325
        %v1327 = vmul.f32 %v1326, %v1205
        %v1328 = vmul.f32 %v1326, %v1206
        %1331 = vrot.lane.b32.xlu0 %v1327, 127
        %v1332 = vpop.permute.xlu0 %1331
        %1333 = vrot.lane.b32.xlu0 %v1328, 127
        %v1334 = vpop.permute.xlu0 %1333
        %v1337 = vadd.f32 %v1241, %v1332
        %v1338 = vadd.f32 %v1242, %v1334
        %s1339 = sld [smem:[#allocation2 + $0xe2]]
        %v1340 = vstv %s1339
        %v1341 = vmul.f32 %v1340, %v1205
        %v1342 = vmul.f32 %v1340, %v1206
        %1345 = vrot.lane.b32.xlu0 %v1341, 127
        %v1346 = vpop.permute.xlu0 %1345
        %1347 = vrot.lane.b32.xlu0 %v1342, 127
        %v1348 = vpop.permute.xlu0 %1347
        %v1351 = vadd.f32 %v1247, %v1346
        %v1352 = vadd.f32 %v1248, %v1348
        %s1353 = sld [smem:[#allocation2 + $0x106]]
        %v1354 = vstv %s1353
        %v1355 = vmul.f32 %v1354, %v1205
        %v1356 = vmul.f32 %v1354, %v1206
        %1359 = vrot.lane.b32.xlu0 %v1355, 127
        %v1360 = vpop.permute.xlu0 %1359
        %1361 = vrot.lane.b32.xlu0 %v1356, 127
        %v1362 = vpop.permute.xlu0 %1361
        %v1365 = vadd.f32 %v1253, %v1360
        %v1366 = vadd.f32 %v1254, %v1362
        %s1367 = sld [smem:[#allocation2 + $0xb]]
        %v1368 = vstv %s1367
        %v1369 = vmul.f32 %v1368, %v1205
        %v1370 = vmul.f32 %v1368, %v1206
        %1373 = vrot.lane.b32.xlu0 %v1369, 126
        %v1374 = vpop.permute.xlu0 %1373
        %1375 = vrot.lane.b32.xlu0 %v1370, 126
        %v1376 = vpop.permute.xlu0 %1375
        %v1379 = vadd.f32 %v1267, %v1374
        %v1380 = vadd.f32 %v1268, %v1376
        %s1381 = sld [smem:[#allocation2 + $0x2f]]
        %v1382 = vstv %s1381
        %v1383 = vmul.f32 %v1382, %v1205
        %v1384 = vmul.f32 %v1382, %v1206
        %1387 = vrot.lane.b32.xlu0 %v1383, 126
        %v1388 = vpop.permute.xlu0 %1387
        %1389 = vrot.lane.b32.xlu0 %v1384, 126
        %v1390 = vpop.permute.xlu0 %1389
        %v1393 = vadd.f32 %v1281, %v1388
        %v1394 = vadd.f32 %v1282, %v1390
        %s1395 = sld [smem:[#allocation2 + $0x53]]
        %v1396 = vstv %s1395
        %v1397 = vmul.f32 %v1396, %v1205
        %v1398 = vmul.f32 %v1396, %v1206
        %1401 = vrot.lane.b32.xlu0 %v1397, 126
        %v1402 = vpop.permute.xlu0 %1401
        %1403 = vrot.lane.b32.xlu0 %v1398, 126
        %v1404 = vpop.permute.xlu0 %1403
        %v1407 = vadd.f32 %v1295, %v1402
        %v1408 = vadd.f32 %v1296, %v1404
        %s1409 = sld [smem:[#allocation2 + $0x77]]
        %v1410 = vstv %s1409
        %v1411 = vmul.f32 %v1410, %v1205
        %v1412 = vmul.f32 %v1410, %v1206
        %1415 = vrot.lane.b32.xlu0 %v1411, 126
        %v1416 = vpop.permute.xlu0 %1415
        %1417 = vrot.lane.b32.xlu0 %v1412, 126
        %v1418 = vpop.permute.xlu0 %1417
        %v1421 = vadd.f32 %v1309, %v1416
        %v1422 = vadd.f32 %v1310, %v1418
        %s1423 = sld [smem:[#allocation2 + $0x9b]]
        %v1424 = vstv %s1423
        %v1425 = vmul.f32 %v1424, %v1205
        %v1426 = vmul.f32 %v1424, %v1206
        %1429 = vrot.lane.b32.xlu0 %v1425, 126
        %v1430 = vpop.permute.xlu0 %1429
        %1431 = vrot.lane.b32.xlu0 %v1426, 126
        %v1432 = vpop.permute.xlu0 %1431
        %v1435 = vadd.f32 %v1323, %v1430
        %v1436 = vadd.f32 %v1324, %v1432
        %s1437 = sld [smem:[#allocation2 + $0xbf]]
        %v1438 = vstv %s1437
        %v1439 = vmul.f32 %v1438, %v1205
        %v1440 = vmul.f32 %v1438, %v1206
        %1443 = vrot.lane.b32.xlu0 %v1439, 126
        %v1444 = vpop.permute.xlu0 %1443
        %1445 = vrot.lane.b32.xlu0 %v1440, 126
        %v1446 = vpop.permute.xlu0 %1445
        %v1449 = vadd.f32 %v1337, %v1444
        %v1450 = vadd.f32 %v1338, %v1446
        %s1451 = sld [smem:[#allocation2 + $0xe3]]
        %v1452 = vstv %s1451
        %v1453 = vmul.f32 %v1452, %v1205
        %v1454 = vmul.f32 %v1452, %v1206
        %1457 = vrot.lane.b32.xlu0 %v1453, 126
        %v1458 = vpop.permute.xlu0 %1457
        %1459 = vrot.lane.b32.xlu0 %v1454, 126
        %v1460 = vpop.permute.xlu0 %1459
        %v1463 = vadd.f32 %v1351, %v1458
        %v1464 = vadd.f32 %v1352, %v1460
        %s1465 = sld [smem:[#allocation2 + $0x107]]
        %v1466 = vstv %s1465
        %v1467 = vmul.f32 %v1466, %v1205
        %v1468 = vmul.f32 %v1466, %v1206
        %1471 = vrot.lane.b32.xlu0 %v1467, 126
        %v1472 = vpop.permute.xlu0 %1471
        %1473 = vrot.lane.b32.xlu0 %v1468, 126
        %v1474 = vpop.permute.xlu0 %1473
        %v1477 = vadd.f32 %v1365, %v1472
        %v1478 = vadd.f32 %v1366, %v1474
        %s1479 = sld [smem:[#allocation2 + $0xc]]
        %v1480 = vstv %s1479
        %v1481 = vmul.f32 %v1480, %v1205
        %v1482 = vmul.f32 %v1480, %v1206
        %v1485 = vrot.slane %v1481, 1
        %v1486 = vrot.slane %v1482, 1
        %v1487 = vsel %vm456, %v1485, %v1486
        %v1490 = vadd.f32 %v1379, %v1487
        %v1491 = vadd.f32 %v1380, %v1486
        %s1492 = sld [smem:[#allocation2 + $0x30]]
        %v1493 = vstv %s1492
        %v1494 = vmul.f32 %v1493, %v1205
        %v1495 = vmul.f32 %v1493, %v1206
        %v1498 = vrot.slane %v1494, 1
        %v1499 = vrot.slane %v1495, 1
        %v1500 = vsel %vm456, %v1498, %v1499
        %v1503 = vadd.f32 %v1393, %v1500
        %v1504 = vadd.f32 %v1394, %v1499
        %s1505 = sld [smem:[#allocation2 + $0x54]]
        %v1506 = vstv %s1505
        %v1507 = vmul.f32 %v1506, %v1205
        %v1508 = vmul.f32 %v1506, %v1206
        %v1511 = vrot.slane %v1507, 1
        %v1512 = vrot.slane %v1508, 1
        %v1513 = vsel %vm456, %v1511, %v1512
        %v1516 = vadd.f32 %v1407, %v1513
        %v1517 = vadd.f32 %v1408, %v1512
        %s1518 = sld [smem:[#allocation2 + $0x78]]
        %v1519 = vstv %s1518
        %v1520 = vmul.f32 %v1519, %v1205
        %v1521 = vmul.f32 %v1519, %v1206
        %v1524 = vrot.slane %v1520, 1
        %v1525 = vrot.slane %v1521, 1
        %v1526 = vsel %vm456, %v1524, %v1525
        %v1529 = vadd.f32 %v1421, %v1526
        %v1530 = vadd.f32 %v1422, %v1525
        %s1531 = sld [smem:[#allocation2 + $0x9c]]
        %v1532 = vstv %s1531
        %v1533 = vmul.f32 %v1532, %v1205
        %v1534 = vmul.f32 %v1532, %v1206
        %v1537 = vrot.slane %v1533, 1
        %v1538 = vrot.slane %v1534, 1
        %v1539 = vsel %vm456, %v1537, %v1538
        %v1542 = vadd.f32 %v1435, %v1539
        %v1543 = vadd.f32 %v1436, %v1538
        %s1544 = sld [smem:[#allocation2 + $0xc0]]
        %v1545 = vstv %s1544
        %v1546 = vmul.f32 %v1545, %v1205
        %v1547 = vmul.f32 %v1545, %v1206
        %v1550 = vrot.slane %v1546, 1
        %v1551 = vrot.slane %v1547, 1
        %v1552 = vsel %vm456, %v1550, %v1551
        %v1555 = vadd.f32 %v1449, %v1552
        %v1556 = vadd.f32 %v1450, %v1551
        %s1557 = sld [smem:[#allocation2 + $0xe4]]
        %v1558 = vstv %s1557
        %v1559 = vmul.f32 %v1558, %v1205
        %v1560 = vmul.f32 %v1558, %v1206
        %v1563 = vrot.slane %v1559, 1
        %v1564 = vrot.slane %v1560, 1
        %v1565 = vsel %vm456, %v1563, %v1564
        %v1568 = vadd.f32 %v1463, %v1565
        %v1569 = vadd.f32 %v1464, %v1564
        %s1570 = sld [smem:[#allocation2 + $0x108]]
        %v1571 = vstv %s1570
        %v1572 = vmul.f32 %v1571, %v1205
        %v1573 = vmul.f32 %v1571, %v1206
        %v1576 = vrot.slane %v1572, 1
        %v1577 = vrot.slane %v1573, 1
        %v1578 = vsel %vm456, %v1576, %v1577
        %v1581 = vadd.f32 %v1477, %v1578
        %v1582 = vadd.f32 %v1478, %v1577
        %s1583 = sld [smem:[#allocation2 + $0xd]]
        %v1584 = vstv %s1583
        %v1585 = vmul.f32 %v1584, %v1205
        %v1586 = vmul.f32 %v1584, %v1206
        %v1589 = vrot.slane %v1585, 1
        %v1590 = vrot.slane %v1586, 1
        %v1591 = vsel %vm456, %v1589, %v1590
        %1592 = vrot.lane.b32.xlu0 %v1591, 127
        %v1593 = vpop.permute.xlu0 %1592
        %1594 = vrot.lane.b32.xlu0 %v1590, 127
        %v1595 = vpop.permute.xlu0 %1594
        %v1598 = vadd.f32 %v1490, %v1593
        %v1599 = vadd.f32 %v1491, %v1595
        %s1600 = sld [smem:[#allocation2 + $0x31]]
        %v1601 = vstv %s1600
        %v1602 = vmul.f32 %v1601, %v1205
        %v1603 = vmul.f32 %v1601, %v1206
        %v1606 = vrot.slane %v1602, 1
        %v1607 = vrot.slane %v1603, 1
        %v1608 = vsel %vm456, %v1606, %v1607
        %1609 = vrot.lane.b32.xlu0 %v1608, 127
        %v1610 = vpop.permute.xlu0 %1609
        %1611 = vrot.lane.b32.xlu0 %v1607, 127
        %v1612 = vpop.permute.xlu0 %1611
        %v1615 = vadd.f32 %v1503, %v1610
        %v1616 = vadd.f32 %v1504, %v1612
        %s1617 = sld [smem:[#allocation2 + $0x55]]
        %v1618 = vstv %s1617
        %v1619 = vmul.f32 %v1618, %v1205
        %v1620 = vmul.f32 %v1618, %v1206
        %v1623 = vrot.slane %v1619, 1
        %v1624 = vrot.slane %v1620, 1
        %v1625 = vsel %vm456, %v1623, %v1624
        %1626 = vrot.lane.b32.xlu0 %v1625, 127
        %v1627 = vpop.permute.xlu0 %1626
        %1628 = vrot.lane.b32.xlu0 %v1624, 127
        %v1629 = vpop.permute.xlu0 %1628
        %v1632 = vadd.f32 %v1516, %v1627
        %v1633 = vadd.f32 %v1517, %v1629
        %s1634 = sld [smem:[#allocation2 + $0x79]]
        %v1635 = vstv %s1634
        %v1636 = vmul.f32 %v1635, %v1205
        %v1637 = vmul.f32 %v1635, %v1206
        %v1640 = vrot.slane %v1636, 1
        %v1641 = vrot.slane %v1637, 1
        %v1642 = vsel %vm456, %v1640, %v1641
        %1643 = vrot.lane.b32.xlu0 %v1642, 127
        %v1644 = vpop.permute.xlu0 %1643
        %1645 = vrot.lane.b32.xlu0 %v1641, 127
        %v1646 = vpop.permute.xlu0 %1645
        %v1649 = vadd.f32 %v1529, %v1644
        %v1650 = vadd.f32 %v1530, %v1646
        %s1651 = sld [smem:[#allocation2 + $0x9d]]
        %v1652 = vstv %s1651
        %v1653 = vmul.f32 %v1652, %v1205
        %v1654 = vmul.f32 %v1652, %v1206
        %v1657 = vrot.slane %v1653, 1
        %v1658 = vrot.slane %v1654, 1
        %v1659 = vsel %vm456, %v1657, %v1658
        %1660 = vrot.lane.b32.xlu0 %v1659, 127
        %v1661 = vpop.permute.xlu0 %1660
        %1662 = vrot.lane.b32.xlu0 %v1658, 127
        %v1663 = vpop.permute.xlu0 %1662
        %v1666 = vadd.f32 %v1542, %v1661
        %v1667 = vadd.f32 %v1543, %v1663
        %s1668 = sld [smem:[#allocation2 + $0xc1]]
        %v1669 = vstv %s1668
        %v1670 = vmul.f32 %v1669, %v1205
        %v1671 = vmul.f32 %v1669, %v1206
        %v1674 = vrot.slane %v1670, 1
        %v1675 = vrot.slane %v1671, 1
        %v1676 = vsel %vm456, %v1674, %v1675
        %1677 = vrot.lane.b32.xlu0 %v1676, 127
        %v1678 = vpop.permute.xlu0 %1677
        %1679 = vrot.lane.b32.xlu0 %v1675, 127
        %v1680 = vpop.permute.xlu0 %1679
        %v1683 = vadd.f32 %v1555, %v1678
        %v1684 = vadd.f32 %v1556, %v1680
        %s1685 = sld [smem:[#allocation2 + $0xe5]]
        %v1686 = vstv %s1685
        %v1687 = vmul.f32 %v1686, %v1205
        %v1688 = vmul.f32 %v1686, %v1206
        %v1691 = vrot.slane %v1687, 1
        %v1692 = vrot.slane %v1688, 1
        %v1693 = vsel %vm456, %v1691, %v1692
        %1694 = vrot.lane.b32.xlu0 %v1693, 127
        %v1695 = vpop.permute.xlu0 %1694
        %1696 = vrot.lane.b32.xlu0 %v1692, 127
        %v1697 = vpop.permute.xlu0 %1696
        %v1700 = vadd.f32 %v1568, %v1695
        %v1701 = vadd.f32 %v1569, %v1697
        %s1702 = sld [smem:[#allocation2 + $0x109]]
        %v1703 = vstv %s1702
        %v1704 = vmul.f32 %v1703, %v1205
        %v1705 = vmul.f32 %v1703, %v1206
        %v1708 = vrot.slane %v1704, 1
        %v1709 = vrot.slane %v1705, 1
        %v1710 = vsel %vm456, %v1708, %v1709
        %1711 = vrot.lane.b32.xlu0 %v1710, 127
        %v1712 = vpop.permute.xlu0 %1711
        %1713 = vrot.lane.b32.xlu0 %v1709, 127
        %v1714 = vpop.permute.xlu0 %1713
        %v1717 = vadd.f32 %v1581, %v1712
        %v1718 = vadd.f32 %v1582, %v1714
        %s1719 = sld [smem:[#allocation2 + $0xe]]
        %v1720 = vstv %s1719
        %v1721 = vmul.f32 %v1720, %v1205
        %v1722 = vmul.f32 %v1720, %v1206
        %v1725 = vrot.slane %v1721, 1
        %v1726 = vrot.slane %v1722, 1
        %v1727 = vsel %vm456, %v1725, %v1726
        %1728 = vrot.lane.b32.xlu0 %v1727, 126
        %v1729 = vpop.permute.xlu0 %1728
        %1730 = vrot.lane.b32.xlu0 %v1726, 126
        %v1731 = vpop.permute.xlu0 %1730
        %v1734 = vadd.f32 %v1598, %v1729
        %v1735 = vadd.f32 %v1599, %v1731
        %s1736 = sld [smem:[#allocation2 + $0x32]]
        %v1737 = vstv %s1736
        %v1738 = vmul.f32 %v1737, %v1205
        %v1739 = vmul.f32 %v1737, %v1206
        %v1742 = vrot.slane %v1738, 1
        %v1743 = vrot.slane %v1739, 1
        %v1744 = vsel %vm456, %v1742, %v1743
        %1745 = vrot.lane.b32.xlu0 %v1744, 126
        %v1746 = vpop.permute.xlu0 %1745
        %1747 = vrot.lane.b32.xlu0 %v1743, 126
        %v1748 = vpop.permute.xlu0 %1747
        %v1751 = vadd.f32 %v1615, %v1746
        %v1752 = vadd.f32 %v1616, %v1748
        %s1753 = sld [smem:[#allocation2 + $0x56]]
        %v1754 = vstv %s1753
        %v1755 = vmul.f32 %v1754, %v1205
        %v1756 = vmul.f32 %v1754, %v1206
        %v1759 = vrot.slane %v1755, 1
        %v1760 = vrot.slane %v1756, 1
        %v1761 = vsel %vm456, %v1759, %v1760
        %1762 = vrot.lane.b32.xlu0 %v1761, 126
        %v1763 = vpop.permute.xlu0 %1762
        %1764 = vrot.lane.b32.xlu0 %v1760, 126
        %v1765 = vpop.permute.xlu0 %1764
        %v1768 = vadd.f32 %v1632, %v1763
        %v1769 = vadd.f32 %v1633, %v1765
        %s1770 = sld [smem:[#allocation2 + $0x7a]]
        %v1771 = vstv %s1770
        %v1772 = vmul.f32 %v1771, %v1205
        %v1773 = vmul.f32 %v1771, %v1206
        %v1776 = vrot.slane %v1772, 1
        %v1777 = vrot.slane %v1773, 1
        %v1778 = vsel %vm456, %v1776, %v1777
        %1779 = vrot.lane.b32.xlu0 %v1778, 126
        %v1780 = vpop.permute.xlu0 %1779
        %1781 = vrot.lane.b32.xlu0 %v1777, 126
        %v1782 = vpop.permute.xlu0 %1781
        %v1785 = vadd.f32 %v1649, %v1780
        %v1786 = vadd.f32 %v1650, %v1782
        %s1787 = sld [smem:[#allocation2 + $0x9e]]
        %v1788 = vstv %s1787
        %v1789 = vmul.f32 %v1788, %v1205
        %v1790 = vmul.f32 %v1788, %v1206
        %v1793 = vrot.slane %v1789, 1
        %v1794 = vrot.slane %v1790, 1
        %v1795 = vsel %vm456, %v1793, %v1794
        %1796 = vrot.lane.b32.xlu0 %v1795, 126
        %v1797 = vpop.permute.xlu0 %1796
        %1798 = vrot.lane.b32.xlu0 %v1794, 126
        %v1799 = vpop.permute.xlu0 %1798
        %v1802 = vadd.f32 %v1666, %v1797
        %v1803 = vadd.f32 %v1667, %v1799
        %s1804 = sld [smem:[#allocation2 + $0xc2]]
        %v1805 = vstv %s1804
        %v1806 = vmul.f32 %v1805, %v1205
        %v1807 = vmul.f32 %v1805, %v1206
        %v1810 = vrot.slane %v1806, 1
        %v1811 = vrot.slane %v1807, 1
        %v1812 = vsel %vm456, %v1810, %v1811
        %1813 = vrot.lane.b32.xlu0 %v1812, 126
        %v1814 = vpop.permute.xlu0 %1813
        %1815 = vrot.lane.b32.xlu0 %v1811, 126
        %v1816 = vpop.permute.xlu0 %1815
        %v1819 = vadd.f32 %v1683, %v1814
        %v1820 = vadd.f32 %v1684, %v1816
        %s1821 = sld [smem:[#allocation2 + $0xe6]]
        %v1822 = vstv %s1821
        %v1823 = vmul.f32 %v1822, %v1205
        %v1824 = vmul.f32 %v1822, %v1206
        %v1827 = vrot.slane %v1823, 1
        %v1828 = vrot.slane %v1824, 1
        %v1829 = vsel %vm456, %v1827, %v1828
        %1830 = vrot.lane.b32.xlu0 %v1829, 126
        %v1831 = vpop.permute.xlu0 %1830
        %1832 = vrot.lane.b32.xlu0 %v1828, 126
        %v1833 = vpop.permute.xlu0 %1832
        %v1836 = vadd.f32 %v1700, %v1831
        %v1837 = vadd.f32 %v1701, %v1833
        %s1838 = sld [smem:[#allocation2 + $0x10a]]
        %v1839 = vstv %s1838
        %v1840 = vmul.f32 %v1839, %v1205
        %v1841 = vmul.f32 %v1839, %v1206
        %v1844 = vrot.slane %v1840, 1
        %v1845 = vrot.slane %v1841, 1
        %v1846 = vsel %vm456, %v1844, %v1845
        %1847 = vrot.lane.b32.xlu0 %v1846, 126
        %v1848 = vpop.permute.xlu0 %1847
        %1849 = vrot.lane.b32.xlu0 %v1845, 126
        %v1850 = vpop.permute.xlu0 %1849
        %v1853 = vadd.f32 %v1717, %v1848
        %v1854 = vadd.f32 %v1718, %v1850
        %s1855 = sld [smem:[#allocation2 + $0xf]]
        %v1856 = vstv %s1855
        %v1857 = vmul.f32 %v1856, %v1205
        %v1858 = vmul.f32 %v1856, %v1206
        %v1861 = vrot.slane %v1857, 2
        %v1862 = vrot.slane %v1858, 2
        %v1863 = vsel %vm833, %v1861, %v1862
        %v1866 = vadd.f32 %v1734, %v1863
        %v1867 = vadd.f32 %v1735, %v1862
        %s1868 = sld [smem:[#allocation2 + $0x33]]
        %v1869 = vstv %s1868
        %v1870 = vmul.f32 %v1869, %v1205
        %v1871 = vmul.f32 %v1869, %v1206
        %v1874 = vrot.slane %v1870, 2
        %v1875 = vrot.slane %v1871, 2
        %v1876 = vsel %vm833, %v1874, %v1875
        %v1879 = vadd.f32 %v1751, %v1876
        %v1880 = vadd.f32 %v1752, %v1875
        %s1881 = sld [smem:[#allocation2 + $0x57]]
        %v1882 = vstv %s1881
        %v1883 = vmul.f32 %v1882, %v1205
        %v1884 = vmul.f32 %v1882, %v1206
        %v1887 = vrot.slane %v1883, 2
        %v1888 = vrot.slane %v1884, 2
        %v1889 = vsel %vm833, %v1887, %v1888
        %v1892 = vadd.f32 %v1768, %v1889
        %v1893 = vadd.f32 %v1769, %v1888
        %s1894 = sld [smem:[#allocation2 + $0x7b]]
        %v1895 = vstv %s1894
        %v1896 = vmul.f32 %v1895, %v1205
        %v1897 = vmul.f32 %v1895, %v1206
        %v1900 = vrot.slane %v1896, 2
        %v1901 = vrot.slane %v1897, 2
        %v1902 = vsel %vm833, %v1900, %v1901
        %v1905 = vadd.f32 %v1785, %v1902
        %v1906 = vadd.f32 %v1786, %v1901
        %s1907 = sld [smem:[#allocation2 + $0x9f]]
        %v1908 = vstv %s1907
        %v1909 = vmul.f32 %v1908, %v1205
        %v1910 = vmul.f32 %v1908, %v1206
        %v1913 = vrot.slane %v1909, 2
        %v1914 = vrot.slane %v1910, 2
        %v1915 = vsel %vm833, %v1913, %v1914
        %v1918 = vadd.f32 %v1802, %v1915
        %v1919 = vadd.f32 %v1803, %v1914
        %s1920 = sld [smem:[#allocation2 + $0xc3]]
        %v1921 = vstv %s1920
        %v1922 = vmul.f32 %v1921, %v1205
        %v1923 = vmul.f32 %v1921, %v1206
        %v1926 = vrot.slane %v1922, 2
        %v1927 = vrot.slane %v1923, 2
        %v1928 = vsel %vm833, %v1926, %v1927
        %v1931 = vadd.f32 %v1819, %v1928
        %v1932 = vadd.f32 %v1820, %v1927
        %s1933 = sld [smem:[#allocation2 + $0xe7]]
        %v1934 = vstv %s1933
        %v1935 = vmul.f32 %v1934, %v1205
        %v1936 = vmul.f32 %v1934, %v1206
        %v1939 = vrot.slane %v1935, 2
        %v1940 = vrot.slane %v1936, 2
        %v1941 = vsel %vm833, %v1939, %v1940
        %v1944 = vadd.f32 %v1836, %v1941
        %v1945 = vadd.f32 %v1837, %v1940
        %s1946 = sld [smem:[#allocation2 + $0x10b]]
        %v1947 = vstv %s1946
        %v1948 = vmul.f32 %v1947, %v1205
        %v1949 = vmul.f32 %v1947, %v1206
        %v1952 = vrot.slane %v1948, 2
        %v1953 = vrot.slane %v1949, 2
        %v1954 = vsel %vm833, %v1952, %v1953
        %v1957 = vadd.f32 %v1853, %v1954
        %v1958 = vadd.f32 %v1854, %v1953
        %s1959 = sld [smem:[#allocation2 + $0x10]]
        %v1960 = vstv %s1959
        %v1961 = vmul.f32 %v1960, %v1205
        %v1962 = vmul.f32 %v1960, %v1206
        %v1965 = vrot.slane %v1961, 2
        %v1966 = vrot.slane %v1962, 2
        %v1967 = vsel %vm833, %v1965, %v1966
        %1968 = vrot.lane.b32.xlu0 %v1967, 127
        %v1969 = vpop.permute.xlu0 %1968
        %1970 = vrot.lane.b32.xlu0 %v1966, 127
        %v1971 = vpop.permute.xlu0 %1970
        %v1974 = vadd.f32 %v1866, %v1969
        %v1975 = vadd.f32 %v1867, %v1971
        %s1976 = sld [smem:[#allocation2 + $0x34]]
        %v1977 = vstv %s1976
        %v1978 = vmul.f32 %v1977, %v1205
        %v1979 = vmul.f32 %v1977, %v1206
        %v1982 = vrot.slane %v1978, 2
        %v1983 = vrot.slane %v1979, 2
        %v1984 = vsel %vm833, %v1982, %v1983
        %1985 = vrot.lane.b32.xlu0 %v1984, 127
        %v1986 = vpop.permute.xlu0 %1985
        %1987 = vrot.lane.b32.xlu0 %v1983, 127
        %v1988 = vpop.permute.xlu0 %1987
        %v1991 = vadd.f32 %v1879, %v1986
        %v1992 = vadd.f32 %v1880, %v1988
        %s1993 = sld [smem:[#allocation2 + $0x58]]
        %v1994 = vstv %s1993
        %v1995 = vmul.f32 %v1994, %v1205
        %v1996 = vmul.f32 %v1994, %v1206
        %v1999 = vrot.slane %v1995, 2
        %v2000 = vrot.slane %v1996, 2
        %v2001 = vsel %vm833, %v1999, %v2000
        %2002 = vrot.lane.b32.xlu0 %v2001, 127
        %v2003 = vpop.permute.xlu0 %2002
        %2004 = vrot.lane.b32.xlu0 %v2000, 127
        %v2005 = vpop.permute.xlu0 %2004
        %v2008 = vadd.f32 %v1892, %v2003
        %v2009 = vadd.f32 %v1893, %v2005
        %s2010 = sld [smem:[#allocation2 + $0x7c]]
        %v2011 = vstv %s2010
        %v2012 = vmul.f32 %v2011, %v1205
        %v2013 = vmul.f32 %v2011, %v1206
        %v2016 = vrot.slane %v2012, 2
        %v2017 = vrot.slane %v2013, 2
        %v2018 = vsel %vm833, %v2016, %v2017
        %2019 = vrot.lane.b32.xlu0 %v2018, 127
        %v2020 = vpop.permute.xlu0 %2019
        %2021 = vrot.lane.b32.xlu0 %v2017, 127
        %v2022 = vpop.permute.xlu0 %2021
        %v2025 = vadd.f32 %v1905, %v2020
        %v2026 = vadd.f32 %v1906, %v2022
        %s2027 = sld [smem:[#allocation2 + $0xa0]]
        %v2028 = vstv %s2027
        %v2029 = vmul.f32 %v2028, %v1205
        %v2030 = vmul.f32 %v2028, %v1206
        %v2033 = vrot.slane %v2029, 2
        %v2034 = vrot.slane %v2030, 2
        %v2035 = vsel %vm833, %v2033, %v2034
        %2036 = vrot.lane.b32.xlu0 %v2035, 127
        %v2037 = vpop.permute.xlu0 %2036
        %2038 = vrot.lane.b32.xlu0 %v2034, 127
        %v2039 = vpop.permute.xlu0 %2038
        %v2042 = vadd.f32 %v1918, %v2037
        %v2043 = vadd.f32 %v1919, %v2039
        %s2044 = sld [smem:[#allocation2 + $0xc4]]
        %v2045 = vstv %s2044
        %v2046 = vmul.f32 %v2045, %v1205
        %v2047 = vmul.f32 %v2045, %v1206
        %v2050 = vrot.slane %v2046, 2
        %v2051 = vrot.slane %v2047, 2
        %v2052 = vsel %vm833, %v2050, %v2051
        %2053 = vrot.lane.b32.xlu0 %v2052, 127
        %v2054 = vpop.permute.xlu0 %2053
        %2055 = vrot.lane.b32.xlu0 %v2051, 127
        %v2056 = vpop.permute.xlu0 %2055
        %v2059 = vadd.f32 %v1931, %v2054
        %v2060 = vadd.f32 %v1932, %v2056
        %s2061 = sld [smem:[#allocation2 + $0xe8]]
        %v2062 = vstv %s2061
        %v2063 = vmul.f32 %v2062, %v1205
        %v2064 = vmul.f32 %v2062, %v1206
        %v2067 = vrot.slane %v2063, 2
        %v2068 = vrot.slane %v2064, 2
        %v2069 = vsel %vm833, %v2067, %v2068
        %2070 = vrot.lane.b32.xlu0 %v2069, 127
        %v2071 = vpop.permute.xlu0 %2070
        %2072 = vrot.lane.b32.xlu0 %v2068, 127
        %v2073 = vpop.permute.xlu0 %2072
        %v2076 = vadd.f32 %v1944, %v2071
        %v2077 = vadd.f32 %v1945, %v2073
        %s2078 = sld [smem:[#allocation2 + $0x10c]]
        %v2079 = vstv %s2078
        %v2080 = vmul.f32 %v2079, %v1205
        %v2081 = vmul.f32 %v2079, %v1206
        %v2084 = vrot.slane %v2080, 2
        %v2085 = vrot.slane %v2081, 2
        %v2086 = vsel %vm833, %v2084, %v2085
        %2087 = vrot.lane.b32.xlu0 %v2086, 127
        %v2088 = vpop.permute.xlu0 %2087
        %2089 = vrot.lane.b32.xlu0 %v2085, 127
        %v2090 = vpop.permute.xlu0 %2089
        %v2093 = vadd.f32 %v1957, %v2088
        %v2094 = vadd.f32 %v1958, %v2090
        %s2095 = sld [smem:[#allocation2 + $0x11]]
        %v2096 = vstv %s2095
        %v2097 = vmul.f32 %v2096, %v1205
        %v2098 = vmul.f32 %v2096, %v1206
        %v2101 = vrot.slane %v2097, 2
        %v2102 = vrot.slane %v2098, 2
        %v2103 = vsel %vm833, %v2101, %v2102
        %2104 = vrot.lane.b32.xlu0 %v2103, 126
        %v2105 = vpop.permute.xlu0 %2104
        %2106 = vrot.lane.b32.xlu0 %v2102, 126
        %v2107 = vpop.permute.xlu0 %2106
        %v2110 = vadd.f32 %v1974, %v2105
        %v2111 = vadd.f32 %v1975, %v2107
        %s2112 = sld [smem:[#allocation2 + $0x35]]
        %v2113 = vstv %s2112
        %v2114 = vmul.f32 %v2113, %v1205
        %v2115 = vmul.f32 %v2113, %v1206
        %v2118 = vrot.slane %v2114, 2
        %v2119 = vrot.slane %v2115, 2
        %v2120 = vsel %vm833, %v2118, %v2119
        %2121 = vrot.lane.b32.xlu0 %v2120, 126
        %v2122 = vpop.permute.xlu0 %2121
        %2123 = vrot.lane.b32.xlu0 %v2119, 126
        %v2124 = vpop.permute.xlu0 %2123
        %v2127 = vadd.f32 %v1991, %v2122
        %v2128 = vadd.f32 %v1992, %v2124
        %s2129 = sld [smem:[#allocation2 + $0x59]]
        %v2130 = vstv %s2129
        %v2131 = vmul.f32 %v2130, %v1205
        %v2132 = vmul.f32 %v2130, %v1206
        %v2135 = vrot.slane %v2131, 2
        %v2136 = vrot.slane %v2132, 2
        %v2137 = vsel %vm833, %v2135, %v2136
        %2138 = vrot.lane.b32.xlu0 %v2137, 126
        %v2139 = vpop.permute.xlu0 %2138
        %2140 = vrot.lane.b32.xlu0 %v2136, 126
        %v2141 = vpop.permute.xlu0 %2140
        %v2144 = vadd.f32 %v2008, %v2139
        %v2145 = vadd.f32 %v2009, %v2141
        %s2146 = sld [smem:[#allocation2 + $0x7d]]
        %v2147 = vstv %s2146
        %v2148 = vmul.f32 %v2147, %v1205
        %v2149 = vmul.f32 %v2147, %v1206
        %v2152 = vrot.slane %v2148, 2
        %v2153 = vrot.slane %v2149, 2
        %v2154 = vsel %vm833, %v2152, %v2153
        %2155 = vrot.lane.b32.xlu0 %v2154, 126
        %v2156 = vpop.permute.xlu0 %2155
        %2157 = vrot.lane.b32.xlu0 %v2153, 126
        %v2158 = vpop.permute.xlu0 %2157
        %v2161 = vadd.f32 %v2025, %v2156
        %v2162 = vadd.f32 %v2026, %v2158
        %s2163 = sld [smem:[#allocation2 + $0xa1]]
        %v2164 = vstv %s2163
        %v2165 = vmul.f32 %v2164, %v1205
        %v2166 = vmul.f32 %v2164, %v1206
        %v2169 = vrot.slane %v2165, 2
        %v2170 = vrot.slane %v2166, 2
        %v2171 = vsel %vm833, %v2169, %v2170
        %2172 = vrot.lane.b32.xlu0 %v2171, 126
        %v2173 = vpop.permute.xlu0 %2172
        %2174 = vrot.lane.b32.xlu0 %v2170, 126
        %v2175 = vpop.permute.xlu0 %2174
        %v2178 = vadd.f32 %v2042, %v2173
        %v2179 = vadd.f32 %v2043, %v2175
        %s2180 = sld [smem:[#allocation2 + $0xc5]]
        %v2181 = vstv %s2180
        %v2182 = vmul.f32 %v2181, %v1205
        %v2183 = vmul.f32 %v2181, %v1206
        %v2186 = vrot.slane %v2182, 2
        %v2187 = vrot.slane %v2183, 2
        %v2188 = vsel %vm833, %v2186, %v2187
        %2189 = vrot.lane.b32.xlu0 %v2188, 126
        %v2190 = vpop.permute.xlu0 %2189
        %2191 = vrot.lane.b32.xlu0 %v2187, 126
        %v2192 = vpop.permute.xlu0 %2191
        %v2195 = vadd.f32 %v2059, %v2190
        %v2196 = vadd.f32 %v2060, %v2192
        %s2197 = sld [smem:[#allocation2 + $0xe9]]
        %v2198 = vstv %s2197
        %v2199 = vmul.f32 %v2198, %v1205
        %v2200 = vmul.f32 %v2198, %v1206
        %v2203 = vrot.slane %v2199, 2
        %v2204 = vrot.slane %v2200, 2
        %v2205 = vsel %vm833, %v2203, %v2204
        %2206 = vrot.lane.b32.xlu0 %v2205, 126
        %v2207 = vpop.permute.xlu0 %2206
        %2208 = vrot.lane.b32.xlu0 %v2204, 126
        %v2209 = vpop.permute.xlu0 %2208
        %v2212 = vadd.f32 %v2076, %v2207
        %v2213 = vadd.f32 %v2077, %v2209
        %s2214 = sld [smem:[#allocation2 + $0x10d]]
        %v2215 = vstv %s2214
        %v2216 = vmul.f32 %v2215, %v1205
        %v2217 = vmul.f32 %v2215, %v1206
        %v2220 = vrot.slane %v2216, 2
        %v2221 = vrot.slane %v2217, 2
        %v2222 = vsel %vm833, %v2220, %v2221
        %2223 = vrot.lane.b32.xlu0 %v2222, 126
        %v2224 = vpop.permute.xlu0 %2223
        %2225 = vrot.lane.b32.xlu0 %v2221, 126
        %v2226 = vpop.permute.xlu0 %2225
        %v2229 = vadd.f32 %v2093, %v2224
        %v2230 = vadd.f32 %v2094, %v2226
        %s2231 = scalar_lea.vmem %s149, 32 [#allocation5]
        %v2232 = vld [vmem:[%s2231] sm:$0xff]
        %v2233 = vld [vmem:[%s2231 + $0x8] sm:$0xff]
        %s2234 = sld [smem:[#allocation2 + $0x12]]
        %v2235 = vstv %s2234
        %v2236 = vmul.f32 %v2235, %v2232
        %v2237 = vmul.f32 %v2235, %v2233
        %v2238 = vadd.f32 %v2110, %v2236
        %v2239 = vadd.f32 %v2111, %v2237
        %s2240 = sld [smem:[#allocation2 + $0x36]]
        %v2241 = vstv %s2240
        %v2242 = vmul.f32 %v2241, %v2232
        %v2243 = vmul.f32 %v2241, %v2233
        %v2244 = vadd.f32 %v2127, %v2242
        %v2245 = vadd.f32 %v2128, %v2243
        %s2246 = sld [smem:[#allocation2 + $0x5a]]
        %v2247 = vstv %s2246
        %v2248 = vmul.f32 %v2247, %v2232
        %v2249 = vmul.f32 %v2247, %v2233
        %v2250 = vadd.f32 %v2144, %v2248
        %v2251 = vadd.f32 %v2145, %v2249
        %s2252 = sld [smem:[#allocation2 + $0x7e]]
        %v2253 = vstv %s2252
        %v2254 = vmul.f32 %v2253, %v2232
        %v2255 = vmul.f32 %v2253, %v2233
        %v2256 = vadd.f32 %v2161, %v2254
        %v2257 = vadd.f32 %v2162, %v2255
        %s2258 = sld [smem:[#allocation2 + $0xa2]]
        %v2259 = vstv %s2258
        %v2260 = vmul.f32 %v2259, %v2232
        %v2261 = vmul.f32 %v2259, %v2233
        %v2262 = vadd.f32 %v2178, %v2260
        %v2263 = vadd.f32 %v2179, %v2261
        %s2264 = sld [smem:[#allocation2 + $0xc6]]
        %v2265 = vstv %s2264
        %v2266 = vmul.f32 %v2265, %v2232
        %v2267 = vmul.f32 %v2265, %v2233
        %v2268 = vadd.f32 %v2195, %v2266
        %v2269 = vadd.f32 %v2196, %v2267
        %s2270 = sld [smem:[#allocation2 + $0xea]]
        %v2271 = vstv %s2270
        %v2272 = vmul.f32 %v2271, %v2232
        %v2273 = vmul.f32 %v2271, %v2233
        %v2274 = vadd.f32 %v2212, %v2272
        %v2275 = vadd.f32 %v2213, %v2273
        %s2276 = sld [smem:[#allocation2 + $0x10e]]
        %v2277 = vstv %s2276
        %v2278 = vmul.f32 %v2277, %v2232
        %v2279 = vmul.f32 %v2277, %v2233
        %v2280 = vadd.f32 %v2229, %v2278
        %v2281 = vadd.f32 %v2230, %v2279
        %s2282 = sld [smem:[#allocation2 + $0x13]]
        %v2283 = vstv %s2282
        %v2284 = vmul.f32 %v2283, %v2232
        %v2285 = vmul.f32 %v2283, %v2233
        %2288 = vrot.lane.b32.xlu0 %v2284, 127
        %v2289 = vpop.permute.xlu0 %2288
        %2290 = vrot.lane.b32.xlu0 %v2285, 127
        %v2291 = vpop.permute.xlu0 %2290
        %v2294 = vadd.f32 %v2238, %v2289
        %v2295 = vadd.f32 %v2239, %v2291
        %s2296 = sld [smem:[#allocation2 + $0x37]]
        %v2297 = vstv %s2296
        %v2298 = vmul.f32 %v2297, %v2232
        %v2299 = vmul.f32 %v2297, %v2233
        %2302 = vrot.lane.b32.xlu0 %v2298, 127
        %v2303 = vpop.permute.xlu0 %2302
        %2304 = vrot.lane.b32.xlu0 %v2299, 127
        %v2305 = vpop.permute.xlu0 %2304
        %v2308 = vadd.f32 %v2244, %v2303
        %v2309 = vadd.f32 %v2245, %v2305
        %s2310 = sld [smem:[#allocation2 + $0x5b]]
        %v2311 = vstv %s2310
        %v2312 = vmul.f32 %v2311, %v2232
        %v2313 = vmul.f32 %v2311, %v2233
        %2316 = vrot.lane.b32.xlu0 %v2312, 127
        %v2317 = vpop.permute.xlu0 %2316
        %2318 = vrot.lane.b32.xlu0 %v2313, 127
        %v2319 = vpop.permute.xlu0 %2318
        %v2322 = vadd.f32 %v2250, %v2317
        %v2323 = vadd.f32 %v2251, %v2319
        %s2324 = sld [smem:[#allocation2 + $0x7f]]
        %v2325 = vstv %s2324
        %v2326 = vmul.f32 %v2325, %v2232
        %v2327 = vmul.f32 %v2325, %v2233
        %2330 = vrot.lane.b32.xlu0 %v2326, 127
        %v2331 = vpop.permute.xlu0 %2330
        %2332 = vrot.lane.b32.xlu0 %v2327, 127
        %v2333 = vpop.permute.xlu0 %2332
        %v2336 = vadd.f32 %v2256, %v2331
        %v2337 = vadd.f32 %v2257, %v2333
        %s2338 = sld [smem:[#allocation2 + $0xa3]]
        %v2339 = vstv %s2338
        %v2340 = vmul.f32 %v2339, %v2232
        %v2341 = vmul.f32 %v2339, %v2233
        %2344 = vrot.lane.b32.xlu0 %v2340, 127
        %v2345 = vpop.permute.xlu0 %2344
        %2346 = vrot.lane.b32.xlu0 %v2341, 127
        %v2347 = vpop.permute.xlu0 %2346
        %v2350 = vadd.f32 %v2262, %v2345
        %v2351 = vadd.f32 %v2263, %v2347
        %s2352 = sld [smem:[#allocation2 + $0xc7]]
        %v2353 = vstv %s2352
        %v2354 = vmul.f32 %v2353, %v2232
        %v2355 = vmul.f32 %v2353, %v2233
        %2358 = vrot.lane.b32.xlu0 %v2354, 127
        %v2359 = vpop.permute.xlu0 %2358
        %2360 = vrot.lane.b32.xlu0 %v2355, 127
        %v2361 = vpop.permute.xlu0 %2360
        %v2364 = vadd.f32 %v2268, %v2359
        %v2365 = vadd.f32 %v2269, %v2361
        %s2366 = sld [smem:[#allocation2 + $0xeb]]
        %v2367 = vstv %s2366
        %v2368 = vmul.f32 %v2367, %v2232
        %v2369 = vmul.f32 %v2367, %v2233
        %2372 = vrot.lane.b32.xlu0 %v2368, 127
        %v2373 = vpop.permute.xlu0 %2372
        %2374 = vrot.lane.b32.xlu0 %v2369, 127
        %v2375 = vpop.permute.xlu0 %2374
        %v2378 = vadd.f32 %v2274, %v2373
        %v2379 = vadd.f32 %v2275, %v2375
        %s2380 = sld [smem:[#allocation2 + $0x10f]]
        %v2381 = vstv %s2380
        %v2382 = vmul.f32 %v2381, %v2232
        %v2383 = vmul.f32 %v2381, %v2233
        %2386 = vrot.lane.b32.xlu0 %v2382, 127
        %v2387 = vpop.permute.xlu0 %2386
        %2388 = vrot.lane.b32.xlu0 %v2383, 127
        %v2389 = vpop.permute.xlu0 %2388
        %v2392 = vadd.f32 %v2280, %v2387
        %v2393 = vadd.f32 %v2281, %v2389
        %s2394 = sld [smem:[#allocation2 + $0x14]]
        %v2395 = vstv %s2394
        %v2396 = vmul.f32 %v2395, %v2232
        %v2397 = vmul.f32 %v2395, %v2233
        %2400 = vrot.lane.b32.xlu0 %v2396, 126
        %v2401 = vpop.permute.xlu0 %2400
        %2402 = vrot.lane.b32.xlu0 %v2397, 126
        %v2403 = vpop.permute.xlu0 %2402
        %v2406 = vadd.f32 %v2294, %v2401
        %v2407 = vadd.f32 %v2295, %v2403
        %s2408 = sld [smem:[#allocation2 + $0x38]]
        %v2409 = vstv %s2408
        %v2410 = vmul.f32 %v2409, %v2232
        %v2411 = vmul.f32 %v2409, %v2233
        %2414 = vrot.lane.b32.xlu0 %v2410, 126
        %v2415 = vpop.permute.xlu0 %2414
        %2416 = vrot.lane.b32.xlu0 %v2411, 126
        %v2417 = vpop.permute.xlu0 %2416
        %v2420 = vadd.f32 %v2308, %v2415
        %v2421 = vadd.f32 %v2309, %v2417
        %s2422 = sld [smem:[#allocation2 + $0x5c]]
        %v2423 = vstv %s2422
        %v2424 = vmul.f32 %v2423, %v2232
        %v2425 = vmul.f32 %v2423, %v2233
        %2428 = vrot.lane.b32.xlu0 %v2424, 126
        %v2429 = vpop.permute.xlu0 %2428
        %2430 = vrot.lane.b32.xlu0 %v2425, 126
        %v2431 = vpop.permute.xlu0 %2430
        %v2434 = vadd.f32 %v2322, %v2429
        %v2435 = vadd.f32 %v2323, %v2431
        %s2436 = sld [smem:[#allocation2 + $0x80]]
        %v2437 = vstv %s2436
        %v2438 = vmul.f32 %v2437, %v2232
        %v2439 = vmul.f32 %v2437, %v2233
        %2442 = vrot.lane.b32.xlu0 %v2438, 126
        %v2443 = vpop.permute.xlu0 %2442
        %2444 = vrot.lane.b32.xlu0 %v2439, 126
        %v2445 = vpop.permute.xlu0 %2444
        %v2448 = vadd.f32 %v2336, %v2443
        %v2449 = vadd.f32 %v2337, %v2445
        %s2450 = sld [smem:[#allocation2 + $0xa4]]
        %v2451 = vstv %s2450
        %v2452 = vmul.f32 %v2451, %v2232
        %v2453 = vmul.f32 %v2451, %v2233
        %2456 = vrot.lane.b32.xlu0 %v2452, 126
        %v2457 = vpop.permute.xlu0 %2456
        %2458 = vrot.lane.b32.xlu0 %v2453, 126
        %v2459 = vpop.permute.xlu0 %2458
        %v2462 = vadd.f32 %v2350, %v2457
        %v2463 = vadd.f32 %v2351, %v2459
        %s2464 = sld [smem:[#allocation2 + $0xc8]]
        %v2465 = vstv %s2464
        %v2466 = vmul.f32 %v2465, %v2232
        %v2467 = vmul.f32 %v2465, %v2233
        %2470 = vrot.lane.b32.xlu0 %v2466, 126
        %v2471 = vpop.permute.xlu0 %2470
        %2472 = vrot.lane.b32.xlu0 %v2467, 126
        %v2473 = vpop.permute.xlu0 %2472
        %v2476 = vadd.f32 %v2364, %v2471
        %v2477 = vadd.f32 %v2365, %v2473
        %s2478 = sld [smem:[#allocation2 + $0xec]]
        %v2479 = vstv %s2478
        %v2480 = vmul.f32 %v2479, %v2232
        %v2481 = vmul.f32 %v2479, %v2233
        %2484 = vrot.lane.b32.xlu0 %v2480, 126
        %v2485 = vpop.permute.xlu0 %2484
        %2486 = vrot.lane.b32.xlu0 %v2481, 126
        %v2487 = vpop.permute.xlu0 %2486
        %v2490 = vadd.f32 %v2378, %v2485
        %v2491 = vadd.f32 %v2379, %v2487
        %s2492 = sld [smem:[#allocation2 + $0x110]]
        %v2493 = vstv %s2492
        %v2494 = vmul.f32 %v2493, %v2232
        %v2495 = vmul.f32 %v2493, %v2233
        %2498 = vrot.lane.b32.xlu0 %v2494, 126
        %v2499 = vpop.permute.xlu0 %2498
        %2500 = vrot.lane.b32.xlu0 %v2495, 126
        %v2501 = vpop.permute.xlu0 %2500
        %v2504 = vadd.f32 %v2392, %v2499
        %v2505 = vadd.f32 %v2393, %v2501
        %s2506 = sld [smem:[#allocation2 + $0x15]]
        %v2507 = vstv %s2506
        %v2508 = vmul.f32 %v2507, %v2232
        %v2509 = vmul.f32 %v2507, %v2233
        %v2512 = vrot.slane %v2508, 1
        %v2513 = vrot.slane %v2509, 1
        %v2514 = vsel %vm456, %v2512, %v2513
        %v2517 = vadd.f32 %v2406, %v2514
        %v2518 = vadd.f32 %v2407, %v2513
        %s2519 = sld [smem:[#allocation2 + $0x39]]
        %v2520 = vstv %s2519
        %v2521 = vmul.f32 %v2520, %v2232
        %v2522 = vmul.f32 %v2520, %v2233
        %v2525 = vrot.slane %v2521, 1
        %v2526 = vrot.slane %v2522, 1
        %v2527 = vsel %vm456, %v2525, %v2526
        %v2530 = vadd.f32 %v2420, %v2527
        %v2531 = vadd.f32 %v2421, %v2526
        %s2532 = sld [smem:[#allocation2 + $0x5d]]
        %v2533 = vstv %s2532
        %v2534 = vmul.f32 %v2533, %v2232
        %v2535 = vmul.f32 %v2533, %v2233
        %v2538 = vrot.slane %v2534, 1
        %v2539 = vrot.slane %v2535, 1
        %v2540 = vsel %vm456, %v2538, %v2539
        %v2543 = vadd.f32 %v2434, %v2540
        %v2544 = vadd.f32 %v2435, %v2539
        %s2545 = sld [smem:[#allocation2 + $0x81]]
        %v2546 = vstv %s2545
        %v2547 = vmul.f32 %v2546, %v2232
        %v2548 = vmul.f32 %v2546, %v2233
        %v2551 = vrot.slane %v2547, 1
        %v2552 = vrot.slane %v2548, 1
        %v2553 = vsel %vm456, %v2551, %v2552
        %v2556 = vadd.f32 %v2448, %v2553
        %v2557 = vadd.f32 %v2449, %v2552
        %s2558 = sld [smem:[#allocation2 + $0xa5]]
        %v2559 = vstv %s2558
        %v2560 = vmul.f32 %v2559, %v2232
        %v2561 = vmul.f32 %v2559, %v2233
        %v2564 = vrot.slane %v2560, 1
        %v2565 = vrot.slane %v2561, 1
        %v2566 = vsel %vm456, %v2564, %v2565
        %v2569 = vadd.f32 %v2462, %v2566
        %v2570 = vadd.f32 %v2463, %v2565
        %s2571 = sld [smem:[#allocation2 + $0xc9]]
        %v2572 = vstv %s2571
        %v2573 = vmul.f32 %v2572, %v2232
        %v2574 = vmul.f32 %v2572, %v2233
        %v2577 = vrot.slane %v2573, 1
        %v2578 = vrot.slane %v2574, 1
        %v2579 = vsel %vm456, %v2577, %v2578
        %v2582 = vadd.f32 %v2476, %v2579
        %v2583 = vadd.f32 %v2477, %v2578
        %s2584 = sld [smem:[#allocation2 + $0xed]]
        %v2585 = vstv %s2584
        %v2586 = vmul.f32 %v2585, %v2232
        %v2587 = vmul.f32 %v2585, %v2233
        %v2590 = vrot.slane %v2586, 1
        %v2591 = vrot.slane %v2587, 1
        %v2592 = vsel %vm456, %v2590, %v2591
        %v2595 = vadd.f32 %v2490, %v2592
        %v2596 = vadd.f32 %v2491, %v2591
        %s2597 = sld [smem:[#allocation2 + $0x111]]
        %v2598 = vstv %s2597
        %v2599 = vmul.f32 %v2598, %v2232
        %v2600 = vmul.f32 %v2598, %v2233
        %v2603 = vrot.slane %v2599, 1
        %v2604 = vrot.slane %v2600, 1
        %v2605 = vsel %vm456, %v2603, %v2604
        %v2608 = vadd.f32 %v2504, %v2605
        %v2609 = vadd.f32 %v2505, %v2604
        %s2610 = sld [smem:[#allocation2 + $0x16]]
        %v2611 = vstv %s2610
        %v2612 = vmul.f32 %v2611, %v2232
        %v2613 = vmul.f32 %v2611, %v2233
        %v2616 = vrot.slane %v2612, 1
        %v2617 = vrot.slane %v2613, 1
        %v2618 = vsel %vm456, %v2616, %v2617
        %2619 = vrot.lane.b32.xlu0 %v2618, 127
        %v2620 = vpop.permute.xlu0 %2619
        %2621 = vrot.lane.b32.xlu0 %v2617, 127
        %v2622 = vpop.permute.xlu0 %2621
        %v2625 = vadd.f32 %v2517, %v2620
        %v2626 = vadd.f32 %v2518, %v2622
        %s2627 = sld [smem:[#allocation2 + $0x3a]]
        %v2628 = vstv %s2627
        %v2629 = vmul.f32 %v2628, %v2232
        %v2630 = vmul.f32 %v2628, %v2233
        %v2633 = vrot.slane %v2629, 1
        %v2634 = vrot.slane %v2630, 1
        %v2635 = vsel %vm456, %v2633, %v2634
        %2636 = vrot.lane.b32.xlu0 %v2635, 127
        %v2637 = vpop.permute.xlu0 %2636
        %2638 = vrot.lane.b32.xlu0 %v2634, 127
        %v2639 = vpop.permute.xlu0 %2638
        %v2642 = vadd.f32 %v2530, %v2637
        %v2643 = vadd.f32 %v2531, %v2639
        %s2644 = sld [smem:[#allocation2 + $0x5e]]
        %v2645 = vstv %s2644
        %v2646 = vmul.f32 %v2645, %v2232
        %v2647 = vmul.f32 %v2645, %v2233
        %v2650 = vrot.slane %v2646, 1
        %v2651 = vrot.slane %v2647, 1
        %v2652 = vsel %vm456, %v2650, %v2651
        %2653 = vrot.lane.b32.xlu0 %v2652, 127
        %v2654 = vpop.permute.xlu0 %2653
        %2655 = vrot.lane.b32.xlu0 %v2651, 127
        %v2656 = vpop.permute.xlu0 %2655
        %v2659 = vadd.f32 %v2543, %v2654
        %v2660 = vadd.f32 %v2544, %v2656
        %s2661 = sld [smem:[#allocation2 + $0x82]]
        %v2662 = vstv %s2661
        %v2663 = vmul.f32 %v2662, %v2232
        %v2664 = vmul.f32 %v2662, %v2233
        %v2667 = vrot.slane %v2663, 1
        %v2668 = vrot.slane %v2664, 1
        %v2669 = vsel %vm456, %v2667, %v2668
        %2670 = vrot.lane.b32.xlu0 %v2669, 127
        %v2671 = vpop.permute.xlu0 %2670
        %2672 = vrot.lane.b32.xlu0 %v2668, 127
        %v2673 = vpop.permute.xlu0 %2672
        %v2676 = vadd.f32 %v2556, %v2671
        %v2677 = vadd.f32 %v2557, %v2673
        %s2678 = sld [smem:[#allocation2 + $0xa6]]
        %v2679 = vstv %s2678
        %v2680 = vmul.f32 %v2679, %v2232
        %v2681 = vmul.f32 %v2679, %v2233
        %v2684 = vrot.slane %v2680, 1
        %v2685 = vrot.slane %v2681, 1
        %v2686 = vsel %vm456, %v2684, %v2685
        %2687 = vrot.lane.b32.xlu0 %v2686, 127
        %v2688 = vpop.permute.xlu0 %2687
        %2689 = vrot.lane.b32.xlu0 %v2685, 127
        %v2690 = vpop.permute.xlu0 %2689
        %v2693 = vadd.f32 %v2569, %v2688
        %v2694 = vadd.f32 %v2570, %v2690
        %s2695 = sld [smem:[#allocation2 + $0xca]]
        %v2696 = vstv %s2695
        %v2697 = vmul.f32 %v2696, %v2232
        %v2698 = vmul.f32 %v2696, %v2233
        %v2701 = vrot.slane %v2697, 1
        %v2702 = vrot.slane %v2698, 1
        %v2703 = vsel %vm456, %v2701, %v2702
        %2704 = vrot.lane.b32.xlu0 %v2703, 127
        %v2705 = vpop.permute.xlu0 %2704
        %2706 = vrot.lane.b32.xlu0 %v2702, 127
        %v2707 = vpop.permute.xlu0 %2706
        %v2710 = vadd.f32 %v2582, %v2705
        %v2711 = vadd.f32 %v2583, %v2707
        %s2712 = sld [smem:[#allocation2 + $0xee]]
        %v2713 = vstv %s2712
        %v2714 = vmul.f32 %v2713, %v2232
        %v2715 = vmul.f32 %v2713, %v2233
        %v2718 = vrot.slane %v2714, 1
        %v2719 = vrot.slane %v2715, 1
        %v2720 = vsel %vm456, %v2718, %v2719
        %2721 = vrot.lane.b32.xlu0 %v2720, 127
        %v2722 = vpop.permute.xlu0 %2721
        %2723 = vrot.lane.b32.xlu0 %v2719, 127
        %v2724 = vpop.permute.xlu0 %2723
        %v2727 = vadd.f32 %v2595, %v2722
        %v2728 = vadd.f32 %v2596, %v2724
        %s2729 = sld [smem:[#allocation2 + $0x112]]
        %v2730 = vstv %s2729
        %v2731 = vmul.f32 %v2730, %v2232
        %v2732 = vmul.f32 %v2730, %v2233
        %v2735 = vrot.slane %v2731, 1
        %v2736 = vrot.slane %v2732, 1
        %v2737 = vsel %vm456, %v2735, %v2736
        %2738 = vrot.lane.b32.xlu0 %v2737, 127
        %v2739 = vpop.permute.xlu0 %2738
        %2740 = vrot.lane.b32.xlu0 %v2736, 127
        %v2741 = vpop.permute.xlu0 %2740
        %v2744 = vadd.f32 %v2608, %v2739
        %v2745 = vadd.f32 %v2609, %v2741
        %s2746 = sld [smem:[#allocation2 + $0x17]]
        %v2747 = vstv %s2746
        %v2748 = vmul.f32 %v2747, %v2232
        %v2749 = vmul.f32 %v2747, %v2233
        %v2752 = vrot.slane %v2748, 1
        %v2753 = vrot.slane %v2749, 1
        %v2754 = vsel %vm456, %v2752, %v2753
        %2755 = vrot.lane.b32.xlu0 %v2754, 126
        %v2756 = vpop.permute.xlu0 %2755
        %2757 = vrot.lane.b32.xlu0 %v2753, 126
        %v2758 = vpop.permute.xlu0 %2757
        %v2761 = vadd.f32 %v2625, %v2756
        %v2762 = vadd.f32 %v2626, %v2758
        %s2763 = sld [smem:[#allocation2 + $0x3b]]
        %v2764 = vstv %s2763
        %v2765 = vmul.f32 %v2764, %v2232
        %v2766 = vmul.f32 %v2764, %v2233
        %v2769 = vrot.slane %v2765, 1
        %v2770 = vrot.slane %v2766, 1
        %v2771 = vsel %vm456, %v2769, %v2770
        %2772 = vrot.lane.b32.xlu0 %v2771, 126
        %v2773 = vpop.permute.xlu0 %2772
        %2774 = vrot.lane.b32.xlu0 %v2770, 126
        %v2775 = vpop.permute.xlu0 %2774
        %v2778 = vadd.f32 %v2642, %v2773
        %v2779 = vadd.f32 %v2643, %v2775
        %s2780 = sld [smem:[#allocation2 + $0x5f]]
        %v2781 = vstv %s2780
        %v2782 = vmul.f32 %v2781, %v2232
        %v2783 = vmul.f32 %v2781, %v2233
        %v2786 = vrot.slane %v2782, 1
        %v2787 = vrot.slane %v2783, 1
        %v2788 = vsel %vm456, %v2786, %v2787
        %2789 = vrot.lane.b32.xlu0 %v2788, 126
        %v2790 = vpop.permute.xlu0 %2789
        %2791 = vrot.lane.b32.xlu0 %v2787, 126
        %v2792 = vpop.permute.xlu0 %2791
        %v2795 = vadd.f32 %v2659, %v2790
        %v2796 = vadd.f32 %v2660, %v2792
        %s2797 = sld [smem:[#allocation2 + $0x83]]
        %v2798 = vstv %s2797
        %v2799 = vmul.f32 %v2798, %v2232
        %v2800 = vmul.f32 %v2798, %v2233
        %v2803 = vrot.slane %v2799, 1
        %v2804 = vrot.slane %v2800, 1
        %v2805 = vsel %vm456, %v2803, %v2804
        %2806 = vrot.lane.b32.xlu0 %v2805, 126
        %v2807 = vpop.permute.xlu0 %2806
        %2808 = vrot.lane.b32.xlu0 %v2804, 126
        %v2809 = vpop.permute.xlu0 %2808
        %v2812 = vadd.f32 %v2676, %v2807
        %v2813 = vadd.f32 %v2677, %v2809
        %s2814 = sld [smem:[#allocation2 + $0xa7]]
        %v2815 = vstv %s2814
        %v2816 = vmul.f32 %v2815, %v2232
        %v2817 = vmul.f32 %v2815, %v2233
        %v2820 = vrot.slane %v2816, 1
        %v2821 = vrot.slane %v2817, 1
        %v2822 = vsel %vm456, %v2820, %v2821
        %2823 = vrot.lane.b32.xlu0 %v2822, 126
        %v2824 = vpop.permute.xlu0 %2823
        %2825 = vrot.lane.b32.xlu0 %v2821, 126
        %v2826 = vpop.permute.xlu0 %2825
        %v2829 = vadd.f32 %v2693, %v2824
        %v2830 = vadd.f32 %v2694, %v2826
        %s2831 = sld [smem:[#allocation2 + $0xcb]]
        %v2832 = vstv %s2831
        %v2833 = vmul.f32 %v2832, %v2232
        %v2834 = vmul.f32 %v2832, %v2233
        %v2837 = vrot.slane %v2833, 1
        %v2838 = vrot.slane %v2834, 1
        %v2839 = vsel %vm456, %v2837, %v2838
        %2840 = vrot.lane.b32.xlu0 %v2839, 126
        %v2841 = vpop.permute.xlu0 %2840
        %2842 = vrot.lane.b32.xlu0 %v2838, 126
        %v2843 = vpop.permute.xlu0 %2842
        %v2846 = vadd.f32 %v2710, %v2841
        %v2847 = vadd.f32 %v2711, %v2843
        %s2848 = sld [smem:[#allocation2 + $0xef]]
        %v2849 = vstv %s2848
        %v2850 = vmul.f32 %v2849, %v2232
        %v2851 = vmul.f32 %v2849, %v2233
        %v2854 = vrot.slane %v2850, 1
        %v2855 = vrot.slane %v2851, 1
        %v2856 = vsel %vm456, %v2854, %v2855
        %2857 = vrot.lane.b32.xlu0 %v2856, 126
        %v2858 = vpop.permute.xlu0 %2857
        %2859 = vrot.lane.b32.xlu0 %v2855, 126
        %v2860 = vpop.permute.xlu0 %2859
        %v2863 = vadd.f32 %v2727, %v2858
        %v2864 = vadd.f32 %v2728, %v2860
        %s2865 = sld [smem:[#allocation2 + $0x113]]
        %v2866 = vstv %s2865
        %v2867 = vmul.f32 %v2866, %v2232
        %v2868 = vmul.f32 %v2866, %v2233
        %v2871 = vrot.slane %v2867, 1
        %v2872 = vrot.slane %v2868, 1
        %v2873 = vsel %vm456, %v2871, %v2872
        %2874 = vrot.lane.b32.xlu0 %v2873, 126
        %v2875 = vpop.permute.xlu0 %2874
        %2876 = vrot.lane.b32.xlu0 %v2872, 126
        %v2877 = vpop.permute.xlu0 %2876
        %v2880 = vadd.f32 %v2744, %v2875
        %v2881 = vadd.f32 %v2745, %v2877
        %s2882 = sld [smem:[#allocation2 + $0x18]]
        %v2883 = vstv %s2882
        %v2884 = vmul.f32 %v2883, %v2232
        %v2885 = vmul.f32 %v2883, %v2233
        %v2888 = vrot.slane %v2884, 2
        %v2889 = vrot.slane %v2885, 2
        %v2890 = vsel %vm833, %v2888, %v2889
        %v2893 = vadd.f32 %v2761, %v2890
        %v2894 = vadd.f32 %v2762, %v2889
        %s2895 = sld [smem:[#allocation2 + $0x3c]]
        %v2896 = vstv %s2895
        %v2897 = vmul.f32 %v2896, %v2232
        %v2898 = vmul.f32 %v2896, %v2233
        %v2901 = vrot.slane %v2897, 2
        %v2902 = vrot.slane %v2898, 2
        %v2903 = vsel %vm833, %v2901, %v2902
        %v2906 = vadd.f32 %v2778, %v2903
        %v2907 = vadd.f32 %v2779, %v2902
        %s2908 = sld [smem:[#allocation2 + $0x60]]
        %v2909 = vstv %s2908
        %v2910 = vmul.f32 %v2909, %v2232
        %v2911 = vmul.f32 %v2909, %v2233
        %v2914 = vrot.slane %v2910, 2
        %v2915 = vrot.slane %v2911, 2
        %v2916 = vsel %vm833, %v2914, %v2915
        %v2919 = vadd.f32 %v2795, %v2916
        %v2920 = vadd.f32 %v2796, %v2915
        %s2921 = sld [smem:[#allocation2 + $0x84]]
        %v2922 = vstv %s2921
        %v2923 = vmul.f32 %v2922, %v2232
        %v2924 = vmul.f32 %v2922, %v2233
        %v2927 = vrot.slane %v2923, 2
        %v2928 = vrot.slane %v2924, 2
        %v2929 = vsel %vm833, %v2927, %v2928
        %v2932 = vadd.f32 %v2812, %v2929
        %v2933 = vadd.f32 %v2813, %v2928
        %s2934 = sld [smem:[#allocation2 + $0xa8]]
        %v2935 = vstv %s2934
        %v2936 = vmul.f32 %v2935, %v2232
        %v2937 = vmul.f32 %v2935, %v2233
        %v2940 = vrot.slane %v2936, 2
        %v2941 = vrot.slane %v2937, 2
        %v2942 = vsel %vm833, %v2940, %v2941
        %v2945 = vadd.f32 %v2829, %v2942
        %v2946 = vadd.f32 %v2830, %v2941
        %s2947 = sld [smem:[#allocation2 + $0xcc]]
        %v2948 = vstv %s2947
        %v2949 = vmul.f32 %v2948, %v2232
        %v2950 = vmul.f32 %v2948, %v2233
        %v2953 = vrot.slane %v2949, 2
        %v2954 = vrot.slane %v2950, 2
        %v2955 = vsel %vm833, %v2953, %v2954
        %v2958 = vadd.f32 %v2846, %v2955
        %v2959 = vadd.f32 %v2847, %v2954
        %s2960 = sld [smem:[#allocation2 + $0xf0]]
        %v2961 = vstv %s2960
        %v2962 = vmul.f32 %v2961, %v2232
        %v2963 = vmul.f32 %v2961, %v2233
        %v2966 = vrot.slane %v2962, 2
        %v2967 = vrot.slane %v2963, 2
        %v2968 = vsel %vm833, %v2966, %v2967
        %v2971 = vadd.f32 %v2863, %v2968
        %v2972 = vadd.f32 %v2864, %v2967
        %s2973 = sld [smem:[#allocation2 + $0x114]]
        %v2974 = vstv %s2973
        %v2975 = vmul.f32 %v2974, %v2232
        %v2976 = vmul.f32 %v2974, %v2233
        %v2979 = vrot.slane %v2975, 2
        %v2980 = vrot.slane %v2976, 2
        %v2981 = vsel %vm833, %v2979, %v2980
        %v2984 = vadd.f32 %v2880, %v2981
        %v2985 = vadd.f32 %v2881, %v2980
        %s2986 = sld [smem:[#allocation2 + $0x19]]
        %v2987 = vstv %s2986
        %v2988 = vmul.f32 %v2987, %v2232
        %v2989 = vmul.f32 %v2987, %v2233
        %v2992 = vrot.slane %v2988, 2
        %v2993 = vrot.slane %v2989, 2
        %v2994 = vsel %vm833, %v2992, %v2993
        %2995 = vrot.lane.b32.xlu0 %v2994, 127
        %v2996 = vpop.permute.xlu0 %2995
        %2997 = vrot.lane.b32.xlu0 %v2993, 127
        %v2998 = vpop.permute.xlu0 %2997
        %v3001 = vadd.f32 %v2893, %v2996
        %v3002 = vadd.f32 %v2894, %v2998
        %s3003 = sld [smem:[#allocation2 + $0x3d]]
        %v3004 = vstv %s3003
        %v3005 = vmul.f32 %v3004, %v2232
        %v3006 = vmul.f32 %v3004, %v2233
        %v3009 = vrot.slane %v3005, 2
        %v3010 = vrot.slane %v3006, 2
        %v3011 = vsel %vm833, %v3009, %v3010
        %3012 = vrot.lane.b32.xlu0 %v3011, 127
        %v3013 = vpop.permute.xlu0 %3012
        %3014 = vrot.lane.b32.xlu0 %v3010, 127
        %v3015 = vpop.permute.xlu0 %3014
        %v3018 = vadd.f32 %v2906, %v3013
        %v3019 = vadd.f32 %v2907, %v3015
        %s3020 = sld [smem:[#allocation2 + $0x61]]
        %v3021 = vstv %s3020
        %v3022 = vmul.f32 %v3021, %v2232
        %v3023 = vmul.f32 %v3021, %v2233
        %v3026 = vrot.slane %v3022, 2
        %v3027 = vrot.slane %v3023, 2
        %v3028 = vsel %vm833, %v3026, %v3027
        %3029 = vrot.lane.b32.xlu0 %v3028, 127
        %v3030 = vpop.permute.xlu0 %3029
        %3031 = vrot.lane.b32.xlu0 %v3027, 127
        %v3032 = vpop.permute.xlu0 %3031
        %v3035 = vadd.f32 %v2919, %v3030
        %v3036 = vadd.f32 %v2920, %v3032
        %s3037 = sld [smem:[#allocation2 + $0x85]]
        %v3038 = vstv %s3037
        %v3039 = vmul.f32 %v3038, %v2232
        %v3040 = vmul.f32 %v3038, %v2233
        %v3043 = vrot.slane %v3039, 2
        %v3044 = vrot.slane %v3040, 2
        %v3045 = vsel %vm833, %v3043, %v3044
        %3046 = vrot.lane.b32.xlu0 %v3045, 127
        %v3047 = vpop.permute.xlu0 %3046
        %3048 = vrot.lane.b32.xlu0 %v3044, 127
        %v3049 = vpop.permute.xlu0 %3048
        %v3052 = vadd.f32 %v2932, %v3047
        %v3053 = vadd.f32 %v2933, %v3049
        %s3054 = sld [smem:[#allocation2 + $0xa9]]
        %v3055 = vstv %s3054
        %v3056 = vmul.f32 %v3055, %v2232
        %v3057 = vmul.f32 %v3055, %v2233
        %v3060 = vrot.slane %v3056, 2
        %v3061 = vrot.slane %v3057, 2
        %v3062 = vsel %vm833, %v3060, %v3061
        %3063 = vrot.lane.b32.xlu0 %v3062, 127
        %v3064 = vpop.permute.xlu0 %3063
        %3065 = vrot.lane.b32.xlu0 %v3061, 127
        %v3066 = vpop.permute.xlu0 %3065
        %v3069 = vadd.f32 %v2945, %v3064
        %v3070 = vadd.f32 %v2946, %v3066
        %s3071 = sld [smem:[#allocation2 + $0xcd]]
        %v3072 = vstv %s3071
        %v3073 = vmul.f32 %v3072, %v2232
        %v3074 = vmul.f32 %v3072, %v2233
        %v3077 = vrot.slane %v3073, 2
        %v3078 = vrot.slane %v3074, 2
        %v3079 = vsel %vm833, %v3077, %v3078
        %3080 = vrot.lane.b32.xlu0 %v3079, 127
        %v3081 = vpop.permute.xlu0 %3080
        %3082 = vrot.lane.b32.xlu0 %v3078, 127
        %v3083 = vpop.permute.xlu0 %3082
        %v3086 = vadd.f32 %v2958, %v3081
        %v3087 = vadd.f32 %v2959, %v3083
        %s3088 = sld [smem:[#allocation2 + $0xf1]]
        %v3089 = vstv %s3088
        %v3090 = vmul.f32 %v3089, %v2232
        %v3091 = vmul.f32 %v3089, %v2233
        %v3094 = vrot.slane %v3090, 2
        %v3095 = vrot.slane %v3091, 2
        %v3096 = vsel %vm833, %v3094, %v3095
        %3097 = vrot.lane.b32.xlu0 %v3096, 127
        %v3098 = vpop.permute.xlu0 %3097
        %3099 = vrot.lane.b32.xlu0 %v3095, 127
        %v3100 = vpop.permute.xlu0 %3099
        %v3103 = vadd.f32 %v2971, %v3098
        %v3104 = vadd.f32 %v2972, %v3100
        %s3105 = sld [smem:[#allocation2 + $0x115]]
        %v3106 = vstv %s3105
        %v3107 = vmul.f32 %v3106, %v2232
        %v3108 = vmul.f32 %v3106, %v2233
        %v3111 = vrot.slane %v3107, 2
        %v3112 = vrot.slane %v3108, 2
        %v3113 = vsel %vm833, %v3111, %v3112
        %3114 = vrot.lane.b32.xlu0 %v3113, 127
        %v3115 = vpop.permute.xlu0 %3114
        %3116 = vrot.lane.b32.xlu0 %v3112, 127
        %v3117 = vpop.permute.xlu0 %3116
        %v3120 = vadd.f32 %v2984, %v3115
        %v3121 = vadd.f32 %v2985, %v3117
        %s3122 = sld [smem:[#allocation2 + $0x1a]]
        %v3123 = vstv %s3122
        %v3124 = vmul.f32 %v3123, %v2232
        %v3125 = vmul.f32 %v3123, %v2233
        %v3128 = vrot.slane %v3124, 2
        %v3129 = vrot.slane %v3125, 2
        %v3130 = vsel %vm833, %v3128, %v3129
        %3131 = vrot.lane.b32.xlu0 %v3130, 126
        %v3132 = vpop.permute.xlu0 %3131
        %3133 = vrot.lane.b32.xlu0 %v3129, 126
        %v3134 = vpop.permute.xlu0 %3133
        %v3137 = vadd.f32 %v3001, %v3132
        %v3138 = vadd.f32 %v3002, %v3134
        %s3139 = sld [smem:[#allocation2 + $0x3e]]
        %v3140 = vstv %s3139
        %v3141 = vmul.f32 %v3140, %v2232
        %v3142 = vmul.f32 %v3140, %v2233
        %v3145 = vrot.slane %v3141, 2
        %v3146 = vrot.slane %v3142, 2
        %v3147 = vsel %vm833, %v3145, %v3146
        %3148 = vrot.lane.b32.xlu0 %v3147, 126
        %v3149 = vpop.permute.xlu0 %3148
        %3150 = vrot.lane.b32.xlu0 %v3146, 126
        %v3151 = vpop.permute.xlu0 %3150
        %v3154 = vadd.f32 %v3018, %v3149
        %v3155 = vadd.f32 %v3019, %v3151
        %s3156 = sld [smem:[#allocation2 + $0x62]]
        %v3157 = vstv %s3156
        %v3158 = vmul.f32 %v3157, %v2232
        %v3159 = vmul.f32 %v3157, %v2233
        %v3162 = vrot.slane %v3158, 2
        %v3163 = vrot.slane %v3159, 2
        %v3164 = vsel %vm833, %v3162, %v3163
        %3165 = vrot.lane.b32.xlu0 %v3164, 126
        %v3166 = vpop.permute.xlu0 %3165
        %3167 = vrot.lane.b32.xlu0 %v3163, 126
        %v3168 = vpop.permute.xlu0 %3167
        %v3171 = vadd.f32 %v3035, %v3166
        %v3172 = vadd.f32 %v3036, %v3168
        %s3173 = sld [smem:[#allocation2 + $0x86]]
        %v3174 = vstv %s3173
        %v3175 = vmul.f32 %v3174, %v2232
        %v3176 = vmul.f32 %v3174, %v2233
        %v3179 = vrot.slane %v3175, 2
        %v3180 = vrot.slane %v3176, 2
        %v3181 = vsel %vm833, %v3179, %v3180
        %3182 = vrot.lane.b32.xlu0 %v3181, 126
        %v3183 = vpop.permute.xlu0 %3182
        %3184 = vrot.lane.b32.xlu0 %v3180, 126
        %v3185 = vpop.permute.xlu0 %3184
        %v3188 = vadd.f32 %v3052, %v3183
        %v3189 = vadd.f32 %v3053, %v3185
        %s3190 = sld [smem:[#allocation2 + $0xaa]]
        %v3191 = vstv %s3190
        %v3192 = vmul.f32 %v3191, %v2232
        %v3193 = vmul.f32 %v3191, %v2233
        %v3196 = vrot.slane %v3192, 2
        %v3197 = vrot.slane %v3193, 2
        %v3198 = vsel %vm833, %v3196, %v3197
        %3199 = vrot.lane.b32.xlu0 %v3198, 126
        %v3200 = vpop.permute.xlu0 %3199
        %3201 = vrot.lane.b32.xlu0 %v3197, 126
        %v3202 = vpop.permute.xlu0 %3201
        %v3205 = vadd.f32 %v3069, %v3200
        %v3206 = vadd.f32 %v3070, %v3202
        %s3207 = sld [smem:[#allocation2 + $0xce]]
        %v3208 = vstv %s3207
        %v3209 = vmul.f32 %v3208, %v2232
        %v3210 = vmul.f32 %v3208, %v2233
        %v3213 = vrot.slane %v3209, 2
        %v3214 = vrot.slane %v3210, 2
        %v3215 = vsel %vm833, %v3213, %v3214
        %3216 = vrot.lane.b32.xlu0 %v3215, 126
        %v3217 = vpop.permute.xlu0 %3216
        %3218 = vrot.lane.b32.xlu0 %v3214, 126
        %v3219 = vpop.permute.xlu0 %3218
        %v3222 = vadd.f32 %v3086, %v3217
        %v3223 = vadd.f32 %v3087, %v3219
        %s3224 = sld [smem:[#allocation2 + $0xf2]]
        %v3225 = vstv %s3224
        %v3226 = vmul.f32 %v3225, %v2232
        %v3227 = vmul.f32 %v3225, %v2233
        %v3230 = vrot.slane %v3226, 2
        %v3231 = vrot.slane %v3227, 2
        %v3232 = vsel %vm833, %v3230, %v3231
        %3233 = vrot.lane.b32.xlu0 %v3232, 126
        %v3234 = vpop.permute.xlu0 %3233
        %3235 = vrot.lane.b32.xlu0 %v3231, 126
        %v3236 = vpop.permute.xlu0 %3235
        %v3239 = vadd.f32 %v3103, %v3234
        %v3240 = vadd.f32 %v3104, %v3236
        %s3241 = sld [smem:[#allocation2 + $0x116]]
        %v3242 = vstv %s3241
        %v3243 = vmul.f32 %v3242, %v2232
        %v3244 = vmul.f32 %v3242, %v2233
        %v3247 = vrot.slane %v3243, 2
        %v3248 = vrot.slane %v3244, 2
        %v3249 = vsel %vm833, %v3247, %v3248
        %3250 = vrot.lane.b32.xlu0 %v3249, 126
        %v3251 = vpop.permute.xlu0 %3250
        %3252 = vrot.lane.b32.xlu0 %v3248, 126
        %v3253 = vpop.permute.xlu0 %3252
        %v3256 = vadd.f32 %v3120, %v3251
        %v3257 = vadd.f32 %v3121, %v3253
        %s3258 = scalar_lea.vmem %s149, 48 [#allocation5]
        %v3259 = vld [vmem:[%s3258] sm:$0xff]
        %v3260 = vld [vmem:[%s3258 + $0x8] sm:$0xff]
        %s3261 = sld [smem:[#allocation2 + $0x1b]]
        %v3262 = vstv %s3261
        %v3263 = vmul.f32 %v3262, %v3259
        %v3264 = vmul.f32 %v3262, %v3260
        %v3265 = vadd.f32 %v3137, %v3263
        %v3266 = vadd.f32 %v3138, %v3264
        %s3267 = sld [smem:[#allocation2 + $0x3f]]
        %v3268 = vstv %s3267
        %v3269 = vmul.f32 %v3268, %v3259
        %v3270 = vmul.f32 %v3268, %v3260
        %v3271 = vadd.f32 %v3154, %v3269
        %v3272 = vadd.f32 %v3155, %v3270
        %s3273 = sld [smem:[#allocation2 + $0x63]]
        %v3274 = vstv %s3273
        %v3275 = vmul.f32 %v3274, %v3259
        %v3276 = vmul.f32 %v3274, %v3260
        %v3277 = vadd.f32 %v3171, %v3275
        %v3278 = vadd.f32 %v3172, %v3276
        %s3279 = sld [smem:[#allocation2 + $0x87]]
        %v3280 = vstv %s3279
        %v3281 = vmul.f32 %v3280, %v3259
        %v3282 = vmul.f32 %v3280, %v3260
        %v3283 = vadd.f32 %v3188, %v3281
        %v3284 = vadd.f32 %v3189, %v3282
        %s3285 = sld [smem:[#allocation2 + $0xab]]
        %v3286 = vstv %s3285
        %v3287 = vmul.f32 %v3286, %v3259
        %v3288 = vmul.f32 %v3286, %v3260
        %v3289 = vadd.f32 %v3205, %v3287
        %v3290 = vadd.f32 %v3206, %v3288
        %s3291 = sld [smem:[#allocation2 + $0xcf]]
        %v3292 = vstv %s3291
        %v3293 = vmul.f32 %v3292, %v3259
        %v3294 = vmul.f32 %v3292, %v3260
        %v3295 = vadd.f32 %v3222, %v3293
        %v3296 = vadd.f32 %v3223, %v3294
        %s3297 = sld [smem:[#allocation2 + $0xf3]]
        %v3298 = vstv %s3297
        %v3299 = vmul.f32 %v3298, %v3259
        %v3300 = vmul.f32 %v3298, %v3260
        %v3301 = vadd.f32 %v3239, %v3299
        %v3302 = vadd.f32 %v3240, %v3300
        %s3303 = sld [smem:[#allocation2 + $0x117]]
        %v3304 = vstv %s3303
        %v3305 = vmul.f32 %v3304, %v3259
        %v3306 = vmul.f32 %v3304, %v3260
        %v3307 = vadd.f32 %v3256, %v3305
        %v3308 = vadd.f32 %v3257, %v3306
        %s3309 = sld [smem:[#allocation2 + $0x1c]]
        %v3310 = vstv %s3309
        %v3311 = vmul.f32 %v3310, %v3259
        %v3312 = vmul.f32 %v3310, %v3260
        %3315 = vrot.lane.b32.xlu0 %v3311, 127
        %v3316 = vpop.permute.xlu0 %3315
        %3317 = vrot.lane.b32.xlu0 %v3312, 127
        %v3318 = vpop.permute.xlu0 %3317
        %v3321 = vadd.f32 %v3265, %v3316
        %v3322 = vadd.f32 %v3266, %v3318
        %s3323 = sld [smem:[#allocation2 + $0x40]]
        %v3324 = vstv %s3323
        %v3325 = vmul.f32 %v3324, %v3259
        %v3326 = vmul.f32 %v3324, %v3260
        %3329 = vrot.lane.b32.xlu0 %v3325, 127
        %v3330 = vpop.permute.xlu0 %3329
        %3331 = vrot.lane.b32.xlu0 %v3326, 127
        %v3332 = vpop.permute.xlu0 %3331
        %v3335 = vadd.f32 %v3271, %v3330
        %v3336 = vadd.f32 %v3272, %v3332
        %s3337 = sld [smem:[#allocation2 + $0x64]]
        %v3338 = vstv %s3337
        %v3339 = vmul.f32 %v3338, %v3259
        %v3340 = vmul.f32 %v3338, %v3260
        %3343 = vrot.lane.b32.xlu0 %v3339, 127
        %v3344 = vpop.permute.xlu0 %3343
        %3345 = vrot.lane.b32.xlu0 %v3340, 127
        %v3346 = vpop.permute.xlu0 %3345
        %v3349 = vadd.f32 %v3277, %v3344
        %v3350 = vadd.f32 %v3278, %v3346
        %s3351 = sld [smem:[#allocation2 + $0x88]]
        %v3352 = vstv %s3351
        %v3353 = vmul.f32 %v3352, %v3259
        %v3354 = vmul.f32 %v3352, %v3260
        %3357 = vrot.lane.b32.xlu0 %v3353, 127
        %v3358 = vpop.permute.xlu0 %3357
        %3359 = vrot.lane.b32.xlu0 %v3354, 127
        %v3360 = vpop.permute.xlu0 %3359
        %v3363 = vadd.f32 %v3283, %v3358
        %v3364 = vadd.f32 %v3284, %v3360
        %s3365 = sld [smem:[#allocation2 + $0xac]]
        %v3366 = vstv %s3365
        %v3367 = vmul.f32 %v3366, %v3259
        %v3368 = vmul.f32 %v3366, %v3260
        %3371 = vrot.lane.b32.xlu0 %v3367, 127
        %v3372 = vpop.permute.xlu0 %3371
        %3373 = vrot.lane.b32.xlu0 %v3368, 127
        %v3374 = vpop.permute.xlu0 %3373
        %v3377 = vadd.f32 %v3289, %v3372
        %v3378 = vadd.f32 %v3290, %v3374
        %s3379 = sld [smem:[#allocation2 + $0xd0]]
        %v3380 = vstv %s3379
        %v3381 = vmul.f32 %v3380, %v3259
        %v3382 = vmul.f32 %v3380, %v3260
        %3385 = vrot.lane.b32.xlu0 %v3381, 127
        %v3386 = vpop.permute.xlu0 %3385
        %3387 = vrot.lane.b32.xlu0 %v3382, 127
        %v3388 = vpop.permute.xlu0 %3387
        %v3391 = vadd.f32 %v3295, %v3386
        %v3392 = vadd.f32 %v3296, %v3388
        %s3393 = sld [smem:[#allocation2 + $0xf4]]
        %v3394 = vstv %s3393
        %v3395 = vmul.f32 %v3394, %v3259
        %v3396 = vmul.f32 %v3394, %v3260
        %3399 = vrot.lane.b32.xlu0 %v3395, 127
        %v3400 = vpop.permute.xlu0 %3399
        %3401 = vrot.lane.b32.xlu0 %v3396, 127
        %v3402 = vpop.permute.xlu0 %3401
        %v3405 = vadd.f32 %v3301, %v3400
        %v3406 = vadd.f32 %v3302, %v3402
        %s3407 = sld [smem:[#allocation2 + $0x118]]
        %v3408 = vstv %s3407
        %v3409 = vmul.f32 %v3408, %v3259
        %v3410 = vmul.f32 %v3408, %v3260
        %3413 = vrot.lane.b32.xlu0 %v3409, 127
        %v3414 = vpop.permute.xlu0 %3413
        %3415 = vrot.lane.b32.xlu0 %v3410, 127
        %v3416 = vpop.permute.xlu0 %3415
        %v3419 = vadd.f32 %v3307, %v3414
        %v3420 = vadd.f32 %v3308, %v3416
        %s3421 = sld [smem:[#allocation2 + $0x1d]]
        %v3422 = vstv %s3421
        %v3423 = vmul.f32 %v3422, %v3259
        %v3424 = vmul.f32 %v3422, %v3260
        %3427 = vrot.lane.b32.xlu0 %v3423, 126
        %v3428 = vpop.permute.xlu0 %3427
        %3429 = vrot.lane.b32.xlu0 %v3424, 126
        %v3430 = vpop.permute.xlu0 %3429
        %v3433 = vadd.f32 %v3321, %v3428
        %v3434 = vadd.f32 %v3322, %v3430
        %s3435 = sld [smem:[#allocation2 + $0x41]]
        %v3436 = vstv %s3435
        %v3437 = vmul.f32 %v3436, %v3259
        %v3438 = vmul.f32 %v3436, %v3260
        %3441 = vrot.lane.b32.xlu0 %v3437, 126
        %v3442 = vpop.permute.xlu0 %3441
        %3443 = vrot.lane.b32.xlu0 %v3438, 126
        %v3444 = vpop.permute.xlu0 %3443
        %v3447 = vadd.f32 %v3335, %v3442
        %v3448 = vadd.f32 %v3336, %v3444
        %s3449 = sld [smem:[#allocation2 + $0x65]]
        %v3450 = vstv %s3449
        %v3451 = vmul.f32 %v3450, %v3259
        %v3452 = vmul.f32 %v3450, %v3260
        %3455 = vrot.lane.b32.xlu0 %v3451, 126
        %v3456 = vpop.permute.xlu0 %3455
        %3457 = vrot.lane.b32.xlu0 %v3452, 126
        %v3458 = vpop.permute.xlu0 %3457
        %v3461 = vadd.f32 %v3349, %v3456
        %v3462 = vadd.f32 %v3350, %v3458
        %s3463 = sld [smem:[#allocation2 + $0x89]]
        %v3464 = vstv %s3463
        %v3465 = vmul.f32 %v3464, %v3259
        %v3466 = vmul.f32 %v3464, %v3260
        %3469 = vrot.lane.b32.xlu0 %v3465, 126
        %v3470 = vpop.permute.xlu0 %3469
        %3471 = vrot.lane.b32.xlu0 %v3466, 126
        %v3472 = vpop.permute.xlu0 %3471
        %v3475 = vadd.f32 %v3363, %v3470
        %v3476 = vadd.f32 %v3364, %v3472
        %s3477 = sld [smem:[#allocation2 + $0xad]]
        %v3478 = vstv %s3477
        %v3479 = vmul.f32 %v3478, %v3259
        %v3480 = vmul.f32 %v3478, %v3260
        %3483 = vrot.lane.b32.xlu0 %v3479, 126
        %v3484 = vpop.permute.xlu0 %3483
        %3485 = vrot.lane.b32.xlu0 %v3480, 126
        %v3486 = vpop.permute.xlu0 %3485
        %v3489 = vadd.f32 %v3377, %v3484
        %v3490 = vadd.f32 %v3378, %v3486
        %s3491 = sld [smem:[#allocation2 + $0xd1]]
        %v3492 = vstv %s3491
        %v3493 = vmul.f32 %v3492, %v3259
        %v3494 = vmul.f32 %v3492, %v3260
        %3497 = vrot.lane.b32.xlu0 %v3493, 126
        %v3498 = vpop.permute.xlu0 %3497
        %3499 = vrot.lane.b32.xlu0 %v3494, 126
        %v3500 = vpop.permute.xlu0 %3499
        %v3503 = vadd.f32 %v3391, %v3498
        %v3504 = vadd.f32 %v3392, %v3500
        %s3505 = sld [smem:[#allocation2 + $0xf5]]
        %v3506 = vstv %s3505
        %v3507 = vmul.f32 %v3506, %v3259
        %v3508 = vmul.f32 %v3506, %v3260
        %3511 = vrot.lane.b32.xlu0 %v3507, 126
        %v3512 = vpop.permute.xlu0 %3511
        %3513 = vrot.lane.b32.xlu0 %v3508, 126
        %v3514 = vpop.permute.xlu0 %3513
        %v3517 = vadd.f32 %v3405, %v3512
        %v3518 = vadd.f32 %v3406, %v3514
        %s3519 = sld [smem:[#allocation2 + $0x119]]
        %v3520 = vstv %s3519
        %v3521 = vmul.f32 %v3520, %v3259
        %v3522 = vmul.f32 %v3520, %v3260
        %3525 = vrot.lane.b32.xlu0 %v3521, 126
        %v3526 = vpop.permute.xlu0 %3525
        %3527 = vrot.lane.b32.xlu0 %v3522, 126
        %v3528 = vpop.permute.xlu0 %3527
        %v3531 = vadd.f32 %v3419, %v3526
        %v3532 = vadd.f32 %v3420, %v3528
        %s3533 = sld [smem:[#allocation2 + $0x1e]]
        %v3534 = vstv %s3533
        %v3535 = vmul.f32 %v3534, %v3259
        %v3536 = vmul.f32 %v3534, %v3260
        %v3539 = vrot.slane %v3535, 1
        %v3540 = vrot.slane %v3536, 1
        %v3541 = vsel %vm456, %v3539, %v3540
        %v3544 = vadd.f32 %v3433, %v3541
        %v3545 = vadd.f32 %v3434, %v3540
        %s3546 = sld [smem:[#allocation2 + $0x42]]
        %v3547 = vstv %s3546
        %v3548 = vmul.f32 %v3547, %v3259
        %v3549 = vmul.f32 %v3547, %v3260
        %v3552 = vrot.slane %v3548, 1
        %v3553 = vrot.slane %v3549, 1
        %v3554 = vsel %vm456, %v3552, %v3553
        %v3557 = vadd.f32 %v3447, %v3554
        %v3558 = vadd.f32 %v3448, %v3553
        %s3559 = sld [smem:[#allocation2 + $0x66]]
        %v3560 = vstv %s3559
        %v3561 = vmul.f32 %v3560, %v3259
        %v3562 = vmul.f32 %v3560, %v3260
        %v3565 = vrot.slane %v3561, 1
        %v3566 = vrot.slane %v3562, 1
        %v3567 = vsel %vm456, %v3565, %v3566
        %v3570 = vadd.f32 %v3461, %v3567
        %v3571 = vadd.f32 %v3462, %v3566
        %s3572 = sld [smem:[#allocation2 + $0x8a]]
        %v3573 = vstv %s3572
        %v3574 = vmul.f32 %v3573, %v3259
        %v3575 = vmul.f32 %v3573, %v3260
        %v3578 = vrot.slane %v3574, 1
        %v3579 = vrot.slane %v3575, 1
        %v3580 = vsel %vm456, %v3578, %v3579
        %v3583 = vadd.f32 %v3475, %v3580
        %v3584 = vadd.f32 %v3476, %v3579
        %s3585 = sld [smem:[#allocation2 + $0xae]]
        %v3586 = vstv %s3585
        %v3587 = vmul.f32 %v3586, %v3259
        %v3588 = vmul.f32 %v3586, %v3260
        %v3591 = vrot.slane %v3587, 1
        %v3592 = vrot.slane %v3588, 1
        %v3593 = vsel %vm456, %v3591, %v3592
        %v3596 = vadd.f32 %v3489, %v3593
        %v3597 = vadd.f32 %v3490, %v3592
        %s3598 = sld [smem:[#allocation2 + $0xd2]]
        %v3599 = vstv %s3598
        %v3600 = vmul.f32 %v3599, %v3259
        %v3601 = vmul.f32 %v3599, %v3260
        %v3604 = vrot.slane %v3600, 1
        %v3605 = vrot.slane %v3601, 1
        %v3606 = vsel %vm456, %v3604, %v3605
        %v3609 = vadd.f32 %v3503, %v3606
        %v3610 = vadd.f32 %v3504, %v3605
        %s3611 = sld [smem:[#allocation2 + $0xf6]]
        %v3612 = vstv %s3611
        %v3613 = vmul.f32 %v3612, %v3259
        %v3614 = vmul.f32 %v3612, %v3260
        %v3617 = vrot.slane %v3613, 1
        %v3618 = vrot.slane %v3614, 1
        %v3619 = vsel %vm456, %v3617, %v3618
        %v3622 = vadd.f32 %v3517, %v3619
        %v3623 = vadd.f32 %v3518, %v3618
        %s3624 = sld [smem:[#allocation2 + $0x11a]]
        %v3625 = vstv %s3624
        %v3626 = vmul.f32 %v3625, %v3259
        %v3627 = vmul.f32 %v3625, %v3260
        %v3630 = vrot.slane %v3626, 1
        %v3631 = vrot.slane %v3627, 1
        %v3632 = vsel %vm456, %v3630, %v3631
        %v3635 = vadd.f32 %v3531, %v3632
        %v3636 = vadd.f32 %v3532, %v3631
        %s3637 = sld [smem:[#allocation2 + $0x1f]]
        %v3638 = vstv %s3637
        %v3639 = vmul.f32 %v3638, %v3259
        %v3640 = vmul.f32 %v3638, %v3260
        %v3643 = vrot.slane %v3639, 1
        %v3644 = vrot.slane %v3640, 1
        %v3645 = vsel %vm456, %v3643, %v3644
        %3646 = vrot.lane.b32.xlu0 %v3645, 127
        %v3647 = vpop.permute.xlu0 %3646
        %3648 = vrot.lane.b32.xlu0 %v3644, 127
        %v3649 = vpop.permute.xlu0 %3648
        %v3652 = vadd.f32 %v3544, %v3647
        %v3653 = vadd.f32 %v3545, %v3649
        %s3654 = sld [smem:[#allocation2 + $0x43]]
        %v3655 = vstv %s3654
        %v3656 = vmul.f32 %v3655, %v3259
        %v3657 = vmul.f32 %v3655, %v3260
        %v3660 = vrot.slane %v3656, 1
        %v3661 = vrot.slane %v3657, 1
        %v3662 = vsel %vm456, %v3660, %v3661
        %3663 = vrot.lane.b32.xlu0 %v3662, 127
        %v3664 = vpop.permute.xlu0 %3663
        %3665 = vrot.lane.b32.xlu0 %v3661, 127
        %v3666 = vpop.permute.xlu0 %3665
        %v3669 = vadd.f32 %v3557, %v3664
        %v3670 = vadd.f32 %v3558, %v3666
        %s3671 = sld [smem:[#allocation2 + $0x67]]
        %v3672 = vstv %s3671
        %v3673 = vmul.f32 %v3672, %v3259
        %v3674 = vmul.f32 %v3672, %v3260
        %v3677 = vrot.slane %v3673, 1
        %v3678 = vrot.slane %v3674, 1
        %v3679 = vsel %vm456, %v3677, %v3678
        %3680 = vrot.lane.b32.xlu0 %v3679, 127
        %v3681 = vpop.permute.xlu0 %3680
        %3682 = vrot.lane.b32.xlu0 %v3678, 127
        %v3683 = vpop.permute.xlu0 %3682
        %v3686 = vadd.f32 %v3570, %v3681
        %v3687 = vadd.f32 %v3571, %v3683
        %s3688 = sld [smem:[#allocation2 + $0x8b]]
        %v3689 = vstv %s3688
        %v3690 = vmul.f32 %v3689, %v3259
        %v3691 = vmul.f32 %v3689, %v3260
        %v3694 = vrot.slane %v3690, 1
        %v3695 = vrot.slane %v3691, 1
        %v3696 = vsel %vm456, %v3694, %v3695
        %3697 = vrot.lane.b32.xlu0 %v3696, 127
        %v3698 = vpop.permute.xlu0 %3697
        %3699 = vrot.lane.b32.xlu0 %v3695, 127
        %v3700 = vpop.permute.xlu0 %3699
        %v3703 = vadd.f32 %v3583, %v3698
        %v3704 = vadd.f32 %v3584, %v3700
        %s3705 = sld [smem:[#allocation2 + $0xaf]]
        %v3706 = vstv %s3705
        %v3707 = vmul.f32 %v3706, %v3259
        %v3708 = vmul.f32 %v3706, %v3260
        %v3711 = vrot.slane %v3707, 1
        %v3712 = vrot.slane %v3708, 1
        %v3713 = vsel %vm456, %v3711, %v3712
        %3714 = vrot.lane.b32.xlu0 %v3713, 127
        %v3715 = vpop.permute.xlu0 %3714
        %3716 = vrot.lane.b32.xlu0 %v3712, 127
        %v3717 = vpop.permute.xlu0 %3716
        %v3720 = vadd.f32 %v3596, %v3715
        %v3721 = vadd.f32 %v3597, %v3717
        %s3722 = sld [smem:[#allocation2 + $0xd3]]
        %v3723 = vstv %s3722
        %v3724 = vmul.f32 %v3723, %v3259
        %v3725 = vmul.f32 %v3723, %v3260
        %v3728 = vrot.slane %v3724, 1
        %v3729 = vrot.slane %v3725, 1
        %v3730 = vsel %vm456, %v3728, %v3729
        %3731 = vrot.lane.b32.xlu0 %v3730, 127
        %v3732 = vpop.permute.xlu0 %3731
        %3733 = vrot.lane.b32.xlu0 %v3729, 127
        %v3734 = vpop.permute.xlu0 %3733
        %v3737 = vadd.f32 %v3609, %v3732
        %v3738 = vadd.f32 %v3610, %v3734
        %s3739 = sld [smem:[#allocation2 + $0xf7]]
        %v3740 = vstv %s3739
        %v3741 = vmul.f32 %v3740, %v3259
        %v3742 = vmul.f32 %v3740, %v3260
        %v3745 = vrot.slane %v3741, 1
        %v3746 = vrot.slane %v3742, 1
        %v3747 = vsel %vm456, %v3745, %v3746
        %3748 = vrot.lane.b32.xlu0 %v3747, 127
        %v3749 = vpop.permute.xlu0 %3748
        %3750 = vrot.lane.b32.xlu0 %v3746, 127
        %v3751 = vpop.permute.xlu0 %3750
        %v3754 = vadd.f32 %v3622, %v3749
        %v3755 = vadd.f32 %v3623, %v3751
        %s3756 = sld [smem:[#allocation2 + $0x11b]]
        %v3757 = vstv %s3756
        %v3758 = vmul.f32 %v3757, %v3259
        %v3759 = vmul.f32 %v3757, %v3260
        %v3762 = vrot.slane %v3758, 1
        %v3763 = vrot.slane %v3759, 1
        %v3764 = vsel %vm456, %v3762, %v3763
        %3765 = vrot.lane.b32.xlu0 %v3764, 127
        %v3766 = vpop.permute.xlu0 %3765
        %3767 = vrot.lane.b32.xlu0 %v3763, 127
        %v3768 = vpop.permute.xlu0 %3767
        %v3771 = vadd.f32 %v3635, %v3766
        %v3772 = vadd.f32 %v3636, %v3768
        %s3773 = sld [smem:[#allocation2 + $0x20]]
        %v3774 = vstv %s3773
        %v3775 = vmul.f32 %v3774, %v3259
        %v3776 = vmul.f32 %v3774, %v3260
        %v3779 = vrot.slane %v3775, 1
        %v3780 = vrot.slane %v3776, 1
        %v3781 = vsel %vm456, %v3779, %v3780
        %3782 = vrot.lane.b32.xlu0 %v3781, 126
        %v3783 = vpop.permute.xlu0 %3782
        %3784 = vrot.lane.b32.xlu0 %v3780, 126
        %v3785 = vpop.permute.xlu0 %3784
        %v3788 = vadd.f32 %v3652, %v3783
        %v3789 = vadd.f32 %v3653, %v3785
        %s3790 = sld [smem:[#allocation2 + $0x44]]
        %v3791 = vstv %s3790
        %v3792 = vmul.f32 %v3791, %v3259
        %v3793 = vmul.f32 %v3791, %v3260
        %v3796 = vrot.slane %v3792, 1
        %v3797 = vrot.slane %v3793, 1
        %v3798 = vsel %vm456, %v3796, %v3797
        %3799 = vrot.lane.b32.xlu0 %v3798, 126
        %v3800 = vpop.permute.xlu0 %3799
        %3801 = vrot.lane.b32.xlu0 %v3797, 126
        %v3802 = vpop.permute.xlu0 %3801
        %v3805 = vadd.f32 %v3669, %v3800
        %v3806 = vadd.f32 %v3670, %v3802
        %s3807 = sld [smem:[#allocation2 + $0x68]]
        %v3808 = vstv %s3807
        %v3809 = vmul.f32 %v3808, %v3259
        %v3810 = vmul.f32 %v3808, %v3260
        %v3813 = vrot.slane %v3809, 1
        %v3814 = vrot.slane %v3810, 1
        %v3815 = vsel %vm456, %v3813, %v3814
        %3816 = vrot.lane.b32.xlu0 %v3815, 126
        %v3817 = vpop.permute.xlu0 %3816
        %3818 = vrot.lane.b32.xlu0 %v3814, 126
        %v3819 = vpop.permute.xlu0 %3818
        %v3822 = vadd.f32 %v3686, %v3817
        %v3823 = vadd.f32 %v3687, %v3819
        %s3824 = sld [smem:[#allocation2 + $0x8c]]
        %v3825 = vstv %s3824
        %v3826 = vmul.f32 %v3825, %v3259
        %v3827 = vmul.f32 %v3825, %v3260
        %v3830 = vrot.slane %v3826, 1
        %v3831 = vrot.slane %v3827, 1
        %v3832 = vsel %vm456, %v3830, %v3831
        %3833 = vrot.lane.b32.xlu0 %v3832, 126
        %v3834 = vpop.permute.xlu0 %3833
        %3835 = vrot.lane.b32.xlu0 %v3831, 126
        %v3836 = vpop.permute.xlu0 %3835
        %v3839 = vadd.f32 %v3703, %v3834
        %v3840 = vadd.f32 %v3704, %v3836
        %s3841 = sld [smem:[#allocation2 + $0xb0]]
        %v3842 = vstv %s3841
        %v3843 = vmul.f32 %v3842, %v3259
        %v3844 = vmul.f32 %v3842, %v3260
        %v3847 = vrot.slane %v3843, 1
        %v3848 = vrot.slane %v3844, 1
        %v3849 = vsel %vm456, %v3847, %v3848
        %3850 = vrot.lane.b32.xlu0 %v3849, 126
        %v3851 = vpop.permute.xlu0 %3850
        %3852 = vrot.lane.b32.xlu0 %v3848, 126
        %v3853 = vpop.permute.xlu0 %3852
        %v3856 = vadd.f32 %v3720, %v3851
        %v3857 = vadd.f32 %v3721, %v3853
        %s3858 = sld [smem:[#allocation2 + $0xd4]]
        %v3859 = vstv %s3858
        %v3860 = vmul.f32 %v3859, %v3259
        %v3861 = vmul.f32 %v3859, %v3260
        %v3864 = vrot.slane %v3860, 1
        %v3865 = vrot.slane %v3861, 1
        %v3866 = vsel %vm456, %v3864, %v3865
        %3867 = vrot.lane.b32.xlu0 %v3866, 126
        %v3868 = vpop.permute.xlu0 %3867
        %3869 = vrot.lane.b32.xlu0 %v3865, 126
        %v3870 = vpop.permute.xlu0 %3869
        %v3873 = vadd.f32 %v3737, %v3868
        %v3874 = vadd.f32 %v3738, %v3870
        %s3875 = sld [smem:[#allocation2 + $0xf8]]
        %v3876 = vstv %s3875
        %v3877 = vmul.f32 %v3876, %v3259
        %v3878 = vmul.f32 %v3876, %v3260
        %v3881 = vrot.slane %v3877, 1
        %v3882 = vrot.slane %v3878, 1
        %v3883 = vsel %vm456, %v3881, %v3882
        %3884 = vrot.lane.b32.xlu0 %v3883, 126
        %v3885 = vpop.permute.xlu0 %3884
        %3886 = vrot.lane.b32.xlu0 %v3882, 126
        %v3887 = vpop.permute.xlu0 %3886
        %v3890 = vadd.f32 %v3754, %v3885
        %v3891 = vadd.f32 %v3755, %v3887
        %s3892 = sld [smem:[#allocation2 + $0x11c]]
        %v3893 = vstv %s3892
        %v3894 = vmul.f32 %v3893, %v3259
        %v3895 = vmul.f32 %v3893, %v3260
        %v3898 = vrot.slane %v3894, 1
        %v3899 = vrot.slane %v3895, 1
        %v3900 = vsel %vm456, %v3898, %v3899
        %3901 = vrot.lane.b32.xlu0 %v3900, 126
        %v3902 = vpop.permute.xlu0 %3901
        %3903 = vrot.lane.b32.xlu0 %v3899, 126
        %v3904 = vpop.permute.xlu0 %3903
        %v3907 = vadd.f32 %v3771, %v3902
        %v3908 = vadd.f32 %v3772, %v3904
        %s3909 = sld [smem:[#allocation2 + $0x21]]
        %v3910 = vstv %s3909
        %v3911 = vmul.f32 %v3910, %v3259
        %v3912 = vmul.f32 %v3910, %v3260
        %v3915 = vrot.slane %v3911, 2
        %v3916 = vrot.slane %v3912, 2
        %v3917 = vsel %vm833, %v3915, %v3916
        %v3920 = vadd.f32 %v3788, %v3917
        %v3921 = vadd.f32 %v3789, %v3916
        %s3922 = sld [smem:[#allocation2 + $0x45]]
        %v3923 = vstv %s3922
        %v3924 = vmul.f32 %v3923, %v3259
        %v3925 = vmul.f32 %v3923, %v3260
        %v3928 = vrot.slane %v3924, 2
        %v3929 = vrot.slane %v3925, 2
        %v3930 = vsel %vm833, %v3928, %v3929
        %v3933 = vadd.f32 %v3805, %v3930
        %v3934 = vadd.f32 %v3806, %v3929
        %s3935 = sld [smem:[#allocation2 + $0x69]]
        %v3936 = vstv %s3935
        %v3937 = vmul.f32 %v3936, %v3259
        %v3938 = vmul.f32 %v3936, %v3260
        %v3941 = vrot.slane %v3937, 2
        %v3942 = vrot.slane %v3938, 2
        %v3943 = vsel %vm833, %v3941, %v3942
        %v3946 = vadd.f32 %v3822, %v3943
        %v3947 = vadd.f32 %v3823, %v3942
        %s3948 = sld [smem:[#allocation2 + $0x8d]]
        %v3949 = vstv %s3948
        %v3950 = vmul.f32 %v3949, %v3259
        %v3951 = vmul.f32 %v3949, %v3260
        %v3954 = vrot.slane %v3950, 2
        %v3955 = vrot.slane %v3951, 2
        %v3956 = vsel %vm833, %v3954, %v3955
        %v3959 = vadd.f32 %v3839, %v3956
        %v3960 = vadd.f32 %v3840, %v3955
        %s3961 = sld [smem:[#allocation2 + $0xb1]]
        %v3962 = vstv %s3961
        %v3963 = vmul.f32 %v3962, %v3259
        %v3964 = vmul.f32 %v3962, %v3260
        %v3967 = vrot.slane %v3963, 2
        %v3968 = vrot.slane %v3964, 2
        %v3969 = vsel %vm833, %v3967, %v3968
        %v3972 = vadd.f32 %v3856, %v3969
        %v3973 = vadd.f32 %v3857, %v3968
        %s3974 = sld [smem:[#allocation2 + $0xd5]]
        %v3975 = vstv %s3974
        %v3976 = vmul.f32 %v3975, %v3259
        %v3977 = vmul.f32 %v3975, %v3260
        %v3980 = vrot.slane %v3976, 2
        %v3981 = vrot.slane %v3977, 2
        %v3982 = vsel %vm833, %v3980, %v3981
        %v3985 = vadd.f32 %v3873, %v3982
        %v3986 = vadd.f32 %v3874, %v3981
        %s3987 = sld [smem:[#allocation2 + $0xf9]]
        %v3988 = vstv %s3987
        %v3989 = vmul.f32 %v3988, %v3259
        %v3990 = vmul.f32 %v3988, %v3260
        %v3993 = vrot.slane %v3989, 2
        %v3994 = vrot.slane %v3990, 2
        %v3995 = vsel %vm833, %v3993, %v3994
        %v3998 = vadd.f32 %v3890, %v3995
        %v3999 = vadd.f32 %v3891, %v3994
        %s4000 = sld [smem:[#allocation2 + $0x11d]]
        %v4001 = vstv %s4000
        %v4002 = vmul.f32 %v4001, %v3259
        %v4003 = vmul.f32 %v4001, %v3260
        %v4006 = vrot.slane %v4002, 2
        %v4007 = vrot.slane %v4003, 2
        %v4008 = vsel %vm833, %v4006, %v4007
        %v4011 = vadd.f32 %v3907, %v4008
        %v4012 = vadd.f32 %v3908, %v4007
        %s4013 = sld [smem:[#allocation2 + $0x22]]
        %v4014 = vstv %s4013
        %v4015 = vmul.f32 %v4014, %v3259
        %v4016 = vmul.f32 %v4014, %v3260
        %v4019 = vrot.slane %v4015, 2
        %v4020 = vrot.slane %v4016, 2
        %v4021 = vsel %vm833, %v4019, %v4020
        %4022 = vrot.lane.b32.xlu0 %v4021, 127
        %v4023 = vpop.permute.xlu0 %4022
        %4024 = vrot.lane.b32.xlu0 %v4020, 127
        %v4025 = vpop.permute.xlu0 %4024
        %v4028 = vadd.f32 %v3920, %v4023
        %v4029 = vadd.f32 %v3921, %v4025
        %s4030 = sld [smem:[#allocation2 + $0x46]]
        %v4031 = vstv %s4030
        %v4032 = vmul.f32 %v4031, %v3259
        %v4033 = vmul.f32 %v4031, %v3260
        %v4036 = vrot.slane %v4032, 2
        %v4037 = vrot.slane %v4033, 2
        %v4038 = vsel %vm833, %v4036, %v4037
        %4039 = vrot.lane.b32.xlu0 %v4038, 127
        %v4040 = vpop.permute.xlu0 %4039
        %4041 = vrot.lane.b32.xlu0 %v4037, 127
        %v4042 = vpop.permute.xlu0 %4041
        %v4045 = vadd.f32 %v3933, %v4040
        %v4046 = vadd.f32 %v3934, %v4042
        %s4047 = sld [smem:[#allocation2 + $0x6a]]
        %v4048 = vstv %s4047
        %v4049 = vmul.f32 %v4048, %v3259
        %v4050 = vmul.f32 %v4048, %v3260
        %v4053 = vrot.slane %v4049, 2
        %v4054 = vrot.slane %v4050, 2
        %v4055 = vsel %vm833, %v4053, %v4054
        %4056 = vrot.lane.b32.xlu0 %v4055, 127
        %v4057 = vpop.permute.xlu0 %4056
        %4058 = vrot.lane.b32.xlu0 %v4054, 127
        %v4059 = vpop.permute.xlu0 %4058
        %v4062 = vadd.f32 %v3946, %v4057
        %v4063 = vadd.f32 %v3947, %v4059
        %s4064 = sld [smem:[#allocation2 + $0x8e]]
        %v4065 = vstv %s4064
        %v4066 = vmul.f32 %v4065, %v3259
        %v4067 = vmul.f32 %v4065, %v3260
        %v4070 = vrot.slane %v4066, 2
        %v4071 = vrot.slane %v4067, 2
        %v4072 = vsel %vm833, %v4070, %v4071
        %4073 = vrot.lane.b32.xlu0 %v4072, 127
        %v4074 = vpop.permute.xlu0 %4073
        %4075 = vrot.lane.b32.xlu0 %v4071, 127
        %v4076 = vpop.permute.xlu0 %4075
        %v4079 = vadd.f32 %v3959, %v4074
        %v4080 = vadd.f32 %v3960, %v4076
        %s4081 = sld [smem:[#allocation2 + $0xb2]]
        %v4082 = vstv %s4081
        %v4083 = vmul.f32 %v4082, %v3259
        %v4084 = vmul.f32 %v4082, %v3260
        %v4087 = vrot.slane %v4083, 2
        %v4088 = vrot.slane %v4084, 2
        %v4089 = vsel %vm833, %v4087, %v4088
        %4090 = vrot.lane.b32.xlu0 %v4089, 127
        %v4091 = vpop.permute.xlu0 %4090
        %4092 = vrot.lane.b32.xlu0 %v4088, 127
        %v4093 = vpop.permute.xlu0 %4092
        %v4096 = vadd.f32 %v3972, %v4091
        %v4097 = vadd.f32 %v3973, %v4093
        %s4098 = sld [smem:[#allocation2 + $0xd6]]
        %v4099 = vstv %s4098
        %v4100 = vmul.f32 %v4099, %v3259
        %v4101 = vmul.f32 %v4099, %v3260
        %v4104 = vrot.slane %v4100, 2
        %v4105 = vrot.slane %v4101, 2
        %v4106 = vsel %vm833, %v4104, %v4105
        %4107 = vrot.lane.b32.xlu0 %v4106, 127
        %v4108 = vpop.permute.xlu0 %4107
        %4109 = vrot.lane.b32.xlu0 %v4105, 127
        %v4110 = vpop.permute.xlu0 %4109
        %v4113 = vadd.f32 %v3985, %v4108
        %v4114 = vadd.f32 %v3986, %v4110
        %s4115 = sld [smem:[#allocation2 + $0xfa]]
        %v4116 = vstv %s4115
        %v4117 = vmul.f32 %v4116, %v3259
        %v4118 = vmul.f32 %v4116, %v3260
        %v4121 = vrot.slane %v4117, 2
        %v4122 = vrot.slane %v4118, 2
        %v4123 = vsel %vm833, %v4121, %v4122
        %4124 = vrot.lane.b32.xlu0 %v4123, 127
        %v4125 = vpop.permute.xlu0 %4124
        %4126 = vrot.lane.b32.xlu0 %v4122, 127
        %v4127 = vpop.permute.xlu0 %4126
        %v4130 = vadd.f32 %v3998, %v4125
        %v4131 = vadd.f32 %v3999, %v4127
        %s4132 = sld [smem:[#allocation2 + $0x11e]]
        %v4133 = vstv %s4132
        %v4134 = vmul.f32 %v4133, %v3259
        %v4135 = vmul.f32 %v4133, %v3260
        %v4138 = vrot.slane %v4134, 2
        %v4139 = vrot.slane %v4135, 2
        %v4140 = vsel %vm833, %v4138, %v4139
        %4141 = vrot.lane.b32.xlu0 %v4140, 127
        %v4142 = vpop.permute.xlu0 %4141
        %4143 = vrot.lane.b32.xlu0 %v4139, 127
        %v4144 = vpop.permute.xlu0 %4143
        %v4147 = vadd.f32 %v4011, %v4142
        %v4148 = vadd.f32 %v4012, %v4144
        %s4149 = sld [smem:[#allocation2 + $0x23]]
        %v4150 = vstv %s4149
        %v4151 = vmul.f32 %v4150, %v3259
        %v4152 = vmul.f32 %v4150, %v3260
        %v4155 = vrot.slane %v4151, 2
        %v4156 = vrot.slane %v4152, 2
        %v4157 = vsel %vm833, %v4155, %v4156
        %4158 = vrot.lane.b32.xlu0 %v4157, 126
        %v4159 = vpop.permute.xlu0 %4158
        %4160 = vrot.lane.b32.xlu0 %v4156, 126
        %v4161 = vpop.permute.xlu0 %4160
        %v4164 = vadd.f32 %v4028, %v4159
        %v4165 = vadd.f32 %v4029, %v4161
        %s4166 = sld [smem:[#allocation2 + $0x47]]
        %v4167 = vstv %s4166
        %v4168 = vmul.f32 %v4167, %v3259
        %v4169 = vmul.f32 %v4167, %v3260
        %v4172 = vrot.slane %v4168, 2
        %v4173 = vrot.slane %v4169, 2
        %v4174 = vsel %vm833, %v4172, %v4173
        %4175 = vrot.lane.b32.xlu0 %v4174, 126
        %v4176 = vpop.permute.xlu0 %4175
        %4177 = vrot.lane.b32.xlu0 %v4173, 126
        %v4178 = vpop.permute.xlu0 %4177
        %v4181 = vadd.f32 %v4045, %v4176
        %v4182 = vadd.f32 %v4046, %v4178
        %s4183 = sld [smem:[#allocation2 + $0x6b]]
        %v4184 = vstv %s4183
        %v4185 = vmul.f32 %v4184, %v3259
        %v4186 = vmul.f32 %v4184, %v3260
        %v4189 = vrot.slane %v4185, 2
        %v4190 = vrot.slane %v4186, 2
        %v4191 = vsel %vm833, %v4189, %v4190
        %4192 = vrot.lane.b32.xlu0 %v4191, 126
        %v4193 = vpop.permute.xlu0 %4192
        %4194 = vrot.lane.b32.xlu0 %v4190, 126
        %v4195 = vpop.permute.xlu0 %4194
        %v4198 = vadd.f32 %v4062, %v4193
        %v4199 = vadd.f32 %v4063, %v4195
        %s4200 = sld [smem:[#allocation2 + $0x8f]]
        %v4201 = vstv %s4200
        %v4202 = vmul.f32 %v4201, %v3259
        %v4203 = vmul.f32 %v4201, %v3260
        %v4206 = vrot.slane %v4202, 2
        %v4207 = vrot.slane %v4203, 2
        %v4208 = vsel %vm833, %v4206, %v4207
        %4209 = vrot.lane.b32.xlu0 %v4208, 126
        %v4210 = vpop.permute.xlu0 %4209
        %4211 = vrot.lane.b32.xlu0 %v4207, 126
        %v4212 = vpop.permute.xlu0 %4211
        %v4215 = vadd.f32 %v4079, %v4210
        %v4216 = vadd.f32 %v4080, %v4212
        %s4217 = sld [smem:[#allocation2 + $0xb3]]
        %v4218 = vstv %s4217
        %v4219 = vmul.f32 %v4218, %v3259
        %v4220 = vmul.f32 %v4218, %v3260
        %v4223 = vrot.slane %v4219, 2
        %v4224 = vrot.slane %v4220, 2
        %v4225 = vsel %vm833, %v4223, %v4224
        %4226 = vrot.lane.b32.xlu0 %v4225, 126
        %v4227 = vpop.permute.xlu0 %4226
        %4228 = vrot.lane.b32.xlu0 %v4224, 126
        %v4229 = vpop.permute.xlu0 %4228
        %v4232 = vadd.f32 %v4096, %v4227
        %v4233 = vadd.f32 %v4097, %v4229
        %s4234 = sld [smem:[#allocation2 + $0xd7]]
        %v4235 = vstv %s4234
        %v4236 = vmul.f32 %v4235, %v3259
        %v4237 = vmul.f32 %v4235, %v3260
        %v4240 = vrot.slane %v4236, 2
        %v4241 = vrot.slane %v4237, 2
        %v4242 = vsel %vm833, %v4240, %v4241
        %4243 = vrot.lane.b32.xlu0 %v4242, 126
        %v4244 = vpop.permute.xlu0 %4243
        %4245 = vrot.lane.b32.xlu0 %v4241, 126
        %v4246 = vpop.permute.xlu0 %4245
        %v4249 = vadd.f32 %v4113, %v4244
        %v4250 = vadd.f32 %v4114, %v4246
        %s4251 = sld [smem:[#allocation2 + $0xfb]]
        %v4252 = vstv %s4251
        %v4253 = vmul.f32 %v4252, %v3259
        %v4254 = vmul.f32 %v4252, %v3260
        %v4257 = vrot.slane %v4253, 2
        %v4258 = vrot.slane %v4254, 2
        %v4259 = vsel %vm833, %v4257, %v4258
        %4260 = vrot.lane.b32.xlu0 %v4259, 126
        %v4261 = vpop.permute.xlu0 %4260
        %4262 = vrot.lane.b32.xlu0 %v4258, 126
        %v4263 = vpop.permute.xlu0 %4262
        %v4266 = vadd.f32 %v4130, %v4261
        %v4267 = vadd.f32 %v4131, %v4263
        %s4268 = sld [smem:[#allocation2 + $0x11f]]
        %v4269 = vstv %s4268
        %v4270 = vmul.f32 %v4269, %v3259
        %v4271 = vmul.f32 %v4269, %v3260
        %v4274 = vrot.slane %v4270, 2
        %v4275 = vrot.slane %v4271, 2
        %v4276 = vsel %vm833, %v4274, %v4275
        %4277 = vrot.lane.b32.xlu0 %v4276, 126
        %v4278 = vpop.permute.xlu0 %4277
        %4279 = vrot.lane.b32.xlu0 %v4275, 126
        %v4280 = vpop.permute.xlu0 %4279
        %v4283 = vadd.f32 %v4147, %v4278
        %v4284 = vadd.f32 %v4148, %v4280
        %vm4285 = vcmask 113664
        %4286 = vst.msk [vmem:[%s175] sm:$0xff] %vm4285, %v4164
        %vm4287 = vcmask 111616
        %4288 = vst.msk [vmem:[%s175 + $0x8] sm:$0x3f] %vm4287, %v4165
        %s4289 = scalar_lea.vmem %s175, 16
        %4290 = vst.msk [vmem:[%s4289] sm:$0xff] %vm4285, %v4181
        %4291 = vst.msk [vmem:[%s4289 + $0x8] sm:$0x3f] %vm4287, %v4182
        %s4292 = scalar_lea.vmem %s175, 32
        %4293 = vst.msk [vmem:[%s4292] sm:$0xff] %vm4285, %v4198
        %4294 = vst.msk [vmem:[%s4292 + $0x8] sm:$0x3f] %vm4287, %v4199
        %s4295 = scalar_lea.vmem %s175, 48
        %4296 = vst.msk [vmem:[%s4295] sm:$0xff] %vm4285, %v4215
        %4297 = vst.msk [vmem:[%s4295 + $0x8] sm:$0x3f] %vm4287, %v4216
        %s4298 = scalar_lea.vmem %s175, 64
        %4299 = vst.msk [vmem:[%s4298] sm:$0xff] %vm4285, %v4232
        %4300 = vst.msk [vmem:[%s4298 + $0x8] sm:$0x3f] %vm4287, %v4233
        %s4301 = scalar_lea.vmem %s175, 80
        %4302 = vst.msk [vmem:[%s4301] sm:$0xff] %vm4285, %v4249
        %4303 = vst.msk [vmem:[%s4301 + $0x8] sm:$0x3f] %vm4287, %v4250
        %s4304 = scalar_lea.vmem %s175, 96
        %4305 = vst.msk [vmem:[%s4304] sm:$0xff] %vm4285, %v4266
        %4306 = vst.msk [vmem:[%s4304 + $0x8] sm:$0x3f] %vm4287, %v4267
        %s4307 = scalar_lea.vmem %s175, 112
        %4308 = vst.msk [vmem:[%s4307] sm:$0xff] %vm4285, %v4283
        %4309 = vst.msk [vmem:[%s4307 + $0x8] sm:$0x3f] %vm4287, %v4284
        %p4310 = scmp.lt.s32.totalorder %s17, 1
        %s4311 = scalar_select %p4310, %s17, 1
        %s4312 = smul.addr %s4311, 16
        %s4313 = smul.addr %s4312, 8
        %s4314 = scalar_lea.vmem %s2, %s4313
        // Predicated region
        $region37: #{tpu_custom_call.1} parent=27 // pred_check
          %p4315 = pneg %p82
        $region38: #{tpu_custom_call.1} parent=27 // pred_check_branch
          %4317 = sbr.rel (%p4315) target = $region40
        $region39: #{tpu_custom_call.1} parent=27 // pred_region
          _
        $region40: #{tpu_custom_call.1} parent=27 // pred_fallthru
          _
      $region28: #{tpu_custom_call.1} parent=5 // pred_fallthru
        _
      %p4318 = scmp.le.s32.totalorder 2, %s12
      // Predicated region
      $region41: #{tpu_custom_call.1} parent=5 // pred_check
        %p4319 = pneg %p4318
      $region42: #{tpu_custom_call.1} parent=5 // pred_check_branch
        %4321 = sbr.rel (%p4319) target = $region44
      $region43: #{tpu_custom_call.1} parent=5 // pred_region
        %s4322 = ssub.s32 %s12, 2
        // Predicated region
        $region45: #{tpu_custom_call.1} parent=43 // pred_check
          %p4323 = pneg %p88
        $region46: #{tpu_custom_call.1} parent=43 // pred_check_branch
          %4325 = sbr.rel (%p4323) target = $region48
        $region47: #{tpu_custom_call.1} parent=43 // pred_region
          %p4326 = scmp.lt.s32.totalorder %s18, 1
          %s4327 = scalar_select %p4326, %s18, 1
          %s4328 = smul.addr %s4327, 16
          %s4329 = smul.addr %s4328, 8
          %s4330 = scalar_lea.vmem %s2, %s4329
        $region48: #{tpu_custom_call.1} parent=43 // pred_fallthru
          _
      $region44: #{tpu_custom_call.1} parent=5 // pred_fallthru
        _
    $region6: #{tpu_custom_call.1} parent=1 // loop_footer
      %s16 = sadd.s32 1, %s12
    $region7: #{tpu_custom_call.1} parent=1 // loop_footer_branch
      %11 = sbr.rel target = $region3
    $region8: #{tpu_custom_call.1} parent=1 // loop_exit
      _
    %4331 = vsyncpa [#allocation3], 1
    %s4332 = scalar_lea.sflag [#allocation3], 1
    %4333 = vsyncpa %s4332, 1
    %4334 = vsyncpa [#allocation4], 1
    %s4335 = scalar_lea.sflag [#allocation4], 1
    %4336 = vsyncpa %s4335, 1

</llo_original>
